<compile_context>
chip_gen: v7x
topology: tpu7x:2x2x1
jax: 0.10.0
libtpu: 0.0.40
codegen_flags: <defaults>
</compile_context>

<pallas_src>
import jax
import jax.numpy as jnp
import numpy as np
from jax import lax
from jax.experimental import pallas as pl
from jax.experimental.pallas import tpu as pltpu

LANE = 128   # channel padding target (TPU lane width)
SUB = 16     # width padding target (bf16 sublane tile -> aligned row slices)


def _make_basic_block_kernel(H, Wp, W_real, CP):
    """Build the fused-block kernel for static (H, padded W, real W, padded C)."""
    HW = H * Wp
    NR = (H - 1) * Wp  # rows touched by the off-centre (ky != 1) row taps

    def kernel(x_ref, w1_ref, b1_ref, w2_ref, b2_ref, out_ref, src_ref, acc_ref):
        # x_ref  : (1, H, Wp, CP) bf16  -- single HBM read; also the residual
        # w*_ref : (3, 3*CP, CP)  bf16  -- ky-major, column-taps fused along K,
        #                                  BatchNorm scale pre-folded in
        # b*_ref : (1, CP)        f32   -- folded BatchNorm bias
        # out_ref: (1, H, Wp, CP) bf16
        # src_ref: (HW, 3*CP)     bf16  -- K-fused shifted-source staging scratch
        # acc_ref: (HW, CP)       f32   -- accumulator scratch

        # Hoisted W-boundary masks: one (HW,1) iota, shared by both convs.
        col = lax.broadcasted_iota(jnp.int32, (HW, 1), 0) % Wp
        left_ok = col > 0                 # kx=0 tap reads a valid column x-1
        right_ok = col < (W_real - 1)     # kx=2 tap reads a valid column x+1

        def stage(src_f32):
            # Write {x-1, x, x+1} column-shifted bf16 copies of the conv source
            # into the staging scratch.  The column shift is a sublane roll
            # (XLU) plus the hoisted 0/1 mask (this is the conv's zero padding
            # along W, and also kills the padded columns when Wp > W_real).
            src_ref[:, CP:2 * CP] = src_f32.astype(jnp.bfloat16)
            src_ref[:, 0:CP] = jnp.where(
                left_ok, pltpu.roll(src_f32, 1, axis=0), 0.0
            ).astype(jnp.bfloat16)
            src_ref[:, 2 * CP:3 * CP] = jnp.where(
                right_ok, pltpu.roll(src_f32, HW - 1, axis=0), 0.0
            ).astype(jnp.bfloat16)

        def conv3x3(w_ref):
            # 3x3 "same" conv from the staged source into acc_ref (f32).
            # One K=3*CP MXU matmul per ky row; zero padding along H falls out
            # of the aligned partial-row accumulation (edge rows not updated).
            # Centre row taps (ky=1) touch every output row -> initialize acc.
            acc_ref[...] = jnp.dot(src_ref[...], w_ref[1],
                                   preferred_element_type=jnp.float32)
            # ky=0 taps read the row above: out rows 1..H-1 <- src rows 0..H-2.
            acc_ref[Wp:Wp + NR, :] += jnp.dot(
                src_ref[0:NR, :], w_ref[0], preferred_element_type=jnp.float32)
            # ky=2 taps read the row below: out rows 0..H-2 <- src rows 1..H-1.
            acc_ref[0:NR, :] += jnp.dot(
                src_ref[Wp:Wp + NR, :], w_ref[2],
                preferred_element_type=jnp.float32)

        # ---- conv1 (BN1 scale folded into w1) -> +bias -> ReLU ----
        stage(x_ref[...].reshape(HW, CP).astype(jnp.float32))
        conv3x3(w1_ref)
        h1 = jnp.maximum(acc_ref[...] + b1_ref[0, :], 0.0)

        # ---- conv2 (BN2 scale folded into w2) -> +bias -> +identity -> ReLU ----
        stage(h1)
        conv3x3(w2_ref)
        identity = x_ref[...].reshape(HW, CP).astype(jnp.float32)
        out = jnp.maximum(acc_ref[...] + b2_ref[0, :] + identity, 0.0)
        out_ref[...] = out.astype(jnp.bfloat16).reshape(1, H, Wp, CP)

    return kernel


def basic_block_nhwc(x_pad, w1t, b1, w2t, b2, *, w_real):
    """NHWC-native fused block.

    x_pad : (N, H, Wp, CP) bf16, channel- and width- zero-padded.
    w*t   : (3, 3*CP, CP) bf16, ky-major tap-fused weights, BN scale folded in.
    b*    : (1, CP) f32 folded BN bias.
    Returns (N, H, Wp, CP) bf16.
    """
    N, H, Wp, CP = x_pad.shape
    assert H >= 2 and Wp % SUB == 0 and CP % LANE == 0
    HW = H * Wp
    kernel = _make_basic_block_kernel(H, Wp, w_real, CP)

    flops = 2 * 2 * N * HW * 9 * CP * CP                 # 2 convs, 2 flop/MAC
    bytes_accessed = (x_pad.size * 2 + (w1t.size + w2t.size) * 2
                      + (b1.size + b2.size) * 4 + N * HW * CP * 2)

    return pl.pallas_call(
        kernel,
        out_shape=jax.ShapeDtypeStruct((N, H, Wp, CP), jnp.bfloat16),
        grid_spec=pltpu.PrefetchScalarGridSpec(
            num_scalar_prefetch=0,
            grid=(N,),
            in_specs=[
                pl.BlockSpec((1, H, Wp, CP), lambda n: (n, 0, 0, 0)),   # x
                pl.BlockSpec((3, 3 * CP, CP), lambda n: (0, 0, 0)),     # w1
                pl.BlockSpec((1, CP), lambda n: (0, 0)),                # b1
                pl.BlockSpec((3, 3 * CP, CP), lambda n: (0, 0, 0)),     # w2
                pl.BlockSpec((1, CP), lambda n: (0, 0)),                # b2
            ],
            out_specs=pl.BlockSpec((1, H, Wp, CP), lambda n: (n, 0, 0, 0)),
            scratch_shapes=[pltpu.VMEM((HW, 3 * CP), jnp.bfloat16),
                            pltpu.VMEM((HW, CP), jnp.float32)],
        ),
        compiler_params=pltpu.CompilerParams(
            dimension_semantics=("parallel",),
            vmem_limit_bytes=64 * 1024 * 1024),
        cost_estimate=pl.CostEstimate(flops=flops, transcendentals=0,
                                      bytes_accessed=bytes_accessed),
    )(x_pad, w1t, b1, w2t, b2)


def basic_block_forward(x_nchw, w1, g1, be1, m1, v1, w2, g2, be2, m2, v2,
                        eps=1e-5):
    """NCHW convenience wrapper (layout glue + BN folding) around the kernel."""
    N, C, H, W = x_nchw.shape
    Cout = w1.shape[0]
    assert Cout == C, "stride=1 / downsample=None requires inplanes == planes"
    assert H >= 2
    CP = -(-C // LANE) * LANE       # lane-dense channel padding
    Wp = -(-W // SUB) * SUB         # sublane-aligned width padding

    # --- glue (plain JAX): layout, zero padding, bf16 casts, BN folding ---
    x = jnp.transpose(x_nchw, (0, 2, 3, 1))                            # NHWC
    x = jnp.pad(x, ((0, 0), (0, 0), (0, Wp - W), (0, CP - C)))
    x = x.astype(jnp.bfloat16)

    def fold_bn(g, b, m, v):
        s = g / jnp.sqrt(v + eps)                                      # (C,)
        bias = jnp.pad(b - m * s, (0, CP - C)).reshape(1, CP)
        return s, bias.astype(jnp.float32)

    def prep_w(w, s):
        # OIHW -> (ky, 3*CP, CP) with BN scale folded into the Cout columns.
        o, i = w.shape[0], w.shape[1]
        ws = w * s.reshape(-1, 1, 1, 1)                                # fold BN
        wt = jnp.transpose(ws, (2, 3, 1, 0))                           # ky,kx,Ci,Co
        wt = jnp.pad(wt, ((0, 0), (0, 0), (0, CP - i), (0, CP - o)))
        return wt.reshape(3, 3 * CP, CP).astype(jnp.bfloat16)

    s1, b1 = fold_bn(g1, be1, m1, v1)
    s2, b2 = fold_bn(g2, be2, m2, v2)
    w1t, w2t = prep_w(w1, s1), prep_w(w2, s2)

    out = basic_block_nhwc(x, w1t, b1, w2t, b2, w_real=W)
    out = out[:, :, :W, :C].astype(jnp.float32)
    return jnp.transpose(out, (0, 3, 1, 2))                            # NCHW


# ----------------------------- references -----------------------------------
def _bn(o, g, b, m, v, eps):
    sh = (1, -1, 1, 1)
    return (o - m.reshape(sh)) / jnp.sqrt(v.reshape(sh) + eps) \
           * g.reshape(sh) + b.reshape(sh)


def reference_forward_f32(x, w1, g1, be1, m1, v1, w2, g2, be2, m2, v2, eps=1e-5):
    """Pure f32 XLA reference matching the PyTorch forward in eval mode."""
    dn = lax.conv_dimension_numbers(x.shape, w1.shape, ('NCHW', 'OIHW', 'NCHW'))
    out = lax.conv_general_dilated(x, w1, (1, 1), ((1, 1), (1, 1)),
                                   dimension_numbers=dn)
    out = jnp.maximum(_bn(out, g1, be1, m1, v1, eps), 0.0)
    out = lax.conv_general_dilated(out, w2, (1, 1), ((1, 1), (1, 1)),
                                   dimension_numbers=dn)
    out = _bn(out, g2, be2, m2, v2, eps)
    return jnp.maximum(out + x, 0.0)


def reference_forward_kernel_math(x, w1, g1, be1, m1, v1, w2, g2, be2, m2, v2,
                                  eps=1e-5):
    """Same math as the kernel: BN scales folded into bf16 weights, bf16 conv
    inputs, f32 accumulation, bf16-quantized residual and output."""
    dn = lax.conv_dimension_numbers(x.shape, w1.shape, ('NCHW', 'OIHW', 'NCHW'))

    def fold(g, b, m, v):
        s = g / jnp.sqrt(v + eps)
        return s, (b - m * s).reshape(1, -1, 1, 1)

    s1, bb1 = fold(g1, be1, m1, v1)
    s2, bb2 = fold(g2, be2, m2, v2)
    w1s = (w1 * s1.reshape(-1, 1, 1, 1)).astype(jnp.bfloat16)
    w2s = (w2 * s2.reshape(-1, 1, 1, 1)).astype(jnp.bfloat16)

    def conv(a, w):
        return lax.conv_general_dilated(a, w, (1, 1), ((1, 1), (1, 1)),
                                        dimension_numbers=dn,
                                        preferred_element_type=jnp.float32)

    xb = x.astype(jnp.bfloat16)
    h = jnp.maximum(conv(xb, w1s) + bb1, 0.0)
    out = conv(h.astype(jnp.bfloat16), w2s) + bb2 + xb.astype(jnp.float32)
    out = jnp.maximum(out, 0.0)
    return out.astype(jnp.bfloat16).astype(jnp.float32)


if __name__ == "__main__":
    N, C, H, W = 2, 8, 16, 16          # inplanes == planes == 8, stride=1

    key = jax.random.PRNGKey(0)
    ks = jax.random.split(key, 11)
    x = jax.random.normal(ks[0], (N, C, H, W), jnp.float32)

    w1 = jax.random.normal(ks[1], (C, C, 3, 3), jnp.float32) * 0.1
    w2 = jax.random.normal(ks[2], (C, C, 3, 3), jnp.float32) * 0.1
    g1 = 1.0 + 0.1 * jax.random.normal(ks[3], (C,), jnp.float32)
    be1 = 0.05 * jax.random.normal(ks[4], (C,), jnp.float32)
    m1 = 0.1 * jax.random.normal(ks[5], (C,), jnp.float32)
    v1 = jax.random.uniform(ks[6], (C,), jnp.float32, 0.5, 1.5)
    g2 = 1.0 + 0.1 * jax.random.normal(ks[7], (C,), jnp.float32)
    be2 = 0.05 * jax.random.normal(ks[8], (C,), jnp.float32)
    m2 = 0.1 * jax.random.normal(ks[9], (C,), jnp.float32)
    v2 = jax.random.uniform(ks[10], (C,), jnp.float32, 0.5, 1.5)

    out = basic_block_forward(x, w1, g1, be1, m1, v1, w2, g2, be2, m2, v2)
    out = jax.block_until_ready(out)

    ref_kernel_math = jax.block_until_ready(
        reference_forward_kernel_math(x, w1, g1, be1, m1, v1,
                                      w2, g2, be2, m2, v2))
    ref_f32 = jax.block_until_ready(
        reference_forward_f32(x, w1, g1, be1, m1, v1, w2, g2, be2, m2, v2))

    err_km = float(jnp.max(jnp.abs(out - ref_kernel_math)))
    err_f32 = float(jnp.max(jnp.abs(out - ref_f32)))
    if not np.isfinite(err_km) or err_km > 2e-2:
        raise AssertionError(
            f"mismatch vs kernel-math reference, max abs err = {err_km}")
    if not np.isfinite(err_f32) or err_f32 > 1.5e-1:
        raise AssertionError(
            f"mismatch vs f32 reference, max abs err = {err_f32}")

    print("KERNEL_OK")
</pallas_src>

<mosaic_0001>
module attributes {stable_mosaic.version = 11 : i64} {
  func.func @kernel(%arg0: i32, %arg1: memref<1x16x16x128xbf16, #tpu.memory_space<vmem>>, %arg2: memref<3x384x128xbf16, #tpu.memory_space<vmem>>, %arg3: memref<1x128xf32, #tpu.memory_space<vmem>>, %arg4: memref<3x384x128xbf16, #tpu.memory_space<vmem>>, %arg5: memref<1x128xf32, #tpu.memory_space<vmem>>, %arg6: memref<1x16x16x128xbf16, #tpu.memory_space<vmem>>, %arg7: memref<256x384xbf16, #tpu.memory_space<vmem>>, %arg8: memref<256x128xf32, #tpu.memory_space<vmem>>) attributes {dimension_semantics = [#tpu.dimension_semantics<parallel>], iteration_bounds = array<i64: 2>, scalar_prefetch = 0 : i64, scratch_operands = 2 : i64, tpu.core_type = #tpu.core_type<tc>, window_params = [{transform_indices = @transform_0, window_bounds = array<i64: 1, 16, 16, 128>}, {pipeline_mode = #tpu.pipeline_mode<synchronous>, transform_indices = @transform_1, window_bounds = array<i64: 3, 384, 128>}, {pipeline_mode = #tpu.pipeline_mode<synchronous>, transform_indices = @transform_2, window_bounds = array<i64: 1, 128>}, {pipeline_mode = #tpu.pipeline_mode<synchronous>, transform_indices = @transform_3, window_bounds = array<i64: 3, 384, 128>}, {pipeline_mode = #tpu.pipeline_mode<synchronous>, transform_indices = @transform_4, window_bounds = array<i64: 1, 128>}, {transform_indices = @transform_5, window_bounds = array<i64: 1, 16, 16, 128>}]} {
    %0 = tpu.iota {dimensions = array<i32: 0>} : vector<256x1xi32>
    %c16_i32 = arith.constant 16 : i32
    %c0_i32 = arith.constant 0 : i32
    %1 = arith.cmpi eq, %c16_i32, %c0_i32 : i32
    %c1_i32 = arith.constant 1 : i32
    %2 = arith.select %1, %c1_i32, %c16_i32 : i32
    %3 = vector.broadcast %2 : i32 to vector<256x1xi32>
    %4 = arith.remsi %0, %3 : vector<256x1xi32>
    %c0_i32_0 = arith.constant 0 : i32
    %5 = vector.broadcast %c0_i32_0 : i32 to vector<256x1xi32>
    %6 = arith.cmpi ne, %4, %5 : vector<256x1xi32>
    %c0_i32_1 = arith.constant 0 : i32
    %7 = vector.broadcast %c0_i32_1 : i32 to vector<256x1xi32>
    %8 = arith.cmpi slt, %4, %7 : vector<256x1xi32>
    %c0_i32_2 = arith.constant 0 : i32
    %9 = arith.cmpi slt, %2, %c0_i32_2 : i32
    %10 = vector.broadcast %9 : i1 to vector<256x1xi1>
    %11 = vector.broadcast %10 : vector<256x1xi1> to vector<256x1xi1>
    %12 = arith.xori %8, %11 : vector<256x1xi1>
    %13 = arith.andi %12, %6 : vector<256x1xi1>
    %14 = vector.broadcast %2 : i32 to vector<256x1xi32>
    %15 = arith.addi %4, %14 : vector<256x1xi32>
    %16 = arith.select %13, %15, %4 : vector<256x1xi1>, vector<256x1xi32>
    %c0_i32_3 = arith.constant 0 : i32
    %17 = vector.broadcast %c0_i32_3 : i32 to vector<256x1xi32>
    %18 = arith.cmpi sgt, %16, %17 : vector<256x1xi32>
    %c15_i32 = arith.constant 15 : i32
    %19 = vector.broadcast %c15_i32 : i32 to vector<256x1xi32>
    %20 = arith.cmpi slt, %16, %19 : vector<256x1xi32>
    %c0 = arith.constant 0 : index
    %c0_4 = arith.constant 0 : index
    %c0_5 = arith.constant 0 : index
    %c0_6 = arith.constant 0 : index
    %21 = vector.load %arg1[%c0, %c0_4, %c0_5, %c0_6] : memref<1x16x16x128xbf16, #tpu.memory_space<vmem>>, vector<1x16x16x128xbf16>
    %22 = vector.shape_cast %21 : vector<1x16x16x128xbf16> to vector<256x128xbf16>
    %23 = arith.extf %22 : vector<256x128xbf16> to vector<256x128xf32>
    %24 = arith.truncf %23 : vector<256x128xf32> to vector<256x128xbf16>
    %c0_7 = arith.constant 0 : index
    %c128 = arith.constant 128 : index
    %25 = vector.load %arg7[%c0_7, %c128] : memref<256x384xbf16, #tpu.memory_space<vmem>>, vector<256x128xbf16>
    tpu.vector_store %arg7[%c0_7, %c128], %24 {strides = array<i32>} : memref<256x384xbf16, #tpu.memory_space<vmem>>, vector<256x128xbf16>,
    %c1_i32_8 = arith.constant 1 : i32
    %26 = tpu.dynamic_rotate %23 by %c1_i32_8 dim 0 : vector<256x128xf32>, i32 -> vector<256x128xf32>
    %cst = arith.constant 0.000000e+00 : f32
    %27 = vector.shape_cast %18 : vector<256x1xi1> to vector<256x1xi1>
    %28 = vector.broadcast %27 : vector<256x1xi1> to vector<256x128xi1>
    %29 = vector.broadcast %cst : f32 to vector<256x128xf32>
    %30 = arith.select %28, %26, %29 : vector<256x128xi1>, vector<256x128xf32>
    %31 = arith.truncf %30 : vector<256x128xf32> to vector<256x128xbf16>
    %c0_9 = arith.constant 0 : index
    %c0_10 = arith.constant 0 : index
    %32 = vector.load %arg7[%c0_9, %c0_10] : memref<256x384xbf16, #tpu.memory_space<vmem>>, vector<256x128xbf16>
    tpu.vector_store %arg7[%c0_9, %c0_10], %31 {strides = array<i32>} : memref<256x384xbf16, #tpu.memory_space<vmem>>, vector<256x128xbf16>,
    %c255_i32 = arith.constant 255 : i32
    %33 = tpu.dynamic_rotate %23 by %c255_i32 dim 0 : vector<256x128xf32>, i32 -> vector<256x128xf32>
    %cst_11 = arith.constant 0.000000e+00 : f32
    %34 = vector.shape_cast %20 : vector<256x1xi1> to vector<256x1xi1>
    %35 = vector.broadcast %34 : vector<256x1xi1> to vector<256x128xi1>
    %36 = vector.broadcast %cst_11 : f32 to vector<256x128xf32>
    %37 = arith.select %35, %33, %36 : vector<256x128xi1>, vector<256x128xf32>
    %38 = arith.truncf %37 : vector<256x128xf32> to vector<256x128xbf16>
    %c0_12 = arith.constant 0 : index
    %c256 = arith.constant 256 : index
    %39 = vector.load %arg7[%c0_12, %c256] : memref<256x384xbf16, #tpu.memory_space<vmem>>, vector<256x128xbf16>
    tpu.vector_store %arg7[%c0_12, %c256], %38 {strides = array<i32>} : memref<256x384xbf16, #tpu.memory_space<vmem>>, vector<256x128xbf16>,
    %c0_13 = arith.constant 0 : index
    %c0_14 = arith.constant 0 : index
    %40 = vector.load %arg7[%c0_13, %c0_14] : memref<256x384xbf16, #tpu.memory_space<vmem>>, vector<256x384xbf16>
    %c1 = arith.constant 1 : index
    %c0_15 = arith.constant 0 : index
    %c0_16 = arith.constant 0 : index
    %41 = vector.load %arg2[%c1, %c0_15, %c0_16] : memref<3x384x128xbf16, #tpu.memory_space<vmem>>, vector<1x384x128xbf16>
    %42 = vector.shape_cast %41 : vector<1x384x128xbf16> to vector<384x128xbf16>
    %cst_17 = arith.constant dense<0.000000e+00> : vector<256x128xf32>
    %43 = tpu.matmul %40, %42, %cst_17 {dimension_numbers = #tpu.dot_dimension_numbers<[1], [0], [0], [1], [0, 0, 1, 1], [], []>} : vector<256x384xbf16>, vector<384x128xbf16>, vector<256x128xf32> -> vector<256x128xf32>
    %c0_18 = arith.constant 0 : index
    %c0_19 = arith.constant 0 : index
    %44 = vector.load %arg8[%c0_18, %c0_19] : memref<256x128xf32, #tpu.memory_space<vmem>>, vector<256x128xf32>
    tpu.vector_store %arg8[%c0_18, %c0_19], %43 {strides = array<i32>} : memref<256x128xf32, #tpu.memory_space<vmem>>, vector<256x128xf32>,
    %c16 = arith.constant 16 : index
    %c0_20 = arith.constant 0 : index
    %45 = vector.load %arg8[%c16, %c0_20] : memref<256x128xf32, #tpu.memory_space<vmem>>, vector<240x128xf32>
    %c0_21 = arith.constant 0 : index
    %c0_22 = arith.constant 0 : index
    %46 = vector.load %arg7[%c0_21, %c0_22] : memref<256x384xbf16, #tpu.memory_space<vmem>>, vector<240x384xbf16>
    %c0_23 = arith.constant 0 : index
    %c0_24 = arith.constant 0 : index
    %c0_25 = arith.constant 0 : index
    %47 = vector.load %arg2[%c0_23, %c0_24, %c0_25] : memref<3x384x128xbf16, #tpu.memory_space<vmem>>, vector<1x384x128xbf16>
    %48 = vector.shape_cast %47 : vector<1x384x128xbf16> to vector<384x128xbf16>
    %cst_26 = arith.constant dense<0.000000e+00> : vector<240x128xf32>
    %49 = tpu.matmul %46, %48, %cst_26 {dimension_numbers = #tpu.dot_dimension_numbers<[1], [0], [0], [1], [0, 0, 1, 1], [], []>} : vector<240x384xbf16>, vector<384x128xbf16>, vector<240x128xf32> -> vector<240x128xf32>
    %50 = arith.addf %45, %49 : vector<240x128xf32>
    %c16_27 = arith.constant 16 : index
    %c0_28 = arith.constant 0 : index
    %51 = vector.load %arg8[%c16_27, %c0_28] : memref<256x128xf32, #tpu.memory_space<vmem>>, vector<240x128xf32>
    tpu.vector_store %arg8[%c16_27, %c0_28], %50 {strides = array<i32>} : memref<256x128xf32, #tpu.memory_space<vmem>>, vector<240x128xf32>,
    %c0_29 = arith.constant 0 : index
    %c0_30 = arith.constant 0 : index
    %52 = vector.load %arg8[%c0_29, %c0_30] : memref<256x128xf32, #tpu.memory_space<vmem>>, vector<240x128xf32>
    %c16_31 = arith.constant 16 : index
    %c0_32 = arith.constant 0 : index
    %53 = vector.load %arg7[%c16_31, %c0_32] : memref<256x384xbf16, #tpu.memory_space<vmem>>, vector<240x384xbf16>
    %c2 = arith.constant 2 : index
    %c0_33 = arith.constant 0 : index
    %c0_34 = arith.constant 0 : index
    %54 = vector.load %arg2[%c2, %c0_33, %c0_34] : memref<3x384x128xbf16, #tpu.memory_space<vmem>>, vector<1x384x128xbf16>
    %55 = vector.shape_cast %54 : vector<1x384x128xbf16> to vector<384x128xbf16>
    %cst_35 = arith.constant dense<0.000000e+00> : vector<240x128xf32>
    %56 = tpu.matmul %53, %55, %cst_35 {dimension_numbers = #tpu.dot_dimension_numbers<[1], [0], [0], [1], [0, 0, 1, 1], [], []>} : vector<240x384xbf16>, vector<384x128xbf16>, vector<240x128xf32> -> vector<240x128xf32>
    %57 = arith.addf %52, %56 : vector<240x128xf32>
    %c0_36 = arith.constant 0 : index
    %c0_37 = arith.constant 0 : index
    %58 = vector.load %arg8[%c0_36, %c0_37] : memref<256x128xf32, #tpu.memory_space<vmem>>, vector<240x128xf32>
    tpu.vector_store %arg8[%c0_36, %c0_37], %57 {strides = array<i32>} : memref<256x128xf32, #tpu.memory_space<vmem>>, vector<240x128xf32>,
    %c0_38 = arith.constant 0 : index
    %c0_39 = arith.constant 0 : index
    %59 = vector.load %arg8[%c0_38, %c0_39] : memref<256x128xf32, #tpu.memory_space<vmem>>, vector<256x128xf32>
    %c0_40 = arith.constant 0 : index
    %c0_41 = arith.constant 0 : index
    %60 = vector.load %arg3[%c0_40, %c0_41] : memref<1x128xf32, #tpu.memory_space<vmem>>, vector<1x128xf32>
    %61 = vector.shape_cast %60 : vector<1x128xf32> to vector<128xf32>
    %62 = vector.shape_cast %61 : vector<128xf32> to vector<1x128xf32>
    %63 = vector.broadcast %62 : vector<1x128xf32> to vector<256x128xf32>
    %64 = arith.addf %59, %63 : vector<256x128xf32>
    %cst_42 = arith.constant 0.000000e+00 : f32
    %65 = vector.broadcast %cst_42 : f32 to vector<256x128xf32>
    %66 = arith.maximumf %64, %65 : vector<256x128xf32>
    %67 = arith.truncf %66 : vector<256x128xf32> to vector<256x128xbf16>
    %c0_43 = arith.constant 0 : index
    %c128_44 = arith.constant 128 : index
    %68 = vector.load %arg7[%c0_43, %c128_44] : memref<256x384xbf16, #tpu.memory_space<vmem>>, vector<256x128xbf16>
    tpu.vector_store %arg7[%c0_43, %c128_44], %67 {strides = array<i32>} : memref<256x384xbf16, #tpu.memory_space<vmem>>, vector<256x128xbf16>,
    %c1_i32_45 = arith.constant 1 : i32
    %69 = tpu.dynamic_rotate %66 by %c1_i32_45 dim 0 : vector<256x128xf32>, i32 -> vector<256x128xf32>
    %cst_46 = arith.constant 0.000000e+00 : f32
    %70 = vector.shape_cast %18 : vector<256x1xi1> to vector<256x1xi1>
    %71 = vector.broadcast %70 : vector<256x1xi1> to vector<256x128xi1>
    %72 = vector.broadcast %cst_46 : f32 to vector<256x128xf32>
    %73 = arith.select %71, %69, %72 : vector<256x128xi1>, vector<256x128xf32>
    %74 = arith.truncf %73 : vector<256x128xf32> to vector<256x128xbf16>
    %c0_47 = arith.constant 0 : index
    %c0_48 = arith.constant 0 : index
    %75 = vector.load %arg7[%c0_47, %c0_48] : memref<256x384xbf16, #tpu.memory_space<vmem>>, vector<256x128xbf16>
    tpu.vector_store %arg7[%c0_47, %c0_48], %74 {strides = array<i32>} : memref<256x384xbf16, #tpu.memory_space<vmem>>, vector<256x128xbf16>,
    %c255_i32_49 = arith.constant 255 : i32
    %76 = tpu.dynamic_rotate %66 by %c255_i32_49 dim 0 : vector<256x128xf32>, i32 -> vector<256x128xf32>
    %cst_50 = arith.constant 0.000000e+00 : f32
    %77 = vector.shape_cast %20 : vector<256x1xi1> to vector<256x1xi1>
    %78 = vector.broadcast %77 : vector<256x1xi1> to vector<256x128xi1>
    %79 = vector.broadcast %cst_50 : f32 to vector<256x128xf32>
    %80 = arith.select %78, %76, %79 : vector<256x128xi1>, vector<256x128xf32>
    %81 = arith.truncf %80 : vector<256x128xf32> to vector<256x128xbf16>
    %c0_51 = arith.constant 0 : index
    %c256_52 = arith.constant 256 : index
    %82 = vector.load %arg7[%c0_51, %c256_52] : memref<256x384xbf16, #tpu.memory_space<vmem>>, vector<256x128xbf16>
    tpu.vector_store %arg7[%c0_51, %c256_52], %81 {strides = array<i32>} : memref<256x384xbf16, #tpu.memory_space<vmem>>, vector<256x128xbf16>,
    %c0_53 = arith.constant 0 : index
    %c0_54 = arith.constant 0 : index
    %83 = vector.load %arg7[%c0_53, %c0_54] : memref<256x384xbf16, #tpu.memory_space<vmem>>, vector<256x384xbf16>
    %c1_55 = arith.constant 1 : index
    %c0_56 = arith.constant 0 : index
    %c0_57 = arith.constant 0 : index
    %84 = vector.load %arg4[%c1_55, %c0_56, %c0_57] : memref<3x384x128xbf16, #tpu.memory_space<vmem>>, vector<1x384x128xbf16>
    %85 = vector.shape_cast %84 : vector<1x384x128xbf16> to vector<384x128xbf16>
    %cst_58 = arith.constant dense<0.000000e+00> : vector<256x128xf32>
    %86 = tpu.matmul %83, %85, %cst_58 {dimension_numbers = #tpu.dot_dimension_numbers<[1], [0], [0], [1], [0, 0, 1, 1], [], []>} : vector<256x384xbf16>, vector<384x128xbf16>, vector<256x128xf32> -> vector<256x128xf32>
    %c0_59 = arith.constant 0 : index
    %c0_60 = arith.constant 0 : index
    %87 = vector.load %arg8[%c0_59, %c0_60] : memref<256x128xf32, #tpu.memory_space<vmem>>, vector<256x128xf32>
    tpu.vector_store %arg8[%c0_59, %c0_60], %86 {strides = array<i32>} : memref<256x128xf32, #tpu.memory_space<vmem>>, vector<256x128xf32>,
    %c16_61 = arith.constant 16 : index
    %c0_62 = arith.constant 0 : index
    %88 = vector.load %arg8[%c16_61, %c0_62] : memref<256x128xf32, #tpu.memory_space<vmem>>, vector<240x128xf32>
    %c0_63 = arith.constant 0 : index
    %c0_64 = arith.constant 0 : index
    %89 = vector.load %arg7[%c0_63, %c0_64] : memref<256x384xbf16, #tpu.memory_space<vmem>>, vector<240x384xbf16>
    %c0_65 = arith.constant 0 : index
    %c0_66 = arith.constant 0 : index
    %c0_67 = arith.constant 0 : index
    %90 = vector.load %arg4[%c0_65, %c0_66, %c0_67] : memref<3x384x128xbf16, #tpu.memory_space<vmem>>, vector<1x384x128xbf16>
    %91 = vector.shape_cast %90 : vector<1x384x128xbf16> to vector<384x128xbf16>
    %cst_68 = arith.constant dense<0.000000e+00> : vector<240x128xf32>
    %92 = tpu.matmul %89, %91, %cst_68 {dimension_numbers = #tpu.dot_dimension_numbers<[1], [0], [0], [1], [0, 0, 1, 1], [], []>} : vector<240x384xbf16>, vector<384x128xbf16>, vector<240x128xf32> -> vector<240x128xf32>
    %93 = arith.addf %88, %92 : vector<240x128xf32>
    %c16_69 = arith.constant 16 : index
    %c0_70 = arith.constant 0 : index
    %94 = vector.load %arg8[%c16_69, %c0_70] : memref<256x128xf32, #tpu.memory_space<vmem>>, vector<240x128xf32>
    tpu.vector_store %arg8[%c16_69, %c0_70], %93 {strides = array<i32>} : memref<256x128xf32, #tpu.memory_space<vmem>>, vector<240x128xf32>,
    %c0_71 = arith.constant 0 : index
    %c0_72 = arith.constant 0 : index
    %95 = vector.load %arg8[%c0_71, %c0_72] : memref<256x128xf32, #tpu.memory_space<vmem>>, vector<240x128xf32>
    %c16_73 = arith.constant 16 : index
    %c0_74 = arith.constant 0 : index
    %96 = vector.load %arg7[%c16_73, %c0_74] : memref<256x384xbf16, #tpu.memory_space<vmem>>, vector<240x384xbf16>
    %c2_75 = arith.constant 2 : index
    %c0_76 = arith.constant 0 : index
    %c0_77 = arith.constant 0 : index
    %97 = vector.load %arg4[%c2_75, %c0_76, %c0_77] : memref<3x384x128xbf16, #tpu.memory_space<vmem>>, vector<1x384x128xbf16>
    %98 = vector.shape_cast %97 : vector<1x384x128xbf16> to vector<384x128xbf16>
    %cst_78 = arith.constant dense<0.000000e+00> : vector<240x128xf32>
    %99 = tpu.matmul %96, %98, %cst_78 {dimension_numbers = #tpu.dot_dimension_numbers<[1], [0], [0], [1], [0, 0, 1, 1], [], []>} : vector<240x384xbf16>, vector<384x128xbf16>, vector<240x128xf32> -> vector<240x128xf32>
    %100 = arith.addf %95, %99 : vector<240x128xf32>
    %c0_79 = arith.constant 0 : index
    %c0_80 = arith.constant 0 : index
    %101 = vector.load %arg8[%c0_79, %c0_80] : memref<256x128xf32, #tpu.memory_space<vmem>>, vector<240x128xf32>
    tpu.vector_store %arg8[%c0_79, %c0_80], %100 {strides = array<i32>} : memref<256x128xf32, #tpu.memory_space<vmem>>, vector<240x128xf32>,
    %c0_81 = arith.constant 0 : index
    %c0_82 = arith.constant 0 : index
    %c0_83 = arith.constant 0 : index
    %c0_84 = arith.constant 0 : index
    %102 = vector.load %arg1[%c0_81, %c0_82, %c0_83, %c0_84] : memref<1x16x16x128xbf16, #tpu.memory_space<vmem>>, vector<1x16x16x128xbf16>
    %103 = vector.shape_cast %102 : vector<1x16x16x128xbf16> to vector<256x128xbf16>
    %104 = arith.extf %103 : vector<256x128xbf16> to vector<256x128xf32>
    %c0_85 = arith.constant 0 : index
    %c0_86 = arith.constant 0 : index
    %105 = vector.load %arg8[%c0_85, %c0_86] : memref<256x128xf32, #tpu.memory_space<vmem>>, vector<256x128xf32>
    %c0_87 = arith.constant 0 : index
    %c0_88 = arith.constant 0 : index
    %106 = vector.load %arg5[%c0_87, %c0_88] : memref<1x128xf32, #tpu.memory_space<vmem>>, vector<1x128xf32>
    %107 = vector.shape_cast %106 : vector<1x128xf32> to vector<128xf32>
    %108 = vector.shape_cast %107 : vector<128xf32> to vector<1x128xf32>
    %109 = vector.broadcast %108 : vector<1x128xf32> to vector<256x128xf32>
    %110 = arith.addf %105, %109 : vector<256x128xf32>
    %111 = arith.addf %110, %104 : vector<256x128xf32>
    %cst_89 = arith.constant 0.000000e+00 : f32
    %112 = vector.broadcast %cst_89 : f32 to vector<256x128xf32>
    %113 = arith.maximumf %111, %112 : vector<256x128xf32>
    %114 = arith.truncf %113 : vector<256x128xf32> to vector<256x128xbf16>
    %115 = vector.shape_cast %114 : vector<256x128xbf16> to vector<1x16x16x128xbf16>
    %c0_90 = arith.constant 0 : index
    %c0_91 = arith.constant 0 : index
    %c0_92 = arith.constant 0 : index
    %c0_93 = arith.constant 0 : index
    %116 = vector.load %arg6[%c0_90, %c0_91, %c0_92, %c0_93] : memref<1x16x16x128xbf16, #tpu.memory_space<vmem>>, vector<1x16x16x128xbf16>
    tpu.vector_store %arg6[%c0_90, %c0_91, %c0_92, %c0_93], %115 {strides = array<i32>} : memref<1x16x16x128xbf16, #tpu.memory_space<vmem>>, vector<1x16x16x128xbf16>,
    return
  }
  func.func @transform_0(%arg0: i32) -> (i32, i32, i32, i32) {
    %c0_i32 = arith.constant 0 : i32
    %c0_i32_0 = arith.constant 0 : i32
    %c0_i32_1 = arith.constant 0 : i32
    %c0_i32_2 = arith.constant 0 : i32
    return %arg0, %c0_i32, %c0_i32_0, %c0_i32_1 : i32, i32, i32, i32
  }
  func.func @transform_1(%arg0: i32) -> (i32, i32, i32) {
    %c0_i32 = arith.constant 0 : i32
    %c0_i32_0 = arith.constant 0 : i32
    %c0_i32_1 = arith.constant 0 : i32
    %c0_i32_2 = arith.constant 0 : i32
    return %c0_i32, %c0_i32_0, %c0_i32_1 : i32, i32, i32
  }
  func.func @transform_2(%arg0: i32) -> (i32, i32) {
    %c0_i32 = arith.constant 0 : i32
    %c0_i32_0 = arith.constant 0 : i32
    %c0_i32_1 = arith.constant 0 : i32
    return %c0_i32, %c0_i32_0 : i32, i32
  }
  func.func @transform_3(%arg0: i32) -> (i32, i32, i32) {
    %c0_i32 = arith.constant 0 : i32
    %c0_i32_0 = arith.constant 0 : i32
    %c0_i32_1 = arith.constant 0 : i32
    %c0_i32_2 = arith.constant 0 : i32
    return %c0_i32, %c0_i32_0, %c0_i32_1 : i32, i32, i32
  }
  func.func @transform_4(%arg0: i32) -> (i32, i32) {
    %c0_i32 = arith.constant 0 : i32
    %c0_i32_0 = arith.constant 0 : i32
    %c0_i32_1 = arith.constant 0 : i32
    return %c0_i32, %c0_i32_0 : i32, i32
  }
  func.func @transform_5(%arg0: i32) -> (i32, i32, i32, i32) {
    %c0_i32 = arith.constant 0 : i32
    %c0_i32_0 = arith.constant 0 : i32
    %c0_i32_1 = arith.constant 0 : i32
    %c0_i32_2 = arith.constant 0 : i32
    return %arg0, %c0_i32, %c0_i32_0, %c0_i32_1 : i32, i32, i32, i32
  }
}

</mosaic_0001>

<llo_original>
// kernel: tpu_custom_call.1
$region0: #{tpu_custom_call.1}
  #allocation0 [shape = 'u32[]', space=smem, size = 0x4, offset = 0x4, fixed_abs, tag = 'smem constant byte address 0x4 - core index']
  #allocation1 [shape = 'u32[144,128]{1,0:T(1,128)}', space=vmem, size = 0x12000, scoped, tag = 'internal scratch']
  #allocation2 [shape = 'bf16[256,384]{1,0:T(16,128)(2,1)}', space=vmem, size = 0x30000, scoped, tag = 'scratch operand']
  #allocation3 [shape = 'f32[256,128]{1,0:T(8,128)}', space=vmem, size = 0x20000, scoped, tag = 'scratch operand']
  %s0 = inlined_call_operand.hbm [shape: bf16[2,16,16,128], index: 0, kind: input, shape index: {}]
  %s1 = inlined_call_operand.hbm [shape: bf16[3,384,128], index: 1, kind: input, shape index: {}]
  %s2 = inlined_call_operand.hbm [shape: f32[1,128], index: 2, kind: input, shape index: {}]
  %s3 = inlined_call_operand.hbm [shape: bf16[3,384,128], index: 3, kind: input, shape index: {}]
  %s4 = inlined_call_operand.hbm [shape: f32[1,128], index: 4, kind: input, shape index: {}]
  %s5 = inlined_call_operand.hbm [shape: bf16[2,16,16,128], index: 5, kind: output, shape index: {}]
  %s6 = sld [smem:[#allocation0]]
  $region73: #{tpu_custom_call.1} parent=0
    _
  %s8 = ssub.s32 1, %s6
  %s9 = scalar_select 0, %s8, %s6
  $region1: #{tpu_custom_call.1} parent=0
    #allocation4 [shape = 'u8[131072]{0}', space=vmem, size = 0x20000, scoped, tag = 'input window, operand 0']
    #allocation5 [shape = 's32[2]{0}', space=sflag, size = 0x8, scoped, tag = 'scoped memory for tpu_custom_call.1']
    #allocation6 [shape = 's32[2]{0}', space=sflag, size = 0x8, scoped, tag = 'scoped memory for tpu_custom_call.1']
    #allocation7 [shape = 'u8[294912]{0}', space=vmem, size = 0x48000, scoped, tag = 'input window, operand 1, single buffered']
    #allocation8 [shape = 's32[1]{0}', space=sflag, size = 0x4, scoped, tag = 'scoped memory for tpu_custom_call.1']
    #allocation9 [shape = 'u8[512]{0}', space=vmem, size = 0x400, scoped, tag = 'input window, operand 2, single buffered']
    #allocation10 [shape = 'u8[294912]{0}', space=vmem, size = 0x48000, scoped, tag = 'input window, operand 3, single buffered']
    #allocation11 [shape = 's32[1]{0}', space=sflag, size = 0x4, scoped, tag = 'scoped memory for tpu_custom_call.1']
    #allocation12 [shape = 'u8[512]{0}', space=vmem, size = 0x400, scoped, tag = 'input window, operand 4, single buffered']
    #allocation13 [shape = 'u8[131072]{0}', space=vmem, size = 0x20000, scoped, tag = 'output window, operand 0']
    %10 = vsyncpa [#allocation5], 0
    %s11 = scalar_lea.sflag [#allocation5], 1
    %12 = vsyncpa %s11, 0
    %13 = vsyncpa [#allocation8], 0
    %14 = vsyncpa [#allocation11], 0
    %15 = vsyncpa [#allocation6], 0
    %s16 = scalar_lea.sflag [#allocation6], 1
    %17 = vsyncpa %s16, 0
    loop: start=0, step=1, limit=4
    $region2: #{tpu_custom_call.1} parent=1 // loop_pre_header
      _
    $region3: #{tpu_custom_call.1} parent=1 // loop_header
      %s19 = sphi 0, %s23
      %p20 = scmp.ge.s32.totalorder %s19, 4
      %s29 = sphi 0, %s31
      %s32 = sphi 0, %s29
      %s33 = sphi 0, %s32
      %s49 = sphi 0, %s33
      %s53 = sphi 0, %s53
      %s55 = sphi 0, %s53
      %s56 = sphi 0, %s55
      %s70 = sphi 0, %s56
      %s74 = sphi 0, %s74
      %s76 = sphi 0, %s74
      %s77 = sphi 0, %s76
      %s91 = sphi 0, %s77
      %s95 = sphi 0, %s95
      %s97 = sphi 0, %s95
      %s98 = sphi 0, %s97
      %s112 = sphi 0, %s98
      %s116 = sphi 0, %s116
      %s118 = sphi 0, %s116
      %s119 = sphi 0, %s118
      %s133 = sphi 0, %s119
      %s139 = sphi 0, %s141
      %s142 = sphi 0, %s139
      %s143 = sphi 0, %s142
      %s159 = sphi 0, %s143
    $region4: #{tpu_custom_call.1} parent=1 // loop_header_branch
      %22 = sbr.rel (%p20) target = $region8
    $region5: #{tpu_custom_call.1} parent=1 // loop_body
      %s24 = ssub.s32 %s19, 1
      %s25 = ssub.s32 %s19, 2
      %s26 = sadd.s32 %s19, 1
      %s27 = ssub.s32 %s19, %s26
      %p28 = scmp.eq.s32.totalorder %s27, 0
      %s30 = sadd.s32 %s29, 1
      %s31 = scalar_select %p28, %s29, %s30
      %p34 = pneg %p28
      %p35 = scmp.eq.s32.totalorder %s19, 1
      %p36 = por %p34, %p35
      %p37 = scmp.ne.s32.totalorder %s29, %s32
      %p38 = scmp.eq.s32.totalorder %s19, 0
      %p39 = por %p37, %p38
      %p40 = scmp.ne.s32.totalorder %s29, %s32
      %p41 = scmp.eq.s32.totalorder %s24, 1
      %p42 = por %p40, %p41
      %p43 = scmp.ne.s32.totalorder %s32, %s33
      %p44 = scmp.eq.s32.totalorder %s24, 0
      %p45 = por %p43, %p44
      %p46 = scmp.ne.s32.totalorder %s32, %s33
      %p47 = scmp.eq.s32.totalorder %s25, 1
      %p48 = por %p46, %p47
      %p50 = scmp.ne.s32.totalorder %s33, %s49
      %p51 = scmp.eq.s32.totalorder %s25, 0
      %p52 = por %p50, %p51
      %s54 = sadd.s32 %s53, 1
      %p57 = scmp.eq.s32.totalorder %s19, 1
      %p58 = scmp.ne.s32.totalorder %s53, %s55
      %p59 = scmp.eq.s32.totalorder %s19, 0
      %p60 = por %p58, %p59
      %p61 = scmp.ne.s32.totalorder %s53, %s55
      %p62 = scmp.eq.s32.totalorder %s24, 1
      %p63 = por %p61, %p62
      %p64 = scmp.ne.s32.totalorder %s55, %s56
      %p65 = scmp.eq.s32.totalorder %s24, 0
      %p66 = por %p64, %p65
      %p67 = scmp.ne.s32.totalorder %s55, %s56
      %p68 = scmp.eq.s32.totalorder %s25, 1
      %p69 = por %p67, %p68
      %p71 = scmp.ne.s32.totalorder %s56, %s70
      %p72 = scmp.eq.s32.totalorder %s25, 0
      %p73 = por %p71, %p72
      %s75 = sadd.s32 %s74, 1
      %p78 = scmp.eq.s32.totalorder %s19, 1
      %p79 = scmp.ne.s32.totalorder %s74, %s76
      %p80 = scmp.eq.s32.totalorder %s19, 0
      %p81 = por %p79, %p80
      %p82 = scmp.ne.s32.totalorder %s74, %s76
      %p83 = scmp.eq.s32.totalorder %s24, 1
      %p84 = por %p82, %p83
      %p85 = scmp.ne.s32.totalorder %s76, %s77
      %p86 = scmp.eq.s32.totalorder %s24, 0
      %p87 = por %p85, %p86
      %p88 = scmp.ne.s32.totalorder %s76, %s77
      %p89 = scmp.eq.s32.totalorder %s25, 1
      %p90 = por %p88, %p89
      %p92 = scmp.ne.s32.totalorder %s77, %s91
      %p93 = scmp.eq.s32.totalorder %s25, 0
      %p94 = por %p92, %p93
      %s96 = sadd.s32 %s95, 1
      %p99 = scmp.eq.s32.totalorder %s19, 1
      %p100 = scmp.ne.s32.totalorder %s95, %s97
      %p101 = scmp.eq.s32.totalorder %s19, 0
      %p102 = por %p100, %p101
      %p103 = scmp.ne.s32.totalorder %s95, %s97
      %p104 = scmp.eq.s32.totalorder %s24, 1
      %p105 = por %p103, %p104
      %p106 = scmp.ne.s32.totalorder %s97, %s98
      %p107 = scmp.eq.s32.totalorder %s24, 0
      %p108 = por %p106, %p107
      %p109 = scmp.ne.s32.totalorder %s97, %s98
      %p110 = scmp.eq.s32.totalorder %s25, 1
      %p111 = por %p109, %p110
      %p113 = scmp.ne.s32.totalorder %s98, %s112
      %p114 = scmp.eq.s32.totalorder %s25, 0
      %p115 = por %p113, %p114
      %s117 = sadd.s32 %s116, 1
      %p120 = scmp.eq.s32.totalorder %s19, 1
      %p121 = scmp.ne.s32.totalorder %s116, %s118
      %p122 = scmp.eq.s32.totalorder %s19, 0
      %p123 = por %p121, %p122
      %p124 = scmp.ne.s32.totalorder %s116, %s118
      %p125 = scmp.eq.s32.totalorder %s24, 1
      %p126 = por %p124, %p125
      %p127 = scmp.ne.s32.totalorder %s118, %s119
      %p128 = scmp.eq.s32.totalorder %s24, 0
      %p129 = por %p127, %p128
      %p130 = scmp.ne.s32.totalorder %s118, %s119
      %p131 = scmp.eq.s32.totalorder %s25, 1
      %p132 = por %p130, %p131
      %p134 = scmp.ne.s32.totalorder %s119, %s133
      %p135 = scmp.eq.s32.totalorder %s25, 0
      %p136 = por %p134, %p135
      %s137 = ssub.s32 %s19, %s26
      %p138 = scmp.eq.s32.totalorder %s137, 0
      %s140 = sadd.s32 %s139, 1
      %s141 = scalar_select %p138, %s139, %s140
      %p144 = pneg %p138
      %p145 = scmp.eq.s32.totalorder %s19, 1
      %p146 = por %p144, %p145
      %p147 = scmp.ne.s32.totalorder %s139, %s142
      %p148 = scmp.eq.s32.totalorder %s19, 0
      %p149 = por %p147, %p148
      %p150 = scmp.ne.s32.totalorder %s139, %s142
      %p151 = scmp.eq.s32.totalorder %s24, 1
      %p152 = por %p150, %p151
      %p153 = scmp.ne.s32.totalorder %s142, %s143
      %p154 = scmp.eq.s32.totalorder %s24, 0
      %p155 = por %p153, %p154
      %p156 = scmp.ne.s32.totalorder %s142, %s143
      %p157 = scmp.eq.s32.totalorder %s25, 1
      %p158 = por %p156, %p157
      %p160 = scmp.ne.s32.totalorder %s143, %s159
      %p161 = scmp.eq.s32.totalorder %s25, 0
      %p162 = por %p160, %p161
      %p163 = scmp.le.s32.totalorder 1, %s19
      %p164 = scmp.lt.s32.totalorder %s19, 3
      %p165 = pnand %p163, %p164
      %p166 = pneg %p165
      // Predicated region
      $region9: #{tpu_custom_call.1} parent=5 // pred_check
        _
      $region10: #{tpu_custom_call.1} parent=5 // pred_check_branch
        %168 = sbr.rel (%p165) target = $region12
      $region11: #{tpu_custom_call.1} parent=5 // pred_region
        %s169 = ssub.s32 %s19, 1
        // Predicated region
        $region13: #{tpu_custom_call.1} parent=11 // pred_check
          %p170 = pneg %p66
        $region14: #{tpu_custom_call.1} parent=11 // pred_check_branch
          %172 = sbr.rel (%p170) target = $region16
        $region15: #{tpu_custom_call.1} parent=11 // pred_region
          %s174 = ssub.s32 9216, 9216
          %175 = vsyncadd [#allocation8], %s174
          %s176 = sshll.u32 [#allocation7], 4
          %s177 = int_to_ptr.vmem [resolvable:$true] %s176
          %182 = dma.hbm_to_vmem [thread:$0]  %s1, 9216, %s177, [#allocation8], 64, 64, 4
        $region16: #{tpu_custom_call.1} parent=11 // pred_fallthru
          _
        // Predicated region
        $region17: #{tpu_custom_call.1} parent=11 // pred_check
          %p183 = pneg %p87
        $region18: #{tpu_custom_call.1} parent=11 // pred_check_branch
          %185 = sbr.rel (%p183) target = $region20
        $region19: #{tpu_custom_call.1} parent=11 // pred_region
          %s187 = ssub.s32 16, 16
          %188 = vsyncadd [#allocation8], %s187
          %s190 = sshll.u32 [#allocation9], 4
          %s191 = int_to_ptr.vmem [resolvable:$true] %s190
          %193 = dma.hbm_to_vmem [thread:$0]  %s2, 16, %s191, [#allocation8]
        $region20: #{tpu_custom_call.1} parent=11 // pred_fallthru
          _
        // Predicated region
        $region21: #{tpu_custom_call.1} parent=11 // pred_check
          %p194 = pneg %p108
        $region22: #{tpu_custom_call.1} parent=11 // pred_check_branch
          %196 = sbr.rel (%p194) target = $region24
        $region23: #{tpu_custom_call.1} parent=11 // pred_region
          %s198 = ssub.s32 9216, 9216
          %199 = vsyncadd [#allocation11], %s198
          %s200 = sshll.u32 [#allocation10], 4
          %s201 = int_to_ptr.vmem [resolvable:$true] %s200
          %206 = dma.hbm_to_vmem [thread:$0]  %s3, 9216, %s201, [#allocation11], 64, 64, 4
        $region24: #{tpu_custom_call.1} parent=11 // pred_fallthru
          _
        // Predicated region
        $region25: #{tpu_custom_call.1} parent=11 // pred_check
          %p207 = pneg %p129
        $region26: #{tpu_custom_call.1} parent=11 // pred_check_branch
          %209 = sbr.rel (%p207) target = $region28
        $region27: #{tpu_custom_call.1} parent=11 // pred_region
          %s211 = ssub.s32 16, 16
          %212 = vsyncadd [#allocation11], %s211
          %s214 = sshll.u32 [#allocation12], 4
          %s215 = int_to_ptr.vmem [resolvable:$true] %s214
          %217 = dma.hbm_to_vmem [thread:$0]  %s4, 16, %s215, [#allocation11]
        $region28: #{tpu_custom_call.1} parent=11 // pred_fallthru
          _
      $region12: #{tpu_custom_call.1} parent=5 // pred_fallthru
        _
      %p218 = scmp.lt.s32.totalorder %s19, 2
      // Predicated region
      $region29: #{tpu_custom_call.1} parent=5 // pred_check
        %p219 = pneg %p218
      $region30: #{tpu_custom_call.1} parent=5 // pred_check_branch
        %221 = sbr.rel (%p219) target = $region32
      $region31: #{tpu_custom_call.1} parent=5 // pred_region
        // Predicated region
        $region33: #{tpu_custom_call.1} parent=31 // pred_check
          %p222 = pneg %p39
        $region34: #{tpu_custom_call.1} parent=31 // pred_check_branch
          %224 = sbr.rel (%p222) target = $region36
        $region35: #{tpu_custom_call.1} parent=31 // pred_region
          %s225 = sand.u32 %s29, 1
          %s226 = scalar_lea.sflag [#allocation5], %s225
          %s227 = sand.u32 %s29, 1
          %s228 = smul.addr %s227, 128
          %s229 = scalar_lea.vmem [#allocation4], %s228
          %s231 = ssub.s32 2048, 2048
          %232 = vsyncadd %s226, %s231
          %s233 = smul.addr %s19, 32
          %s234 = smul.addr %s233, 64
          %s235 = scalar_lea.hbm %s0, %s234
          %s236 = sshll.u32 %s229, 4
          %s237 = int_to_ptr.vmem [resolvable:$true] %s236
          %242 = dma.hbm_to_vmem [thread:$0]  %s235, 2048, %s237, %s226, 64, 64, 4
        $region36: #{tpu_custom_call.1} parent=31 // pred_fallthru
          _
      $region32: #{tpu_custom_call.1} parent=5 // pred_fallthru
        _
      %p243 = scmp.le.s32.totalorder 1, %s19
      %p244 = scmp.lt.s32.totalorder %s19, 3
      %p245 = pnand %p243, %p244
      %p246 = pneg %p245
      // Predicated region
      $region37: #{tpu_custom_call.1} parent=5 // pred_check
        _
      $region38: #{tpu_custom_call.1} parent=5 // pred_check_branch
        %248 = sbr.rel (%p245) target = $region40
      $region39: #{tpu_custom_call.1} parent=5 // pred_region
        %s249 = ssub.s32 %s19, 1
        %s250 = sand.u32 %s32, 1
        %s251 = scalar_lea.sflag [#allocation5], %s250
        %s252 = sand.u32 %s32, 1
        %s253 = smul.addr %s252, 128
        %s254 = scalar_lea.vmem [#allocation4], %s253
        // Predicated region
        $region41: #{tpu_custom_call.1} parent=39 // pred_check
          %p255 = pneg %p45
        $region42: #{tpu_custom_call.1} parent=39 // pred_check_branch
          %257 = sbr.rel (%p255) target = $region44
        $region43: #{tpu_custom_call.1} parent=39 // pred_region
          %258 = dma.done %s251, 2048
        $region44: #{tpu_custom_call.1} parent=39 // pred_fallthru
          _
        // Predicated region
        $region45: #{tpu_custom_call.1} parent=39 // pred_check
          %p259 = pneg %p66
        $region46: #{tpu_custom_call.1} parent=39 // pred_check_branch
          %261 = sbr.rel (%p259) target = $region48
        $region47: #{tpu_custom_call.1} parent=39 // pred_region
          %262 = dma.done [#allocation8], 9216
        $region48: #{tpu_custom_call.1} parent=39 // pred_fallthru
          _
        // Predicated region
        $region49: #{tpu_custom_call.1} parent=39 // pred_check
          %p263 = pneg %p87
        $region50: #{tpu_custom_call.1} parent=39 // pred_check_branch
          %265 = sbr.rel (%p263) target = $region52
        $region51: #{tpu_custom_call.1} parent=39 // pred_region
          %266 = dma.done [#allocation8], 16
        $region52: #{tpu_custom_call.1} parent=39 // pred_fallthru
          _
        // Predicated region
        $region53: #{tpu_custom_call.1} parent=39 // pred_check
          %p267 = pneg %p108
        $region54: #{tpu_custom_call.1} parent=39 // pred_check_branch
          %269 = sbr.rel (%p267) target = $region56
        $region55: #{tpu_custom_call.1} parent=39 // pred_region
          %270 = dma.done [#allocation11], 9216
        $region56: #{tpu_custom_call.1} parent=39 // pred_fallthru
          _
        // Predicated region
        $region57: #{tpu_custom_call.1} parent=39 // pred_check
          %p271 = pneg %p129
        $region58: #{tpu_custom_call.1} parent=39 // pred_check_branch
          %273 = sbr.rel (%p271) target = $region60
        $region59: #{tpu_custom_call.1} parent=39 // pred_region
          %274 = dma.done [#allocation11], 16
        $region60: #{tpu_custom_call.1} parent=39 // pred_fallthru
          _
        %s275 = sand.u32 %s32, 1
        %s276 = scalar_lea.sflag [#allocation5], %s275
        %s277 = sand.u32 %s32, 1
        %s278 = smul.addr %s277, 128
        %s279 = scalar_lea.vmem [#allocation4], %s278
        %p280 = pneg %p45
        %p281 = pneg %p42
        %p282 = pneg %p66
        %p283 = pneg %p63
        %p284 = pneg %p87
        %p285 = pneg %p84
        %p286 = pneg %p108
        %p287 = pneg %p105
        %p288 = pneg %p129
        %p289 = pneg %p126
        %p290 = pneg %p155
        %p291 = pneg %p152
        %s292 = sand.u32 %s142, 1
        %s293 = scalar_lea.sflag [#allocation6], %s292
        %s294 = sand.u32 %s142, 1
        %s295 = smul.addr %s294, 128
        %s296 = scalar_lea.vmem [#allocation13], %s295
        %v298 = vlaneseq
        %v299 = vshrl.u32 %v298, 7
        %v300 = vadd.s32 %v299, 8
        %v301 = vadd.s32 %v299, 16
        %v302 = vadd.s32 %v299, 24
        %v303 = vadd.s32 %v299, 32
        %v304 = vadd.s32 %v299, 40
        %v305 = vadd.s32 %v299, 48
        %v306 = vadd.s32 %v299, 56
        %v307 = vadd.s32 %v299, 64
        %v308 = vadd.s32 %v299, 72
        %v309 = vadd.s32 %v299, 80
        %v310 = vadd.s32 %v299, 88
        %v311 = vadd.s32 %v299, 96
        %v312 = vadd.s32 %v299, 104
        %v313 = vadd.s32 %v299, 112
        %v314 = vadd.s32 %v299, 120
        %v315 = vadd.s32 %v299, 128
        %v316 = vadd.s32 %v299, 136
        %v317 = vadd.s32 %v299, 144
        %v318 = vadd.s32 %v299, 152
        %v319 = vadd.s32 %v299, 160
        %v320 = vadd.s32 %v299, 168
        %v321 = vadd.s32 %v299, 176
        %v322 = vadd.s32 %v299, 184
        %v323 = vadd.s32 %v299, 192
        %v324 = vadd.s32 %v299, 200
        %v325 = vadd.s32 %v299, 208
        %v326 = vadd.s32 %v299, 216
        %v327 = vadd.s32 %v299, 224
        %v328 = vadd.s32 %v299, 232
        %v329 = vadd.s32 %v299, 240
        %v330 = vadd.s32 %v299, 248
        %vm331 = vcmp.lt.s32.totalorder %v299, 0
        %v332 = vsub.s32 0, %v299
        %v333 = vsel %vm331, %v332, %v299
        %v334 = vshrl.u32 %v333, 4
        %v335 = vand.u32 %v333, 15
        %v336 = vsub.s32 0, %v335
        %v337 = vsel %vm331, %v336, %v335
        %vm338 = vcmp.lt.s32.totalorder %v300, 0
        %v339 = vsub.s32 0, %v300
        %v340 = vsel %vm338, %v339, %v300
        %v341 = vshrl.u32 %v340, 4
        %v342 = vand.u32 %v340, 15
        %v343 = vsub.s32 0, %v342
        %v344 = vsel %vm338, %v343, %v342
        %vm345 = vcmp.lt.s32.totalorder %v301, 0
        %v346 = vsub.s32 0, %v301
        %v347 = vsel %vm345, %v346, %v301
        %v348 = vshrl.u32 %v347, 4
        %v349 = vand.u32 %v347, 15
        %v350 = vsub.s32 0, %v349
        %v351 = vsel %vm345, %v350, %v349
        %vm352 = vcmp.lt.s32.totalorder %v302, 0
        %v353 = vsub.s32 0, %v302
        %v354 = vsel %vm352, %v353, %v302
        %v355 = vshrl.u32 %v354, 4
        %v356 = vand.u32 %v354, 15
        %v357 = vsub.s32 0, %v356
        %v358 = vsel %vm352, %v357, %v356
        %vm359 = vcmp.lt.s32.totalorder %v303, 0
        %v360 = vsub.s32 0, %v303
        %v361 = vsel %vm359, %v360, %v303
        %v362 = vshrl.u32 %v361, 4
        %v363 = vand.u32 %v361, 15
        %v364 = vsub.s32 0, %v363
        %v365 = vsel %vm359, %v364, %v363
        %vm366 = vcmp.lt.s32.totalorder %v304, 0
        %v367 = vsub.s32 0, %v304
        %v368 = vsel %vm366, %v367, %v304
        %v369 = vshrl.u32 %v368, 4
        %v370 = vand.u32 %v368, 15
        %v371 = vsub.s32 0, %v370
        %v372 = vsel %vm366, %v371, %v370
        %vm373 = vcmp.lt.s32.totalorder %v305, 0
        %v374 = vsub.s32 0, %v305
        %v375 = vsel %vm373, %v374, %v305
        %v376 = vshrl.u32 %v375, 4
        %v377 = vand.u32 %v375, 15
        %v378 = vsub.s32 0, %v377
        %v379 = vsel %vm373, %v378, %v377
        %vm380 = vcmp.lt.s32.totalorder %v306, 0
        %v381 = vsub.s32 0, %v306
        %v382 = vsel %vm380, %v381, %v306
        %v383 = vshrl.u32 %v382, 4
        %v384 = vand.u32 %v382, 15
        %v385 = vsub.s32 0, %v384
        %v386 = vsel %vm380, %v385, %v384
        %vm387 = vcmp.lt.s32.totalorder %v307, 0
        %v388 = vsub.s32 0, %v307
        %v389 = vsel %vm387, %v388, %v307
        %v390 = vshrl.u32 %v389, 4
        %v391 = vand.u32 %v389, 15
        %v392 = vsub.s32 0, %v391
        %v393 = vsel %vm387, %v392, %v391
        %vm394 = vcmp.lt.s32.totalorder %v308, 0
        %v395 = vsub.s32 0, %v308
        %v396 = vsel %vm394, %v395, %v308
        %v397 = vshrl.u32 %v396, 4
        %v398 = vand.u32 %v396, 15
        %v399 = vsub.s32 0, %v398
        %v400 = vsel %vm394, %v399, %v398
        %vm401 = vcmp.lt.s32.totalorder %v309, 0
        %v402 = vsub.s32 0, %v309
        %v403 = vsel %vm401, %v402, %v309
        %v404 = vshrl.u32 %v403, 4
        %v405 = vand.u32 %v403, 15
        %v406 = vsub.s32 0, %v405
        %v407 = vsel %vm401, %v406, %v405
        %vm408 = vcmp.lt.s32.totalorder %v310, 0
        %v409 = vsub.s32 0, %v310
        %v410 = vsel %vm408, %v409, %v310
        %v411 = vshrl.u32 %v410, 4
        %v412 = vand.u32 %v410, 15
        %v413 = vsub.s32 0, %v412
        %v414 = vsel %vm408, %v413, %v412
        %vm415 = vcmp.lt.s32.totalorder %v311, 0
        %v416 = vsub.s32 0, %v311
        %v417 = vsel %vm415, %v416, %v311
        %v418 = vshrl.u32 %v417, 4
        %v419 = vand.u32 %v417, 15
        %v420 = vsub.s32 0, %v419
        %v421 = vsel %vm415, %v420, %v419
        %vm422 = vcmp.lt.s32.totalorder %v312, 0
        %v423 = vsub.s32 0, %v312
        %v424 = vsel %vm422, %v423, %v312
        %v425 = vshrl.u32 %v424, 4
        %v426 = vand.u32 %v424, 15
        %v427 = vsub.s32 0, %v426
        %v428 = vsel %vm422, %v427, %v426
        %vm429 = vcmp.lt.s32.totalorder %v313, 0
        %v430 = vsub.s32 0, %v313
        %v431 = vsel %vm429, %v430, %v313
        %v432 = vshrl.u32 %v431, 4
        %v433 = vand.u32 %v431, 15
        %v434 = vsub.s32 0, %v433
        %v435 = vsel %vm429, %v434, %v433
        %vm436 = vcmp.lt.s32.totalorder %v314, 0
        %v437 = vsub.s32 0, %v314
        %v438 = vsel %vm436, %v437, %v314
        %v439 = vshrl.u32 %v438, 4
        %v440 = vand.u32 %v438, 15
        %v441 = vsub.s32 0, %v440
        %v442 = vsel %vm436, %v441, %v440
        %vm443 = vcmp.lt.s32.totalorder %v315, 0
        %v444 = vsub.s32 0, %v315
        %v445 = vsel %vm443, %v444, %v315
        %v446 = vshrl.u32 %v445, 4
        %v447 = vand.u32 %v445, 15
        %v448 = vsub.s32 0, %v447
        %v449 = vsel %vm443, %v448, %v447
        %vm450 = vcmp.lt.s32.totalorder %v316, 0
        %v451 = vsub.s32 0, %v316
        %v452 = vsel %vm450, %v451, %v316
        %v453 = vshrl.u32 %v452, 4
        %v454 = vand.u32 %v452, 15
        %v455 = vsub.s32 0, %v454
        %v456 = vsel %vm450, %v455, %v454
        %vm457 = vcmp.lt.s32.totalorder %v317, 0
        %v458 = vsub.s32 0, %v317
        %v459 = vsel %vm457, %v458, %v317
        %v460 = vshrl.u32 %v459, 4
        %v461 = vand.u32 %v459, 15
        %v462 = vsub.s32 0, %v461
        %v463 = vsel %vm457, %v462, %v461
        %vm464 = vcmp.lt.s32.totalorder %v318, 0
        %v465 = vsub.s32 0, %v318
        %v466 = vsel %vm464, %v465, %v318
        %v467 = vshrl.u32 %v466, 4
        %v468 = vand.u32 %v466, 15
        %v469 = vsub.s32 0, %v468
        %v470 = vsel %vm464, %v469, %v468
        %vm471 = vcmp.lt.s32.totalorder %v319, 0
        %v472 = vsub.s32 0, %v319
        %v473 = vsel %vm471, %v472, %v319
        %v474 = vshrl.u32 %v473, 4
        %v475 = vand.u32 %v473, 15
        %v476 = vsub.s32 0, %v475
        %v477 = vsel %vm471, %v476, %v475
        %vm478 = vcmp.lt.s32.totalorder %v320, 0
        %v479 = vsub.s32 0, %v320
        %v480 = vsel %vm478, %v479, %v320
        %v481 = vshrl.u32 %v480, 4
        %v482 = vand.u32 %v480, 15
        %v483 = vsub.s32 0, %v482
        %v484 = vsel %vm478, %v483, %v482
        %vm485 = vcmp.lt.s32.totalorder %v321, 0
        %v486 = vsub.s32 0, %v321
        %v487 = vsel %vm485, %v486, %v321
        %v488 = vshrl.u32 %v487, 4
        %v489 = vand.u32 %v487, 15
        %v490 = vsub.s32 0, %v489
        %v491 = vsel %vm485, %v490, %v489
        %vm492 = vcmp.lt.s32.totalorder %v322, 0
        %v493 = vsub.s32 0, %v322
        %v494 = vsel %vm492, %v493, %v322
        %v495 = vshrl.u32 %v494, 4
        %v496 = vand.u32 %v494, 15
        %v497 = vsub.s32 0, %v496
        %v498 = vsel %vm492, %v497, %v496
        %vm499 = vcmp.lt.s32.totalorder %v323, 0
        %v500 = vsub.s32 0, %v323
        %v501 = vsel %vm499, %v500, %v323
        %v502 = vshrl.u32 %v501, 4
        %v503 = vand.u32 %v501, 15
        %v504 = vsub.s32 0, %v503
        %v505 = vsel %vm499, %v504, %v503
        %vm506 = vcmp.lt.s32.totalorder %v324, 0
        %v507 = vsub.s32 0, %v324
        %v508 = vsel %vm506, %v507, %v324
        %v509 = vshrl.u32 %v508, 4
        %v510 = vand.u32 %v508, 15
        %v511 = vsub.s32 0, %v510
        %v512 = vsel %vm506, %v511, %v510
        %vm513 = vcmp.lt.s32.totalorder %v325, 0
        %v514 = vsub.s32 0, %v325
        %v515 = vsel %vm513, %v514, %v325
        %v516 = vshrl.u32 %v515, 4
        %v517 = vand.u32 %v515, 15
        %v518 = vsub.s32 0, %v517
        %v519 = vsel %vm513, %v518, %v517
        %vm520 = vcmp.lt.s32.totalorder %v326, 0
        %v521 = vsub.s32 0, %v326
        %v522 = vsel %vm520, %v521, %v326
        %v523 = vshrl.u32 %v522, 4
        %v524 = vand.u32 %v522, 15
        %v525 = vsub.s32 0, %v524
        %v526 = vsel %vm520, %v525, %v524
        %vm527 = vcmp.lt.s32.totalorder %v327, 0
        %v528 = vsub.s32 0, %v327
        %v529 = vsel %vm527, %v528, %v327
        %v530 = vshrl.u32 %v529, 4
        %v531 = vand.u32 %v529, 15
        %v532 = vsub.s32 0, %v531
        %v533 = vsel %vm527, %v532, %v531
        %vm534 = vcmp.lt.s32.totalorder %v328, 0
        %v535 = vsub.s32 0, %v328
        %v536 = vsel %vm534, %v535, %v328
        %v537 = vshrl.u32 %v536, 4
        %v538 = vand.u32 %v536, 15
        %v539 = vsub.s32 0, %v538
        %v540 = vsel %vm534, %v539, %v538
        %vm541 = vcmp.lt.s32.totalorder %v329, 0
        %v542 = vsub.s32 0, %v329
        %v543 = vsel %vm541, %v542, %v329
        %v544 = vshrl.u32 %v543, 4
        %v545 = vand.u32 %v543, 15
        %v546 = vsub.s32 0, %v545
        %v547 = vsel %vm541, %v546, %v545
        %vm548 = vcmp.lt.s32.totalorder %v330, 0
        %v549 = vsub.s32 0, %v330
        %v550 = vsel %vm548, %v549, %v330
        %v551 = vshrl.u32 %v550, 4
        %v552 = vand.u32 %v550, 15
        %v553 = vsub.s32 0, %v552
        %v554 = vsel %vm548, %v553, %v552
        %vm555 = vcmp.ne.s32.totalorder %v337, 0
        %vm556 = vcmp.ne.s32.totalorder %v344, 0
        %vm557 = vcmp.ne.s32.totalorder %v351, 0
        %vm558 = vcmp.ne.s32.totalorder %v358, 0
        %vm559 = vcmp.ne.s32.totalorder %v365, 0
        %vm560 = vcmp.ne.s32.totalorder %v372, 0
        %vm561 = vcmp.ne.s32.totalorder %v379, 0
        %vm562 = vcmp.ne.s32.totalorder %v386, 0
        %vm563 = vcmp.ne.s32.totalorder %v393, 0
        %vm564 = vcmp.ne.s32.totalorder %v400, 0
        %vm565 = vcmp.ne.s32.totalorder %v407, 0
        %vm566 = vcmp.ne.s32.totalorder %v414, 0
        %vm567 = vcmp.ne.s32.totalorder %v421, 0
        %vm568 = vcmp.ne.s32.totalorder %v428, 0
        %vm569 = vcmp.ne.s32.totalorder %v435, 0
        %vm570 = vcmp.ne.s32.totalorder %v442, 0
        %vm571 = vcmp.ne.s32.totalorder %v449, 0
        %vm572 = vcmp.ne.s32.totalorder %v456, 0
        %vm573 = vcmp.ne.s32.totalorder %v463, 0
        %vm574 = vcmp.ne.s32.totalorder %v470, 0
        %vm575 = vcmp.ne.s32.totalorder %v477, 0
        %vm576 = vcmp.ne.s32.totalorder %v484, 0
        %vm577 = vcmp.ne.s32.totalorder %v491, 0
        %vm578 = vcmp.ne.s32.totalorder %v498, 0
        %vm579 = vcmp.ne.s32.totalorder %v505, 0
        %vm580 = vcmp.ne.s32.totalorder %v512, 0
        %vm581 = vcmp.ne.s32.totalorder %v519, 0
        %vm582 = vcmp.ne.s32.totalorder %v526, 0
        %vm583 = vcmp.ne.s32.totalorder %v533, 0
        %vm584 = vcmp.ne.s32.totalorder %v540, 0
        %vm585 = vcmp.ne.s32.totalorder %v547, 0
        %vm586 = vcmp.ne.s32.totalorder %v554, 0
        %vm587 = vcmp.lt.s32.totalorder %v337, 0
        %vm588 = vcmp.lt.s32.totalorder %v344, 0
        %vm589 = vcmp.lt.s32.totalorder %v351, 0
        %vm590 = vcmp.lt.s32.totalorder %v358, 0
        %vm591 = vcmp.lt.s32.totalorder %v365, 0
        %vm592 = vcmp.lt.s32.totalorder %v372, 0
        %vm593 = vcmp.lt.s32.totalorder %v379, 0
        %vm594 = vcmp.lt.s32.totalorder %v386, 0
        %vm595 = vcmp.lt.s32.totalorder %v393, 0
        %vm596 = vcmp.lt.s32.totalorder %v400, 0
        %vm597 = vcmp.lt.s32.totalorder %v407, 0
        %vm598 = vcmp.lt.s32.totalorder %v414, 0
        %vm599 = vcmp.lt.s32.totalorder %v421, 0
        %vm600 = vcmp.lt.s32.totalorder %v428, 0
        %vm601 = vcmp.lt.s32.totalorder %v435, 0
        %vm602 = vcmp.lt.s32.totalorder %v442, 0
        %vm603 = vcmp.lt.s32.totalorder %v449, 0
        %vm604 = vcmp.lt.s32.totalorder %v456, 0
        %vm605 = vcmp.lt.s32.totalorder %v463, 0
        %vm606 = vcmp.lt.s32.totalorder %v470, 0
        %vm607 = vcmp.lt.s32.totalorder %v477, 0
        %vm608 = vcmp.lt.s32.totalorder %v484, 0
        %vm609 = vcmp.lt.s32.totalorder %v491, 0
        %vm610 = vcmp.lt.s32.totalorder %v498, 0
        %vm611 = vcmp.lt.s32.totalorder %v505, 0
        %vm612 = vcmp.lt.s32.totalorder %v512, 0
        %vm613 = vcmp.lt.s32.totalorder %v519, 0
        %vm614 = vcmp.lt.s32.totalorder %v526, 0
        %vm615 = vcmp.lt.s32.totalorder %v533, 0
        %vm616 = vcmp.lt.s32.totalorder %v540, 0
        %vm617 = vcmp.lt.s32.totalorder %v547, 0
        %vm618 = vcmp.lt.s32.totalorder %v554, 0
        %vm619 = vmand %vm587, %vm555
        %vm620 = vmand %vm588, %vm556
        %vm621 = vmand %vm589, %vm557
        %vm622 = vmand %vm590, %vm558
        %vm623 = vmand %vm591, %vm559
        %vm624 = vmand %vm592, %vm560
        %vm625 = vmand %vm593, %vm561
        %vm626 = vmand %vm594, %vm562
        %vm627 = vmand %vm595, %vm563
        %vm628 = vmand %vm596, %vm564
        %vm629 = vmand %vm597, %vm565
        %vm630 = vmand %vm598, %vm566
        %vm631 = vmand %vm599, %vm567
        %vm632 = vmand %vm600, %vm568
        %vm633 = vmand %vm601, %vm569
        %vm634 = vmand %vm602, %vm570
        %vm635 = vmand %vm603, %vm571
        %vm636 = vmand %vm604, %vm572
        %vm637 = vmand %vm605, %vm573
        %vm638 = vmand %vm606, %vm574
        %vm639 = vmand %vm607, %vm575
        %vm640 = vmand %vm608, %vm576
        %vm641 = vmand %vm609, %vm577
        %vm642 = vmand %vm610, %vm578
        %vm643 = vmand %vm611, %vm579
        %vm644 = vmand %vm612, %vm580
        %vm645 = vmand %vm613, %vm581
        %vm646 = vmand %vm614, %vm582
        %vm647 = vmand %vm615, %vm583
        %vm648 = vmand %vm616, %vm584
        %vm649 = vmand %vm617, %vm585
        %vm650 = vmand %vm618, %vm586
        %v651 = vadd.s32 %v337, 16
        %v652 = vadd.s32 %v344, 16
        %v653 = vadd.s32 %v351, 16
        %v654 = vadd.s32 %v358, 16
        %v655 = vadd.s32 %v365, 16
        %v656 = vadd.s32 %v372, 16
        %v657 = vadd.s32 %v379, 16
        %v658 = vadd.s32 %v386, 16
        %v659 = vadd.s32 %v393, 16
        %v660 = vadd.s32 %v400, 16
        %v661 = vadd.s32 %v407, 16
        %v662 = vadd.s32 %v414, 16
        %v663 = vadd.s32 %v421, 16
        %v664 = vadd.s32 %v428, 16
        %v665 = vadd.s32 %v435, 16
        %v666 = vadd.s32 %v442, 16
        %v667 = vadd.s32 %v449, 16
        %v668 = vadd.s32 %v456, 16
        %v669 = vadd.s32 %v463, 16
        %v670 = vadd.s32 %v470, 16
        %v671 = vadd.s32 %v477, 16
        %v672 = vadd.s32 %v484, 16
        %v673 = vadd.s32 %v491, 16
        %v674 = vadd.s32 %v498, 16
        %v675 = vadd.s32 %v505, 16
        %v676 = vadd.s32 %v512, 16
        %v677 = vadd.s32 %v519, 16
        %v678 = vadd.s32 %v526, 16
        %v679 = vadd.s32 %v533, 16
        %v680 = vadd.s32 %v540, 16
        %v681 = vadd.s32 %v547, 16
        %v682 = vadd.s32 %v554, 16
        %v683 = vsel %vm619, %v651, %v337
        %v684 = vsel %vm620, %v652, %v344
        %v685 = vsel %vm621, %v653, %v351
        %v686 = vsel %vm622, %v654, %v358
        %v687 = vsel %vm623, %v655, %v365
        %v688 = vsel %vm624, %v656, %v372
        %v689 = vsel %vm625, %v657, %v379
        %v690 = vsel %vm626, %v658, %v386
        %v691 = vsel %vm627, %v659, %v393
        %v692 = vsel %vm628, %v660, %v400
        %v693 = vsel %vm629, %v661, %v407
        %v694 = vsel %vm630, %v662, %v414
        %v695 = vsel %vm631, %v663, %v421
        %v696 = vsel %vm632, %v664, %v428
        %v697 = vsel %vm633, %v665, %v435
        %v698 = vsel %vm634, %v666, %v442
        %v699 = vsel %vm635, %v667, %v449
        %v700 = vsel %vm636, %v668, %v456
        %v701 = vsel %vm637, %v669, %v463
        %v702 = vsel %vm638, %v670, %v470
        %v703 = vsel %vm639, %v671, %v477
        %v704 = vsel %vm640, %v672, %v484
        %v705 = vsel %vm641, %v673, %v491
        %v706 = vsel %vm642, %v674, %v498
        %v707 = vsel %vm643, %v675, %v505
        %v708 = vsel %vm644, %v676, %v512
        %v709 = vsel %vm645, %v677, %v519
        %v710 = vsel %vm646, %v678, %v526
        %v711 = vsel %vm647, %v679, %v533
        %v712 = vsel %vm648, %v680, %v540
        %v713 = vsel %vm649, %v681, %v547
        %v714 = vsel %vm650, %v682, %v554
        %vm715 = vcmp.gt.s32.totalorder %v683, 0
        %vm716 = vcmp.gt.s32.totalorder %v684, 0
        %vm717 = vcmp.gt.s32.totalorder %v685, 0
        %vm718 = vcmp.gt.s32.totalorder %v686, 0
        %vm719 = vcmp.gt.s32.totalorder %v687, 0
        %vm720 = vcmp.gt.s32.totalorder %v688, 0
        %vm721 = vcmp.gt.s32.totalorder %v689, 0
        %vm722 = vcmp.gt.s32.totalorder %v690, 0
        %vm723 = vcmp.gt.s32.totalorder %v691, 0
        %vm724 = vcmp.gt.s32.totalorder %v692, 0
        %vm725 = vcmp.gt.s32.totalorder %v693, 0
        %vm726 = vcmp.gt.s32.totalorder %v694, 0
        %vm727 = vcmp.gt.s32.totalorder %v695, 0
        %vm728 = vcmp.gt.s32.totalorder %v696, 0
        %vm729 = vcmp.gt.s32.totalorder %v697, 0
        %vm730 = vcmp.gt.s32.totalorder %v698, 0
        %vm731 = vcmp.gt.s32.totalorder %v699, 0
        %vm732 = vcmp.gt.s32.totalorder %v700, 0
        %vm733 = vcmp.gt.s32.totalorder %v701, 0
        %vm734 = vcmp.gt.s32.totalorder %v702, 0
        %vm735 = vcmp.gt.s32.totalorder %v703, 0
        %vm736 = vcmp.gt.s32.totalorder %v704, 0
        %vm737 = vcmp.gt.s32.totalorder %v705, 0
        %vm738 = vcmp.gt.s32.totalorder %v706, 0
        %vm739 = vcmp.gt.s32.totalorder %v707, 0
        %vm740 = vcmp.gt.s32.totalorder %v708, 0
        %vm741 = vcmp.gt.s32.totalorder %v709, 0
        %vm742 = vcmp.gt.s32.totalorder %v710, 0
        %vm743 = vcmp.gt.s32.totalorder %v711, 0
        %vm744 = vcmp.gt.s32.totalorder %v712, 0
        %vm745 = vcmp.gt.s32.totalorder %v713, 0
        %vm746 = vcmp.gt.s32.totalorder %v714, 0
        %vm747 = vcmp.lt.s32.totalorder %v683, 15
        %vm748 = vcmp.lt.s32.totalorder %v684, 15
        %vm749 = vcmp.lt.s32.totalorder %v685, 15
        %vm750 = vcmp.lt.s32.totalorder %v686, 15
        %vm751 = vcmp.lt.s32.totalorder %v687, 15
        %vm752 = vcmp.lt.s32.totalorder %v688, 15
        %vm753 = vcmp.lt.s32.totalorder %v689, 15
        %vm754 = vcmp.lt.s32.totalorder %v690, 15
        %vm755 = vcmp.lt.s32.totalorder %v691, 15
        %vm756 = vcmp.lt.s32.totalorder %v692, 15
        %vm757 = vcmp.lt.s32.totalorder %v693, 15
        %vm758 = vcmp.lt.s32.totalorder %v694, 15
        %vm759 = vcmp.lt.s32.totalorder %v695, 15
        %vm760 = vcmp.lt.s32.totalorder %v696, 15
        %vm761 = vcmp.lt.s32.totalorder %v697, 15
        %vm762 = vcmp.lt.s32.totalorder %v698, 15
        %vm763 = vcmp.lt.s32.totalorder %v699, 15
        %vm764 = vcmp.lt.s32.totalorder %v700, 15
        %vm765 = vcmp.lt.s32.totalorder %v701, 15
        %vm766 = vcmp.lt.s32.totalorder %v702, 15
        %vm767 = vcmp.lt.s32.totalorder %v703, 15
        %vm768 = vcmp.lt.s32.totalorder %v704, 15
        %vm769 = vcmp.lt.s32.totalorder %v705, 15
        %vm770 = vcmp.lt.s32.totalorder %v706, 15
        %vm771 = vcmp.lt.s32.totalorder %v707, 15
        %vm772 = vcmp.lt.s32.totalorder %v708, 15
        %vm773 = vcmp.lt.s32.totalorder %v709, 15
        %vm774 = vcmp.lt.s32.totalorder %v710, 15
        %vm775 = vcmp.lt.s32.totalorder %v711, 15
        %vm776 = vcmp.lt.s32.totalorder %v712, 15
        %vm777 = vcmp.lt.s32.totalorder %v713, 15
        %vm778 = vcmp.lt.s32.totalorder %v714, 15
        %v779 = vld [vmem:[%s254] sm:$0xf]
        %v780 = vld [vmem:[%s254 + $0x4] sm:$0xf]
        %v781 = vld [vmem:[%s254 + $0x8] sm:$0xf]
        %v782 = vld [vmem:[%s254 + $0xc] sm:$0xf]
        %v783 = vld [vmem:[%s254 + $0x10] sm:$0xf]
        %v784 = vld [vmem:[%s254 + $0x14] sm:$0xf]
        %v785 = vld [vmem:[%s254 + $0x18] sm:$0xf]
        %v786 = vld [vmem:[%s254 + $0x1c] sm:$0xf]
        %v787 = vld [vmem:[%s254 + $0x20] sm:$0xf]
        %v788 = vld [vmem:[%s254 + $0x24] sm:$0xf]
        %v789 = vld [vmem:[%s254 + $0x28] sm:$0xf]
        %v790 = vld [vmem:[%s254 + $0x2c] sm:$0xf]
        %v791 = vld [vmem:[%s254 + $0x30] sm:$0xf]
        %v792 = vld [vmem:[%s254 + $0x34] sm:$0xf]
        %v793 = vld [vmem:[%s254 + $0x38] sm:$0xf]
        %v794 = vld [vmem:[%s254 + $0x3c] sm:$0xf]
        %v795 = vld [vmem:[%s254 + $0x40] sm:$0xf]
        %v796 = vld [vmem:[%s254 + $0x44] sm:$0xf]
        %v797 = vld [vmem:[%s254 + $0x48] sm:$0xf]
        %v798 = vld [vmem:[%s254 + $0x4c] sm:$0xf]
        %v799 = vld [vmem:[%s254 + $0x50] sm:$0xf]
        %v800 = vld [vmem:[%s254 + $0x54] sm:$0xf]
        %v801 = vld [vmem:[%s254 + $0x58] sm:$0xf]
        %v802 = vld [vmem:[%s254 + $0x5c] sm:$0xf]
        %v803 = vld [vmem:[%s254 + $0x60] sm:$0xf]
        %v804 = vld [vmem:[%s254 + $0x64] sm:$0xf]
        %v805 = vld [vmem:[%s254 + $0x68] sm:$0xf]
        %v806 = vld [vmem:[%s254 + $0x6c] sm:$0xf]
        %v807 = vld [vmem:[%s254 + $0x70] sm:$0xf]
        %v808 = vld [vmem:[%s254 + $0x74] sm:$0xf]
        %v809 = vld [vmem:[%s254 + $0x78] sm:$0xf]
        %v810 = vld [vmem:[%s254 + $0x7c] sm:$0xf]
        %v811 = vunpack.c.l.bf16 %v779
        %v812 = vunpack.c.l.bf16 %v780
        %v813 = vunpack.c.l.bf16 %v781
        %v814 = vunpack.c.l.bf16 %v782
        %v815 = vunpack.c.l.bf16 %v783
        %v816 = vunpack.c.l.bf16 %v784
        %v817 = vunpack.c.l.bf16 %v785
        %v818 = vunpack.c.l.bf16 %v786
        %v819 = vunpack.c.l.bf16 %v787
        %v820 = vunpack.c.l.bf16 %v788
        %v821 = vunpack.c.l.bf16 %v789
        %v822 = vunpack.c.l.bf16 %v790
        %v823 = vunpack.c.l.bf16 %v791
        %v824 = vunpack.c.l.bf16 %v792
        %v825 = vunpack.c.l.bf16 %v793
        %v826 = vunpack.c.l.bf16 %v794
        %v827 = vunpack.c.l.bf16 %v795
        %v828 = vunpack.c.l.bf16 %v796
        %v829 = vunpack.c.l.bf16 %v797
        %v830 = vunpack.c.l.bf16 %v798
        %v831 = vunpack.c.l.bf16 %v799
        %v832 = vunpack.c.l.bf16 %v800
        %v833 = vunpack.c.l.bf16 %v801
        %v834 = vunpack.c.l.bf16 %v802
        %v835 = vunpack.c.l.bf16 %v803
        %v836 = vunpack.c.l.bf16 %v804
        %v837 = vunpack.c.l.bf16 %v805
        %v838 = vunpack.c.l.bf16 %v806
        %v839 = vunpack.c.l.bf16 %v807
        %v840 = vunpack.c.l.bf16 %v808
        %v841 = vunpack.c.l.bf16 %v809
        %v842 = vunpack.c.l.bf16 %v810
        %v875 = vunpack.c.l.b16 %v779
        %v876 = vunpack.c.l.b16 %v780
        %v877 = vunpack.c.l.b16 %v781
        %v878 = vunpack.c.l.b16 %v782
        %v879 = vunpack.c.l.b16 %v783
        %v880 = vunpack.c.l.b16 %v784
        %v881 = vunpack.c.l.b16 %v785
        %v882 = vunpack.c.l.b16 %v786
        %v883 = vunpack.c.l.b16 %v787
        %v884 = vunpack.c.l.b16 %v788
        %v885 = vunpack.c.l.b16 %v789
        %v886 = vunpack.c.l.b16 %v790
        %v887 = vunpack.c.l.b16 %v791
        %v888 = vunpack.c.l.b16 %v792
        %v889 = vunpack.c.l.b16 %v793
        %v890 = vunpack.c.l.b16 %v794
        %v891 = vunpack.c.l.b16 %v795
        %v892 = vunpack.c.l.b16 %v796
        %v893 = vunpack.c.l.b16 %v797
        %v894 = vunpack.c.l.b16 %v798
        %v895 = vunpack.c.l.b16 %v799
        %v896 = vunpack.c.l.b16 %v800
        %v897 = vunpack.c.l.b16 %v801
        %v898 = vunpack.c.l.b16 %v802
        %v899 = vunpack.c.l.b16 %v803
        %v900 = vunpack.c.l.b16 %v804
        %v901 = vunpack.c.l.b16 %v805
        %v902 = vunpack.c.l.b16 %v806
        %v903 = vunpack.c.l.b16 %v807
        %v904 = vunpack.c.l.b16 %v808
        %v905 = vunpack.c.l.b16 %v809
        %v906 = vunpack.c.l.b16 %v810
        %v907 = vpack.c.b16 %v876, %v875
        %v908 = vpack.c.b16 %v878, %v877
        %v909 = vpack.c.b16 %v880, %v879
        %v910 = vpack.c.b16 %v882, %v881
        %v911 = vpack.c.b16 %v884, %v883
        %v912 = vpack.c.b16 %v886, %v885
        %v913 = vpack.c.b16 %v888, %v887
        %v914 = vpack.c.b16 %v890, %v889
        %v915 = vpack.c.b16 %v892, %v891
        %v916 = vpack.c.b16 %v894, %v893
        %v917 = vpack.c.b16 %v896, %v895
        %v918 = vpack.c.b16 %v898, %v897
        %v919 = vpack.c.b16 %v900, %v899
        %v920 = vpack.c.b16 %v902, %v901
        %v921 = vpack.c.b16 %v904, %v903
        %v922 = vpack.c.b16 %v906, %v905
        %939 = vst [vmem:[#allocation2 + $0x8] sm:$0xff] %v907
        %940 = vst [vmem:[#allocation2 + $0x20] sm:$0xff] %v908
        %941 = vst [vmem:[#allocation2 + $0x38] sm:$0xff] %v909
        %942 = vst [vmem:[#allocation2 + $0x50] sm:$0xff] %v910
        %943 = vst [vmem:[#allocation2 + $0x68] sm:$0xff] %v911
        %944 = vst [vmem:[#allocation2 + $0x80] sm:$0xff] %v912
        %945 = vst [vmem:[#allocation2 + $0x98] sm:$0xff] %v913
        %946 = vst [vmem:[#allocation2 + $0xb0] sm:$0xff] %v914
        %947 = vst [vmem:[#allocation2 + $0xc8] sm:$0xff] %v915
        %948 = vst [vmem:[#allocation2 + $0xe0] sm:$0xff] %v916
        %949 = vst [vmem:[#allocation2 + $0xf8] sm:$0xff] %v917
        %950 = vst [vmem:[#allocation2 + $0x110] sm:$0xff] %v918
        %951 = vst [vmem:[#allocation2 + $0x128] sm:$0xff] %v919
        %952 = vst [vmem:[#allocation2 + $0x140] sm:$0xff] %v920
        %953 = vst [vmem:[#allocation2 + $0x158] sm:$0xff] %v921
        %954 = vst [vmem:[#allocation2 + $0x170] sm:$0xff] %v922
        %v955 = vrot.slane %v811, 7
        %v956 = vrot.slane %v812, 7
        %v957 = vrot.slane %v813, 7
        %v958 = vrot.slane %v814, 7
        %v959 = vrot.slane %v815, 7
        %v960 = vrot.slane %v816, 7
        %v961 = vrot.slane %v817, 7
        %v962 = vrot.slane %v818, 7
        %v963 = vrot.slane %v819, 7
        %v964 = vrot.slane %v820, 7
        %v965 = vrot.slane %v821, 7
        %v966 = vrot.slane %v822, 7
        %v967 = vrot.slane %v823, 7
        %v968 = vrot.slane %v824, 7
        %v969 = vrot.slane %v825, 7
        %v970 = vrot.slane %v826, 7
        %v971 = vrot.slane %v827, 7
        %v972 = vrot.slane %v828, 7
        %v973 = vrot.slane %v829, 7
        %v974 = vrot.slane %v830, 7
        %v975 = vrot.slane %v831, 7
        %v976 = vrot.slane %v832, 7
        %v977 = vrot.slane %v833, 7
        %v978 = vrot.slane %v834, 7
        %v979 = vrot.slane %v835, 7
        %v980 = vrot.slane %v836, 7
        %v981 = vrot.slane %v837, 7
        %v982 = vrot.slane %v838, 7
        %v983 = vrot.slane %v839, 7
        %v984 = vrot.slane %v840, 7
        %v985 = vrot.slane %v841, 7
        %v986 = vrot.slane %v842, 7
        %vm987 = vcmp.lt.s32.totalorder %v299, 1
        %v988 = vsel %vm987, %v985, %v986
        %v989 = vsel %vm987, %v984, %v985
        %v990 = vsel %vm987, %v983, %v984
        %v991 = vsel %vm987, %v982, %v983
        %v992 = vsel %vm987, %v981, %v982
        %v993 = vsel %vm987, %v980, %v981
        %v994 = vsel %vm987, %v979, %v980
        %v995 = vsel %vm987, %v978, %v979
        %v996 = vsel %vm987, %v977, %v978
        %v997 = vsel %vm987, %v976, %v977
        %v998 = vsel %vm987, %v975, %v976
        %v999 = vsel %vm987, %v974, %v975
        %v1000 = vsel %vm987, %v973, %v974
        %v1001 = vsel %vm987, %v972, %v973
        %v1002 = vsel %vm987, %v971, %v972
        %v1003 = vsel %vm987, %v970, %v971
        %v1004 = vsel %vm987, %v969, %v970
        %v1005 = vsel %vm987, %v968, %v969
        %v1006 = vsel %vm987, %v967, %v968
        %v1007 = vsel %vm987, %v966, %v967
        %v1008 = vsel %vm987, %v965, %v966
        %v1009 = vsel %vm987, %v964, %v965
        %v1010 = vsel %vm987, %v963, %v964
        %v1011 = vsel %vm987, %v962, %v963
        %v1012 = vsel %vm987, %v961, %v962
        %v1013 = vsel %vm987, %v960, %v961
        %v1014 = vsel %vm987, %v959, %v960
        %v1015 = vsel %vm987, %v958, %v959
        %v1016 = vsel %vm987, %v957, %v958
        %v1017 = vsel %vm987, %v956, %v957
        %v1018 = vsel %vm987, %v955, %v956
        %v1019 = vsel %vm987, %v986, %v955
        %v1020 = vsel %vm715, 1, 0
        %v1021 = vsel %vm716, 1, 0
        %v1022 = vsel %vm717, 1, 0
        %v1023 = vsel %vm718, 1, 0
        %v1024 = vsel %vm719, 1, 0
        %v1025 = vsel %vm720, 1, 0
        %v1026 = vsel %vm721, 1, 0
        %v1027 = vsel %vm722, 1, 0
        %v1028 = vsel %vm723, 1, 0
        %v1029 = vsel %vm724, 1, 0
        %v1030 = vsel %vm725, 1, 0
        %v1031 = vsel %vm726, 1, 0
        %v1032 = vsel %vm727, 1, 0
        %v1033 = vsel %vm728, 1, 0
        %v1034 = vsel %vm729, 1, 0
        %v1035 = vsel %vm730, 1, 0
        %v1036 = vsel %vm731, 1, 0
        %v1037 = vsel %vm732, 1, 0
        %v1038 = vsel %vm733, 1, 0
        %v1039 = vsel %vm734, 1, 0
        %v1040 = vsel %vm735, 1, 0
        %v1041 = vsel %vm736, 1, 0
        %v1042 = vsel %vm737, 1, 0
        %v1043 = vsel %vm738, 1, 0
        %v1044 = vsel %vm739, 1, 0
        %v1045 = vsel %vm740, 1, 0
        %v1046 = vsel %vm741, 1, 0
        %v1047 = vsel %vm742, 1, 0
        %v1048 = vsel %vm743, 1, 0
        %v1049 = vsel %vm744, 1, 0
        %v1050 = vsel %vm745, 1, 0
        %v1051 = vsel %vm746, 1, 0
        %vm1052 = vcmp.eq.s32.totalorder %v1020, 1
        %vm1053 = vcmp.eq.s32.totalorder %v1021, 1
        %vm1054 = vcmp.eq.s32.totalorder %v1022, 1
        %vm1055 = vcmp.eq.s32.totalorder %v1023, 1
        %vm1056 = vcmp.eq.s32.totalorder %v1024, 1
        %vm1057 = vcmp.eq.s32.totalorder %v1025, 1
        %vm1058 = vcmp.eq.s32.totalorder %v1026, 1
        %vm1059 = vcmp.eq.s32.totalorder %v1027, 1
        %vm1060 = vcmp.eq.s32.totalorder %v1028, 1
        %vm1061 = vcmp.eq.s32.totalorder %v1029, 1
        %vm1062 = vcmp.eq.s32.totalorder %v1030, 1
        %vm1063 = vcmp.eq.s32.totalorder %v1031, 1
        %vm1064 = vcmp.eq.s32.totalorder %v1032, 1
        %vm1065 = vcmp.eq.s32.totalorder %v1033, 1
        %vm1066 = vcmp.eq.s32.totalorder %v1034, 1
        %vm1067 = vcmp.eq.s32.totalorder %v1035, 1
        %vm1068 = vcmp.eq.s32.totalorder %v1036, 1
        %vm1069 = vcmp.eq.s32.totalorder %v1037, 1
        %vm1070 = vcmp.eq.s32.totalorder %v1038, 1
        %vm1071 = vcmp.eq.s32.totalorder %v1039, 1
        %vm1072 = vcmp.eq.s32.totalorder %v1040, 1
        %vm1073 = vcmp.eq.s32.totalorder %v1041, 1
        %vm1074 = vcmp.eq.s32.totalorder %v1042, 1
        %vm1075 = vcmp.eq.s32.totalorder %v1043, 1
        %vm1076 = vcmp.eq.s32.totalorder %v1044, 1
        %vm1077 = vcmp.eq.s32.totalorder %v1045, 1
        %vm1078 = vcmp.eq.s32.totalorder %v1046, 1
        %vm1079 = vcmp.eq.s32.totalorder %v1047, 1
        %vm1080 = vcmp.eq.s32.totalorder %v1048, 1
        %vm1081 = vcmp.eq.s32.totalorder %v1049, 1
        %vm1082 = vcmp.eq.s32.totalorder %v1050, 1
        %vm1083 = vcmp.eq.s32.totalorder %v1051, 1
        %v1084 = vsel %vm1052, %v1019, 0.0
        %v1085 = vsel %vm1053, %v1018, 0.0
        %v1086 = vsel %vm1054, %v1017, 0.0
        %v1087 = vsel %vm1055, %v1016, 0.0
        %v1088 = vsel %vm1056, %v1015, 0.0
        %v1089 = vsel %vm1057, %v1014, 0.0
        %v1090 = vsel %vm1058, %v1013, 0.0
        %v1091 = vsel %vm1059, %v1012, 0.0
        %v1092 = vsel %vm1060, %v1011, 0.0
        %v1093 = vsel %vm1061, %v1010, 0.0
        %v1094 = vsel %vm1062, %v1009, 0.0
        %v1095 = vsel %vm1063, %v1008, 0.0
        %v1096 = vsel %vm1064, %v1007, 0.0
        %v1097 = vsel %vm1065, %v1006, 0.0
        %v1098 = vsel %vm1066, %v1005, 0.0
        %v1099 = vsel %vm1067, %v1004, 0.0
        %v1100 = vsel %vm1068, %v1003, 0.0
        %v1101 = vsel %vm1069, %v1002, 0.0
        %v1102 = vsel %vm1070, %v1001, 0.0
        %v1103 = vsel %vm1071, %v1000, 0.0
        %v1104 = vsel %vm1072, %v999, 0.0
        %v1105 = vsel %vm1073, %v998, 0.0
        %v1106 = vsel %vm1074, %v997, 0.0
        %v1107 = vsel %vm1075, %v996, 0.0
        %v1108 = vsel %vm1076, %v995, 0.0
        %v1109 = vsel %vm1077, %v994, 0.0
        %v1110 = vsel %vm1078, %v993, 0.0
        %v1111 = vsel %vm1079, %v992, 0.0
        %v1112 = vsel %vm1080, %v991, 0.0
        %v1113 = vsel %vm1081, %v990, 0.0
        %v1114 = vsel %vm1082, %v989, 0.0
        %v1115 = vsel %vm1083, %v988, 0.0
        %v1116 = vpack.c.bf16 %v1085, %v1084
        %v1117 = vpack.c.bf16 %v1087, %v1086
        %v1118 = vpack.c.bf16 %v1089, %v1088
        %v1119 = vpack.c.bf16 %v1091, %v1090
        %v1120 = vpack.c.bf16 %v1093, %v1092
        %v1121 = vpack.c.bf16 %v1095, %v1094
        %v1122 = vpack.c.bf16 %v1097, %v1096
        %v1123 = vpack.c.bf16 %v1099, %v1098
        %v1124 = vpack.c.bf16 %v1101, %v1100
        %v1125 = vpack.c.bf16 %v1103, %v1102
        %v1126 = vpack.c.bf16 %v1105, %v1104
        %v1127 = vpack.c.bf16 %v1107, %v1106
        %v1128 = vpack.c.bf16 %v1109, %v1108
        %v1129 = vpack.c.bf16 %v1111, %v1110
        %v1130 = vpack.c.bf16 %v1113, %v1112
        %v1131 = vpack.c.bf16 %v1115, %v1114
        %1132 = vst [vmem:[#allocation2] sm:$0xff] %v1116
        %1133 = vst [vmem:[#allocation2 + $0x18] sm:$0xff] %v1117
        %1134 = vst [vmem:[#allocation2 + $0x30] sm:$0xff] %v1118
        %1135 = vst [vmem:[#allocation2 + $0x48] sm:$0xff] %v1119
        %1136 = vst [vmem:[#allocation2 + $0x60] sm:$0xff] %v1120
        %1137 = vst [vmem:[#allocation2 + $0x78] sm:$0xff] %v1121
        %1138 = vst [vmem:[#allocation2 + $0x90] sm:$0xff] %v1122
        %1139 = vst [vmem:[#allocation2 + $0xa8] sm:$0xff] %v1123
        %1140 = vst [vmem:[#allocation2 + $0xc0] sm:$0xff] %v1124
        %1141 = vst [vmem:[#allocation2 + $0xd8] sm:$0xff] %v1125
        %1142 = vst [vmem:[#allocation2 + $0xf0] sm:$0xff] %v1126
        %1143 = vst [vmem:[#allocation2 + $0x108] sm:$0xff] %v1127
        %1144 = vst [vmem:[#allocation2 + $0x120] sm:$0xff] %v1128
        %1145 = vst [vmem:[#allocation2 + $0x138] sm:$0xff] %v1129
        %1146 = vst [vmem:[#allocation2 + $0x150] sm:$0xff] %v1130
        %1147 = vst [vmem:[#allocation2 + $0x168] sm:$0xff] %v1131
        %v1148 = vrot.slane %v811, 1
        %v1149 = vrot.slane %v812, 1
        %v1150 = vrot.slane %v813, 1
        %v1151 = vrot.slane %v814, 1
        %v1152 = vrot.slane %v815, 1
        %v1153 = vrot.slane %v816, 1
        %v1154 = vrot.slane %v817, 1
        %v1155 = vrot.slane %v818, 1
        %v1156 = vrot.slane %v819, 1
        %v1157 = vrot.slane %v820, 1
        %v1158 = vrot.slane %v821, 1
        %v1159 = vrot.slane %v822, 1
        %v1160 = vrot.slane %v823, 1
        %v1161 = vrot.slane %v824, 1
        %v1162 = vrot.slane %v825, 1
        %v1163 = vrot.slane %v826, 1
        %v1164 = vrot.slane %v827, 1
        %v1165 = vrot.slane %v828, 1
        %v1166 = vrot.slane %v829, 1
        %v1167 = vrot.slane %v830, 1
        %v1168 = vrot.slane %v831, 1
        %v1169 = vrot.slane %v832, 1
        %v1170 = vrot.slane %v833, 1
        %v1171 = vrot.slane %v834, 1
        %v1172 = vrot.slane %v835, 1
        %v1173 = vrot.slane %v836, 1
        %v1174 = vrot.slane %v837, 1
        %v1175 = vrot.slane %v838, 1
        %v1176 = vrot.slane %v839, 1
        %v1177 = vrot.slane %v840, 1
        %v1178 = vrot.slane %v841, 1
        %v1179 = vrot.slane %v842, 1
        %vm1180 = vcmp.lt.s32.totalorder %v299, 7
        %v1181 = vsel %vm1180, %v1178, %v1179
        %v1182 = vsel %vm1180, %v1177, %v1178
        %v1183 = vsel %vm1180, %v1176, %v1177
        %v1184 = vsel %vm1180, %v1175, %v1176
        %v1185 = vsel %vm1180, %v1174, %v1175
        %v1186 = vsel %vm1180, %v1173, %v1174
        %v1187 = vsel %vm1180, %v1172, %v1173
        %v1188 = vsel %vm1180, %v1171, %v1172
        %v1189 = vsel %vm1180, %v1170, %v1171
        %v1190 = vsel %vm1180, %v1169, %v1170
        %v1191 = vsel %vm1180, %v1168, %v1169
        %v1192 = vsel %vm1180, %v1167, %v1168
        %v1193 = vsel %vm1180, %v1166, %v1167
        %v1194 = vsel %vm1180, %v1165, %v1166
        %v1195 = vsel %vm1180, %v1164, %v1165
        %v1196 = vsel %vm1180, %v1163, %v1164
        %v1197 = vsel %vm1180, %v1162, %v1163
        %v1198 = vsel %vm1180, %v1161, %v1162
        %v1199 = vsel %vm1180, %v1160, %v1161
        %v1200 = vsel %vm1180, %v1159, %v1160
        %v1201 = vsel %vm1180, %v1158, %v1159
        %v1202 = vsel %vm1180, %v1157, %v1158
        %v1203 = vsel %vm1180, %v1156, %v1157
        %v1204 = vsel %vm1180, %v1155, %v1156
        %v1205 = vsel %vm1180, %v1154, %v1155
        %v1206 = vsel %vm1180, %v1153, %v1154
        %v1207 = vsel %vm1180, %v1152, %v1153
        %v1208 = vsel %vm1180, %v1151, %v1152
        %v1209 = vsel %vm1180, %v1150, %v1151
        %v1210 = vsel %vm1180, %v1149, %v1150
        %v1211 = vsel %vm1180, %v1148, %v1149
        %v1212 = vsel %vm1180, %v1179, %v1148
        %v1213 = vsel %vm747, 1, 0
        %v1214 = vsel %vm748, 1, 0
        %v1215 = vsel %vm749, 1, 0
        %v1216 = vsel %vm750, 1, 0
        %v1217 = vsel %vm751, 1, 0
        %v1218 = vsel %vm752, 1, 0
        %v1219 = vsel %vm753, 1, 0
        %v1220 = vsel %vm754, 1, 0
        %v1221 = vsel %vm755, 1, 0
        %v1222 = vsel %vm756, 1, 0
        %v1223 = vsel %vm757, 1, 0
        %v1224 = vsel %vm758, 1, 0
        %v1225 = vsel %vm759, 1, 0
        %v1226 = vsel %vm760, 1, 0
        %v1227 = vsel %vm761, 1, 0
        %v1228 = vsel %vm762, 1, 0
        %v1229 = vsel %vm763, 1, 0
        %v1230 = vsel %vm764, 1, 0
        %v1231 = vsel %vm765, 1, 0
        %v1232 = vsel %vm766, 1, 0
        %v1233 = vsel %vm767, 1, 0
        %v1234 = vsel %vm768, 1, 0
        %v1235 = vsel %vm769, 1, 0
        %v1236 = vsel %vm770, 1, 0
        %v1237 = vsel %vm771, 1, 0
        %v1238 = vsel %vm772, 1, 0
        %v1239 = vsel %vm773, 1, 0
        %v1240 = vsel %vm774, 1, 0
        %v1241 = vsel %vm775, 1, 0
        %v1242 = vsel %vm776, 1, 0
        %v1243 = vsel %vm777, 1, 0
        %v1244 = vsel %vm778, 1, 0
        %vm1245 = vcmp.eq.s32.totalorder %v1213, 1
        %vm1246 = vcmp.eq.s32.totalorder %v1214, 1
        %vm1247 = vcmp.eq.s32.totalorder %v1215, 1
        %vm1248 = vcmp.eq.s32.totalorder %v1216, 1
        %vm1249 = vcmp.eq.s32.totalorder %v1217, 1
        %vm1250 = vcmp.eq.s32.totalorder %v1218, 1
        %vm1251 = vcmp.eq.s32.totalorder %v1219, 1
        %vm1252 = vcmp.eq.s32.totalorder %v1220, 1
        %vm1253 = vcmp.eq.s32.totalorder %v1221, 1
        %vm1254 = vcmp.eq.s32.totalorder %v1222, 1
        %vm1255 = vcmp.eq.s32.totalorder %v1223, 1
        %vm1256 = vcmp.eq.s32.totalorder %v1224, 1
        %vm1257 = vcmp.eq.s32.totalorder %v1225, 1
        %vm1258 = vcmp.eq.s32.totalorder %v1226, 1
        %vm1259 = vcmp.eq.s32.totalorder %v1227, 1
        %vm1260 = vcmp.eq.s32.totalorder %v1228, 1
        %vm1261 = vcmp.eq.s32.totalorder %v1229, 1
        %vm1262 = vcmp.eq.s32.totalorder %v1230, 1
        %vm1263 = vcmp.eq.s32.totalorder %v1231, 1
        %vm1264 = vcmp.eq.s32.totalorder %v1232, 1
        %vm1265 = vcmp.eq.s32.totalorder %v1233, 1
        %vm1266 = vcmp.eq.s32.totalorder %v1234, 1
        %vm1267 = vcmp.eq.s32.totalorder %v1235, 1
        %vm1268 = vcmp.eq.s32.totalorder %v1236, 1
        %vm1269 = vcmp.eq.s32.totalorder %v1237, 1
        %vm1270 = vcmp.eq.s32.totalorder %v1238, 1
        %vm1271 = vcmp.eq.s32.totalorder %v1239, 1
        %vm1272 = vcmp.eq.s32.totalorder %v1240, 1
        %vm1273 = vcmp.eq.s32.totalorder %v1241, 1
        %vm1274 = vcmp.eq.s32.totalorder %v1242, 1
        %vm1275 = vcmp.eq.s32.totalorder %v1243, 1
        %vm1276 = vcmp.eq.s32.totalorder %v1244, 1
        %v1277 = vsel %vm1245, %v1211, 0.0
        %v1278 = vsel %vm1246, %v1210, 0.0
        %v1279 = vsel %vm1247, %v1209, 0.0
        %v1280 = vsel %vm1248, %v1208, 0.0
        %v1281 = vsel %vm1249, %v1207, 0.0
        %v1282 = vsel %vm1250, %v1206, 0.0
        %v1283 = vsel %vm1251, %v1205, 0.0
        %v1284 = vsel %vm1252, %v1204, 0.0
        %v1285 = vsel %vm1253, %v1203, 0.0
        %v1286 = vsel %vm1254, %v1202, 0.0
        %v1287 = vsel %vm1255, %v1201, 0.0
        %v1288 = vsel %vm1256, %v1200, 0.0
        %v1289 = vsel %vm1257, %v1199, 0.0
        %v1290 = vsel %vm1258, %v1198, 0.0
        %v1291 = vsel %vm1259, %v1197, 0.0
        %v1292 = vsel %vm1260, %v1196, 0.0
        %v1293 = vsel %vm1261, %v1195, 0.0
        %v1294 = vsel %vm1262, %v1194, 0.0
        %v1295 = vsel %vm1263, %v1193, 0.0
        %v1296 = vsel %vm1264, %v1192, 0.0
        %v1297 = vsel %vm1265, %v1191, 0.0
        %v1298 = vsel %vm1266, %v1190, 0.0
        %v1299 = vsel %vm1267, %v1189, 0.0
        %v1300 = vsel %vm1268, %v1188, 0.0
        %v1301 = vsel %vm1269, %v1187, 0.0
        %v1302 = vsel %vm1270, %v1186, 0.0
        %v1303 = vsel %vm1271, %v1185, 0.0
        %v1304 = vsel %vm1272, %v1184, 0.0
        %v1305 = vsel %vm1273, %v1183, 0.0
        %v1306 = vsel %vm1274, %v1182, 0.0
        %v1307 = vsel %vm1275, %v1181, 0.0
        %v1308 = vsel %vm1276, %v1212, 0.0
        %v1309 = vpack.c.bf16 %v1278, %v1277
        %v1310 = vpack.c.bf16 %v1280, %v1279
        %v1311 = vpack.c.bf16 %v1282, %v1281
        %v1312 = vpack.c.bf16 %v1284, %v1283
        %v1313 = vpack.c.bf16 %v1286, %v1285
        %v1314 = vpack.c.bf16 %v1288, %v1287
        %v1315 = vpack.c.bf16 %v1290, %v1289
        %v1316 = vpack.c.bf16 %v1292, %v1291
        %v1317 = vpack.c.bf16 %v1294, %v1293
        %v1318 = vpack.c.bf16 %v1296, %v1295
        %v1319 = vpack.c.bf16 %v1298, %v1297
        %v1320 = vpack.c.bf16 %v1300, %v1299
        %v1321 = vpack.c.bf16 %v1302, %v1301
        %v1322 = vpack.c.bf16 %v1304, %v1303
        %v1323 = vpack.c.bf16 %v1306, %v1305
        %v1324 = vpack.c.bf16 %v1308, %v1307
        %1325 = vst [vmem:[#allocation2 + $0x10] sm:$0xff] %v1309
        %1326 = vst [vmem:[#allocation2 + $0x28] sm:$0xff] %v1310
        %1327 = vst [vmem:[#allocation2 + $0x40] sm:$0xff] %v1311
        %1328 = vst [vmem:[#allocation2 + $0x58] sm:$0xff] %v1312
        %1329 = vst [vmem:[#allocation2 + $0x70] sm:$0xff] %v1313
        %1330 = vst [vmem:[#allocation2 + $0x88] sm:$0xff] %v1314
        %1331 = vst [vmem:[#allocation2 + $0xa0] sm:$0xff] %v1315
        %1332 = vst [vmem:[#allocation2 + $0xb8] sm:$0xff] %v1316
        %1333 = vst [vmem:[#allocation2 + $0xd0] sm:$0xff] %v1317
        %1334 = vst [vmem:[#allocation2 + $0xe8] sm:$0xff] %v1318
        %1335 = vst [vmem:[#allocation2 + $0x100] sm:$0xff] %v1319
        %1336 = vst [vmem:[#allocation2 + $0x118] sm:$0xff] %v1320
        %1337 = vst [vmem:[#allocation2 + $0x130] sm:$0xff] %v1321
        %1338 = vst [vmem:[#allocation2 + $0x148] sm:$0xff] %v1322
        %1339 = vst [vmem:[#allocation2 + $0x160] sm:$0xff] %v1323
        %1340 = vst [vmem:[#allocation2 + $0x178] sm:$0xff] %v1324
        %v1341 = vld [vmem:[#allocation2] sm:$0xff]
        %v1342 = vld [vmem:[#allocation2 + $0x8] sm:$0xff]
        %v1343 = vld [vmem:[#allocation2 + $0x10] sm:$0xff]
        %v1344 = vld [vmem:[#allocation2 + $0x18] sm:$0xff]
        %v1345 = vld [vmem:[#allocation2 + $0x20] sm:$0xff]
        %v1346 = vld [vmem:[#allocation2 + $0x28] sm:$0xff]
        %v1347 = vld [vmem:[#allocation2 + $0x30] sm:$0xff]
        %v1348 = vld [vmem:[#allocation2 + $0x38] sm:$0xff]
        %v1349 = vld [vmem:[#allocation2 + $0x40] sm:$0xff]
        %v1350 = vld [vmem:[#allocation2 + $0x48] sm:$0xff]
        %v1351 = vld [vmem:[#allocation2 + $0x50] sm:$0xff]
        %v1352 = vld [vmem:[#allocation2 + $0x58] sm:$0xff]
        %v1353 = vld [vmem:[#allocation2 + $0x60] sm:$0xff]
        %v1354 = vld [vmem:[#allocation2 + $0x68] sm:$0xff]
        %v1355 = vld [vmem:[#allocation2 + $0x70] sm:$0xff]
        %v1356 = vld [vmem:[#allocation2 + $0x78] sm:$0xff]
        %v1357 = vld [vmem:[#allocation2 + $0x80] sm:$0xff]
        %v1358 = vld [vmem:[#allocation2 + $0x88] sm:$0xff]
        %v1359 = vld [vmem:[#allocation2 + $0x90] sm:$0xff]
        %v1360 = vld [vmem:[#allocation2 + $0x98] sm:$0xff]
        %v1361 = vld [vmem:[#allocation2 + $0xa0] sm:$0xff]
        %v1362 = vld [vmem:[#allocation2 + $0xa8] sm:$0xff]
        %v1363 = vld [vmem:[#allocation2 + $0xb0] sm:$0xff]
        %v1364 = vld [vmem:[#allocation2 + $0xb8] sm:$0xff]
        %v1365 = vld [vmem:[#allocation2 + $0xc0] sm:$0xff]
        %v1366 = vld [vmem:[#allocation2 + $0xc8] sm:$0xff]
        %v1367 = vld [vmem:[#allocation2 + $0xd0] sm:$0xff]
        %v1368 = vld [vmem:[#allocation2 + $0xd8] sm:$0xff]
        %v1369 = vld [vmem:[#allocation2 + $0xe0] sm:$0xff]
        %v1370 = vld [vmem:[#allocation2 + $0xe8] sm:$0xff]
        %v1371 = vld [vmem:[#allocation2 + $0xf0] sm:$0xff]
        %v1372 = vld [vmem:[#allocation2 + $0xf8] sm:$0xff]
        %v1373 = vld [vmem:[#allocation2 + $0x100] sm:$0xff]
        %v1374 = vld [vmem:[#allocation2 + $0x108] sm:$0xff]
        %v1375 = vld [vmem:[#allocation2 + $0x110] sm:$0xff]
        %v1376 = vld [vmem:[#allocation2 + $0x118] sm:$0xff]
        %v1377 = vld [vmem:[#allocation2 + $0x120] sm:$0xff]
        %v1378 = vld [vmem:[#allocation2 + $0x128] sm:$0xff]
        %v1379 = vld [vmem:[#allocation2 + $0x130] sm:$0xff]
        %v1380 = vld [vmem:[#allocation2 + $0x138] sm:$0xff]
        %v1381 = vld [vmem:[#allocation2 + $0x140] sm:$0xff]
        %v1382 = vld [vmem:[#allocation2 + $0x148] sm:$0xff]
        %v1383 = vld [vmem:[#allocation2 + $0x150] sm:$0xff]
        %v1384 = vld [vmem:[#allocation2 + $0x158] sm:$0xff]
        %v1385 = vld [vmem:[#allocation2 + $0x160] sm:$0xff]
        %v1386 = vld [vmem:[#allocation2 + $0x168] sm:$0xff]
        %v1387 = vld [vmem:[#allocation2 + $0x170] sm:$0xff]
        %v1388 = vld [vmem:[#allocation2 + $0x178] sm:$0xff]
        %s1389 = scalar_lea.vmem [#allocation7], 192
        %v1390 = vld [vmem:[%s1389] sm:$0xf]
        %v1391 = vld [vmem:[%s1389 + $0x4] sm:$0xf]
        %v1392 = vld [vmem:[%s1389 + $0x8] sm:$0xf]
        %v1393 = vld [vmem:[%s1389 + $0xc] sm:$0xf]
        %v1394 = vld [vmem:[%s1389 + $0x10] sm:$0xf]
        %v1395 = vld [vmem:[%s1389 + $0x14] sm:$0xf]
        %v1396 = vld [vmem:[%s1389 + $0x18] sm:$0xf]
        %v1397 = vld [vmem:[%s1389 + $0x1c] sm:$0xf]
        %v1398 = vld [vmem:[%s1389 + $0x20] sm:$0xf]
        %v1399 = vld [vmem:[%s1389 + $0x24] sm:$0xf]
        %v1400 = vld [vmem:[%s1389 + $0x28] sm:$0xf]
        %v1401 = vld [vmem:[%s1389 + $0x2c] sm:$0xf]
        %v1402 = vld [vmem:[%s1389 + $0x30] sm:$0xf]
        %v1403 = vld [vmem:[%s1389 + $0x34] sm:$0xf]
        %v1404 = vld [vmem:[%s1389 + $0x38] sm:$0xf]
        %v1405 = vld [vmem:[%s1389 + $0x3c] sm:$0xf]
        %v1406 = vld [vmem:[%s1389 + $0x40] sm:$0xf]
        %v1407 = vld [vmem:[%s1389 + $0x44] sm:$0xf]
        %v1408 = vld [vmem:[%s1389 + $0x48] sm:$0xf]
        %v1409 = vld [vmem:[%s1389 + $0x4c] sm:$0xf]
        %v1410 = vld [vmem:[%s1389 + $0x50] sm:$0xf]
        %v1411 = vld [vmem:[%s1389 + $0x54] sm:$0xf]
        %v1412 = vld [vmem:[%s1389 + $0x58] sm:$0xf]
        %v1413 = vld [vmem:[%s1389 + $0x5c] sm:$0xf]
        %v1414 = vld [vmem:[%s1389 + $0x60] sm:$0xf]
        %v1415 = vld [vmem:[%s1389 + $0x64] sm:$0xf]
        %v1416 = vld [vmem:[%s1389 + $0x68] sm:$0xf]
        %v1417 = vld [vmem:[%s1389 + $0x6c] sm:$0xf]
        %v1418 = vld [vmem:[%s1389 + $0x70] sm:$0xf]
        %v1419 = vld [vmem:[%s1389 + $0x74] sm:$0xf]
        %v1420 = vld [vmem:[%s1389 + $0x78] sm:$0xf]
        %v1421 = vld [vmem:[%s1389 + $0x7c] sm:$0xf]
        %v1422 = vld [vmem:[%s1389 + $0x80] sm:$0xf]
        %v1423 = vld [vmem:[%s1389 + $0x84] sm:$0xf]
        %v1424 = vld [vmem:[%s1389 + $0x88] sm:$0xf]
        %v1425 = vld [vmem:[%s1389 + $0x8c] sm:$0xf]
        %v1426 = vld [vmem:[%s1389 + $0x90] sm:$0xf]
        %v1427 = vld [vmem:[%s1389 + $0x94] sm:$0xf]
        %v1428 = vld [vmem:[%s1389 + $0x98] sm:$0xf]
        %v1429 = vld [vmem:[%s1389 + $0x9c] sm:$0xf]
        %v1430 = vld [vmem:[%s1389 + $0xa0] sm:$0xf]
        %v1431 = vld [vmem:[%s1389 + $0xa4] sm:$0xf]
        %v1432 = vld [vmem:[%s1389 + $0xa8] sm:$0xf]
        %v1433 = vld [vmem:[%s1389 + $0xac] sm:$0xf]
        %v1434 = vld [vmem:[%s1389 + $0xb0] sm:$0xf]
        %v1435 = vld [vmem:[%s1389 + $0xb4] sm:$0xf]
        %v1436 = vld [vmem:[%s1389 + $0xb8] sm:$0xf]
        %v1437 = vld [vmem:[%s1389 + $0xbc] sm:$0xf]
        %v1486 = vunpack.c.l.b16 %v1390
        %v1487 = vunpack.c.l.b16 %v1391
        %v1488 = vunpack.c.l.b16 %v1392
        %v1489 = vunpack.c.l.b16 %v1393
        %v1490 = vunpack.c.l.b16 %v1394
        %v1491 = vunpack.c.l.b16 %v1395
        %v1492 = vunpack.c.l.b16 %v1396
        %v1493 = vunpack.c.l.b16 %v1397
        %v1494 = vunpack.c.l.b16 %v1398
        %v1495 = vunpack.c.l.b16 %v1399
        %v1496 = vunpack.c.l.b16 %v1400
        %v1497 = vunpack.c.l.b16 %v1401
        %v1498 = vunpack.c.l.b16 %v1402
        %v1499 = vunpack.c.l.b16 %v1403
        %v1500 = vunpack.c.l.b16 %v1404
        %v1501 = vunpack.c.l.b16 %v1405
        %v1502 = vunpack.c.l.b16 %v1406
        %v1503 = vunpack.c.l.b16 %v1407
        %v1504 = vunpack.c.l.b16 %v1408
        %v1505 = vunpack.c.l.b16 %v1409
        %v1506 = vunpack.c.l.b16 %v1410
        %v1507 = vunpack.c.l.b16 %v1411
        %v1508 = vunpack.c.l.b16 %v1412
        %v1509 = vunpack.c.l.b16 %v1413
        %v1510 = vunpack.c.l.b16 %v1414
        %v1511 = vunpack.c.l.b16 %v1415
        %v1512 = vunpack.c.l.b16 %v1416
        %v1513 = vunpack.c.l.b16 %v1417
        %v1514 = vunpack.c.l.b16 %v1418
        %v1515 = vunpack.c.l.b16 %v1419
        %v1516 = vunpack.c.l.b16 %v1420
        %v1517 = vunpack.c.l.b16 %v1421
        %v1518 = vunpack.c.l.b16 %v1422
        %v1519 = vunpack.c.l.b16 %v1423
        %v1520 = vunpack.c.l.b16 %v1424
        %v1521 = vunpack.c.l.b16 %v1425
        %v1522 = vunpack.c.l.b16 %v1426
        %v1523 = vunpack.c.l.b16 %v1427
        %v1524 = vunpack.c.l.b16 %v1428
        %v1525 = vunpack.c.l.b16 %v1429
        %v1526 = vunpack.c.l.b16 %v1430
        %v1527 = vunpack.c.l.b16 %v1431
        %v1528 = vunpack.c.l.b16 %v1432
        %v1529 = vunpack.c.l.b16 %v1433
        %v1530 = vunpack.c.l.b16 %v1434
        %v1531 = vunpack.c.l.b16 %v1435
        %v1532 = vunpack.c.l.b16 %v1436
        %v1533 = vunpack.c.l.b16 %v1437
        %v1534 = vpack.c.b16 %v1487, %v1486
        %v1535 = vpack.c.b16 %v1489, %v1488
        %v1536 = vpack.c.b16 %v1491, %v1490
        %v1537 = vpack.c.b16 %v1493, %v1492
        %v1538 = vpack.c.b16 %v1495, %v1494
        %v1539 = vpack.c.b16 %v1497, %v1496
        %v1540 = vpack.c.b16 %v1499, %v1498
        %v1541 = vpack.c.b16 %v1501, %v1500
        %v1542 = vpack.c.b16 %v1503, %v1502
        %v1543 = vpack.c.b16 %v1505, %v1504
        %v1544 = vpack.c.b16 %v1507, %v1506
        %v1545 = vpack.c.b16 %v1509, %v1508
        %v1546 = vpack.c.b16 %v1511, %v1510
        %v1547 = vpack.c.b16 %v1513, %v1512
        %v1548 = vpack.c.b16 %v1515, %v1514
        %v1549 = vpack.c.b16 %v1517, %v1516
        %v1550 = vpack.c.b16 %v1519, %v1518
        %v1551 = vpack.c.b16 %v1521, %v1520
        %v1552 = vpack.c.b16 %v1523, %v1522
        %v1553 = vpack.c.b16 %v1525, %v1524
        %v1554 = vpack.c.b16 %v1527, %v1526
        %v1555 = vpack.c.b16 %v1529, %v1528
        %v1556 = vpack.c.b16 %v1531, %v1530
        %v1557 = vpack.c.b16 %v1533, %v1532
        %1582 = vmatprep.subr.bf16.mxu0 0
        %1583 = vmatpush1.bf16.msra.mxu0 %v1534
        %1584 = vmatprep.subr.bf16.mxu0 0
        %1585 = vmatpush1.bf16.msra.mxu0 %v1535
        %1586 = vmatprep.subr.bf16.mxu0 0
        %1587 = vmatpush1.bf16.msra.mxu0 %v1536
        %1588 = vmatprep.subr.bf16.mxu0 0
        %1589 = vmatpush1.bf16.msra.mxu0 %v1537
        %1590 = vmatprep.subr.bf16.mxu0 0
        %1591 = vmatpush1.bf16.msra.mxu0 %v1538
        %1592 = vmatprep.subr.bf16.mxu0 0
        %1593 = vmatpush1.bf16.msra.mxu0 %v1539
        %1594 = vmatprep.subr.bf16.mxu0 0
        %1595 = vmatpush1.bf16.msra.mxu0 %v1540
        %1596 = vmatprep.subr.bf16.mxu0 0
        %1597 = vmatpush1.bf16.msra.mxu0 %v1541
        %1598 = vmatprep.subr.bf16.mxu0 0
        %1599 = vmatpush1.bf16.msra.mxu0 %v1542
        %1600 = vmatprep.subr.bf16.mxu0 0
        %1601 = vmatpush1.bf16.msra.mxu0 %v1543
        %1602 = vmatprep.subr.bf16.mxu0 0
        %1603 = vmatpush1.bf16.msra.mxu0 %v1544
        %1604 = vmatprep.subr.bf16.mxu0 0
        %1605 = vmatpush1.bf16.msra.mxu0 %v1545
        %1606 = vmatprep.subr.bf16.mxu0 0
        %1607 = vmatpush1.bf16.msra.mxu0 %v1546
        %1608 = vmatprep.subr.bf16.mxu0 0
        %1609 = vmatpush1.bf16.msra.mxu0 %v1547
        %1610 = vmatprep.subr.bf16.mxu0 0
        %1611 = vmatpush1.bf16.msra.mxu0 %v1548
        %1612 = vmatprep.subr.bf16.mxu0 0
        %1613 = vmatpush1.bf16.msra.mxu0 %v1549
        %1614 = vmatprep.mubr.bf16.mxu0 %v1342
        %1615 = vmatmul.mubr.bf16.gmra.mrb[0].mxu0 %v1341
        %v1616 = vpop.f32.mrb[0].mxu0
        %v1617 = vadd.f32 0.0, %v1616
        %v1618 = vpop.f32.mrb[0].mxu0
        %v1619 = vpop.f32.mrb[0].mxu0
        %v1620 = vadd.f32 0.0, %v1619
        %v1621 = vpop.f32.mrb[0].mxu0
        %1622 = vmatprep.mubr.bf16.mxu0 %v1345
        %1623 = vmatmul.mubr.bf16.gmra.mrb[0].mxu0 %v1344
        %v1624 = vpop.f32.mrb[0].mxu0
        %v1625 = vadd.f32 0.0, %v1624
        %v1626 = vpop.f32.mrb[0].mxu0
        %v1627 = vpop.f32.mrb[0].mxu0
        %v1628 = vadd.f32 0.0, %v1627
        %v1629 = vpop.f32.mrb[0].mxu0
        %1630 = vmatprep.mubr.bf16.mxu0 %v1348
        %1631 = vmatmul.mubr.bf16.gmra.mrb[0].mxu0 %v1347
        %v1632 = vpop.f32.mrb[0].mxu0
        %v1633 = vadd.f32 0.0, %v1632
        %v1634 = vpop.f32.mrb[0].mxu0
        %v1635 = vpop.f32.mrb[0].mxu0
        %v1636 = vadd.f32 0.0, %v1635
        %v1637 = vpop.f32.mrb[0].mxu0
        %1638 = vmatprep.mubr.bf16.mxu0 %v1351
        %1639 = vmatmul.mubr.bf16.gmra.mrb[0].mxu0 %v1350
        %v1640 = vpop.f32.mrb[0].mxu0
        %v1641 = vadd.f32 0.0, %v1640
        %v1642 = vpop.f32.mrb[0].mxu0
        %v1643 = vpop.f32.mrb[0].mxu0
        %v1644 = vadd.f32 0.0, %v1643
        %v1645 = vpop.f32.mrb[0].mxu0
        %1646 = vmatprep.mubr.bf16.mxu0 %v1354
        %1647 = vmatmul.mubr.bf16.gmra.mrb[0].mxu0 %v1353
        %v1648 = vpop.f32.mrb[0].mxu0
        %v1649 = vadd.f32 0.0, %v1648
        %v1650 = vpop.f32.mrb[0].mxu0
        %v1651 = vpop.f32.mrb[0].mxu0
        %v1652 = vadd.f32 0.0, %v1651
        %v1653 = vpop.f32.mrb[0].mxu0
        %1654 = vmatprep.mubr.bf16.mxu0 %v1357
        %1655 = vmatmul.mubr.bf16.gmra.mrb[0].mxu0 %v1356
        %v1656 = vpop.f32.mrb[0].mxu0
        %v1657 = vadd.f32 0.0, %v1656
        %v1658 = vpop.f32.mrb[0].mxu0
        %v1659 = vpop.f32.mrb[0].mxu0
        %v1660 = vadd.f32 0.0, %v1659
        %v1661 = vpop.f32.mrb[0].mxu0
        %1662 = vmatprep.mubr.bf16.mxu0 %v1360
        %1663 = vmatmul.mubr.bf16.gmra.mrb[0].mxu0 %v1359
        %v1664 = vpop.f32.mrb[0].mxu0
        %v1665 = vadd.f32 0.0, %v1664
        %v1666 = vpop.f32.mrb[0].mxu0
        %v1667 = vpop.f32.mrb[0].mxu0
        %v1668 = vadd.f32 0.0, %v1667
        %v1669 = vpop.f32.mrb[0].mxu0
        %1670 = vmatprep.mubr.bf16.mxu0 %v1363
        %1671 = vmatmul.mubr.bf16.gmra.mrb[0].mxu0 %v1362
        %v1672 = vpop.f32.mrb[0].mxu0
        %v1673 = vadd.f32 0.0, %v1672
        %v1674 = vpop.f32.mrb[0].mxu0
        %v1675 = vpop.f32.mrb[0].mxu0
        %v1676 = vadd.f32 0.0, %v1675
        %v1677 = vpop.f32.mrb[0].mxu0
        %1678 = vmatprep.mubr.bf16.mxu0 %v1366
        %1679 = vmatmul.mubr.bf16.gmra.mrb[0].mxu0 %v1365
        %v1680 = vpop.f32.mrb[0].mxu0
        %v1681 = vadd.f32 0.0, %v1680
        %v1682 = vpop.f32.mrb[0].mxu0
        %v1683 = vpop.f32.mrb[0].mxu0
        %v1684 = vadd.f32 0.0, %v1683
        %v1685 = vpop.f32.mrb[0].mxu0
        %1686 = vmatprep.mubr.bf16.mxu0 %v1369
        %1687 = vmatmul.mubr.bf16.gmra.mrb[0].mxu0 %v1368
        %v1688 = vpop.f32.mrb[0].mxu0
        %v1689 = vadd.f32 0.0, %v1688
        %v1690 = vpop.f32.mrb[0].mxu0
        %v1691 = vpop.f32.mrb[0].mxu0
        %v1692 = vadd.f32 0.0, %v1691
        %v1693 = vpop.f32.mrb[0].mxu0
        %1694 = vmatprep.mubr.bf16.mxu0 %v1372
        %1695 = vmatmul.mubr.bf16.gmra.mrb[0].mxu0 %v1371
        %v1696 = vpop.f32.mrb[0].mxu0
        %v1697 = vadd.f32 0.0, %v1696
        %v1698 = vpop.f32.mrb[0].mxu0
        %v1699 = vpop.f32.mrb[0].mxu0
        %v1700 = vadd.f32 0.0, %v1699
        %v1701 = vpop.f32.mrb[0].mxu0
        %1702 = vmatprep.mubr.bf16.mxu0 %v1375
        %1703 = vmatmul.mubr.bf16.gmra.mrb[0].mxu0 %v1374
        %v1704 = vpop.f32.mrb[0].mxu0
        %v1705 = vadd.f32 0.0, %v1704
        %v1706 = vpop.f32.mrb[0].mxu0
        %v1707 = vpop.f32.mrb[0].mxu0
        %v1708 = vadd.f32 0.0, %v1707
        %v1709 = vpop.f32.mrb[0].mxu0
        %1710 = vmatprep.mubr.bf16.mxu0 %v1378
        %1711 = vmatmul.mubr.bf16.gmra.mrb[0].mxu0 %v1377
        %v1712 = vpop.f32.mrb[0].mxu0
        %v1713 = vadd.f32 0.0, %v1712
        %v1714 = vpop.f32.mrb[0].mxu0
        %v1715 = vpop.f32.mrb[0].mxu0
        %v1716 = vadd.f32 0.0, %v1715
        %v1717 = vpop.f32.mrb[0].mxu0
        %1718 = vmatprep.mubr.bf16.mxu0 %v1381
        %1719 = vmatmul.mubr.bf16.gmra.mrb[0].mxu0 %v1380
        %v1720 = vpop.f32.mrb[0].mxu0
        %v1721 = vadd.f32 0.0, %v1720
        %v1722 = vpop.f32.mrb[0].mxu0
        %v1723 = vpop.f32.mrb[0].mxu0
        %v1724 = vadd.f32 0.0, %v1723
        %v1725 = vpop.f32.mrb[0].mxu0
        %1726 = vmatprep.mubr.bf16.mxu0 %v1384
        %1727 = vmatmul.mubr.bf16.gmra.mrb[0].mxu0 %v1383
        %v1728 = vpop.f32.mrb[0].mxu0
        %v1729 = vadd.f32 0.0, %v1728
        %v1730 = vpop.f32.mrb[0].mxu0
        %v1731 = vpop.f32.mrb[0].mxu0
        %v1732 = vadd.f32 0.0, %v1731
        %v1733 = vpop.f32.mrb[0].mxu0
        %1734 = vmatprep.mubr.bf16.mxu0 %v1387
        %1735 = vmatmul.mubr.bf16.gmra.mrb[0].mxu0 %v1386
        %v1736 = vpop.f32.mrb[0].mxu0
        %v1737 = vadd.f32 0.0, %v1736
        %v1738 = vpop.f32.mrb[0].mxu0
        %v1739 = vpop.f32.mrb[0].mxu0
        %v1740 = vadd.f32 0.0, %v1739
        %v1741 = vpop.f32.mrb[0].mxu0
        %1742 = vdwg.mxu0
        %1743 = vmatprep.subr.bf16.mxu0 0
        %1744 = vmatpush1.bf16.msra.mxu0 %v1550
        %1745 = vmatprep.subr.bf16.mxu0 0
        %1746 = vmatpush1.bf16.msra.mxu0 %v1551
        %1747 = vmatprep.subr.bf16.mxu0 0
        %1748 = vmatpush1.bf16.msra.mxu0 %v1552
        %1749 = vmatprep.subr.bf16.mxu0 0
        %1750 = vmatpush1.bf16.msra.mxu0 %v1553
        %1751 = vmatprep.subr.bf16.mxu0 0
        %1752 = vmatpush1.bf16.msra.mxu0 %v1554
        %1753 = vmatprep.subr.bf16.mxu0 0
        %1754 = vmatpush1.bf16.msra.mxu0 %v1555
        %1755 = vmatprep.subr.bf16.mxu0 0
        %1756 = vmatpush1.bf16.msra.mxu0 %v1556
        %1757 = vmatprep.subr.bf16.mxu0 0
        %1758 = vmatpush1.bf16.msra.mxu0 %v1557
        %1759 = vmatprep.subr.bf16.mxu0 0
        %1760 = vmatpush1.bf16.msra.mxu0 0
        %1761 = vmatprep.subr.bf16.mxu0 0
        %1762 = vmatpush1.bf16.msra.mxu0 0
        %1763 = vmatprep.subr.bf16.mxu0 0
        %1764 = vmatpush1.bf16.msra.mxu0 0
        %1765 = vmatprep.subr.bf16.mxu0 0
        %1766 = vmatpush1.bf16.msra.mxu0 0
        %1767 = vmatprep.subr.bf16.mxu0 0
        %1768 = vmatpush1.bf16.msra.mxu0 0
        %1769 = vmatprep.subr.bf16.mxu0 0
        %1770 = vmatpush1.bf16.msra.mxu0 0
        %1771 = vmatprep.subr.bf16.mxu0 0
        %1772 = vmatpush1.bf16.msra.mxu0 0
        %1773 = vmatprep.subr.bf16.mxu0 0
        %1774 = vmatpush1.bf16.msra.mxu0 0
        %1775 = vmatprep.mubr.bf16.mxu0 0
        %1776 = vmatmul.mubr.bf16.gmra.mrb[0].mxu0 %v1343
        %v1777 = vpop.f32.mrb[0].mxu0
        %v1778 = vadd.f32 %v1617, %v1777
        %v1779 = vpop.f32.mrb[0].mxu0
        %v1780 = vpop.f32.mrb[0].mxu0
        %v1781 = vadd.f32 %v1620, %v1780
        %v1782 = vpop.f32.mrb[0].mxu0
        %1783 = vmatprep.mubr.bf16.mxu0 0
        %1784 = vmatmul.mubr.bf16.gmra.mrb[0].mxu0 %v1346
        %v1785 = vpop.f32.mrb[0].mxu0
        %v1786 = vadd.f32 %v1625, %v1785
        %v1787 = vpop.f32.mrb[0].mxu0
        %v1788 = vpop.f32.mrb[0].mxu0
        %v1789 = vadd.f32 %v1628, %v1788
        %v1790 = vpop.f32.mrb[0].mxu0
        %1791 = vmatprep.mubr.bf16.mxu0 0
        %1792 = vmatmul.mubr.bf16.gmra.mrb[0].mxu0 %v1349
        %v1793 = vpop.f32.mrb[0].mxu0
        %v1794 = vadd.f32 %v1633, %v1793
        %v1795 = vpop.f32.mrb[0].mxu0
        %v1796 = vpop.f32.mrb[0].mxu0
        %v1797 = vadd.f32 %v1636, %v1796
        %v1798 = vpop.f32.mrb[0].mxu0
        %1799 = vmatprep.mubr.bf16.mxu0 0
        %1800 = vmatmul.mubr.bf16.gmra.mrb[0].mxu0 %v1352
        %v1801 = vpop.f32.mrb[0].mxu0
        %v1802 = vadd.f32 %v1641, %v1801
        %v1803 = vpop.f32.mrb[0].mxu0
        %v1804 = vpop.f32.mrb[0].mxu0
        %v1805 = vadd.f32 %v1644, %v1804
        %v1806 = vpop.f32.mrb[0].mxu0
        %1807 = vmatprep.mubr.bf16.mxu0 0
        %1808 = vmatmul.mubr.bf16.gmra.mrb[0].mxu0 %v1355
        %v1809 = vpop.f32.mrb[0].mxu0
        %v1810 = vadd.f32 %v1649, %v1809
        %v1811 = vpop.f32.mrb[0].mxu0
        %v1812 = vpop.f32.mrb[0].mxu0
        %v1813 = vadd.f32 %v1652, %v1812
        %v1814 = vpop.f32.mrb[0].mxu0
        %1815 = vmatprep.mubr.bf16.mxu0 0
        %1816 = vmatmul.mubr.bf16.gmra.mrb[0].mxu0 %v1358
        %v1817 = vpop.f32.mrb[0].mxu0
        %v1818 = vadd.f32 %v1657, %v1817
        %v1819 = vpop.f32.mrb[0].mxu0
        %v1820 = vpop.f32.mrb[0].mxu0
        %v1821 = vadd.f32 %v1660, %v1820
        %v1822 = vpop.f32.mrb[0].mxu0
        %1823 = vmatprep.mubr.bf16.mxu0 0
        %1824 = vmatmul.mubr.bf16.gmra.mrb[0].mxu0 %v1361
        %v1825 = vpop.f32.mrb[0].mxu0
        %v1826 = vadd.f32 %v1665, %v1825
        %v1827 = vpop.f32.mrb[0].mxu0
        %v1828 = vpop.f32.mrb[0].mxu0
        %v1829 = vadd.f32 %v1668, %v1828
        %v1830 = vpop.f32.mrb[0].mxu0
        %1831 = vmatprep.mubr.bf16.mxu0 0
        %1832 = vmatmul.mubr.bf16.gmra.mrb[0].mxu0 %v1364
        %v1833 = vpop.f32.mrb[0].mxu0
        %v1834 = vadd.f32 %v1673, %v1833
        %v1835 = vpop.f32.mrb[0].mxu0
        %v1836 = vpop.f32.mrb[0].mxu0
        %v1837 = vadd.f32 %v1676, %v1836
        %v1838 = vpop.f32.mrb[0].mxu0
        %1839 = vmatprep.mubr.bf16.mxu0 0
        %1840 = vmatmul.mubr.bf16.gmra.mrb[0].mxu0 %v1367
        %v1841 = vpop.f32.mrb[0].mxu0
        %v1842 = vadd.f32 %v1681, %v1841
        %v1843 = vpop.f32.mrb[0].mxu0
        %v1844 = vpop.f32.mrb[0].mxu0
        %v1845 = vadd.f32 %v1684, %v1844
        %v1846 = vpop.f32.mrb[0].mxu0
        %1847 = vmatprep.mubr.bf16.mxu0 0
        %1848 = vmatmul.mubr.bf16.gmra.mrb[0].mxu0 %v1370
        %v1849 = vpop.f32.mrb[0].mxu0
        %v1850 = vadd.f32 %v1689, %v1849
        %v1851 = vpop.f32.mrb[0].mxu0
        %v1852 = vpop.f32.mrb[0].mxu0
        %v1853 = vadd.f32 %v1692, %v1852
        %v1854 = vpop.f32.mrb[0].mxu0
        %1855 = vmatprep.mubr.bf16.mxu0 0
        %1856 = vmatmul.mubr.bf16.gmra.mrb[0].mxu0 %v1373
        %v1857 = vpop.f32.mrb[0].mxu0
        %v1858 = vadd.f32 %v1697, %v1857
        %v1859 = vpop.f32.mrb[0].mxu0
        %v1860 = vpop.f32.mrb[0].mxu0
        %v1861 = vadd.f32 %v1700, %v1860
        %v1862 = vpop.f32.mrb[0].mxu0
        %1863 = vmatprep.mubr.bf16.mxu0 0
        %1864 = vmatmul.mubr.bf16.gmra.mrb[0].mxu0 %v1376
        %v1865 = vpop.f32.mrb[0].mxu0
        %v1866 = vadd.f32 %v1705, %v1865
        %v1867 = vpop.f32.mrb[0].mxu0
        %v1868 = vpop.f32.mrb[0].mxu0
        %v1869 = vadd.f32 %v1708, %v1868
        %v1870 = vpop.f32.mrb[0].mxu0
        %1871 = vmatprep.mubr.bf16.mxu0 0
        %1872 = vmatmul.mubr.bf16.gmra.mrb[0].mxu0 %v1379
        %v1873 = vpop.f32.mrb[0].mxu0
        %v1874 = vadd.f32 %v1713, %v1873
        %v1875 = vpop.f32.mrb[0].mxu0
        %v1876 = vpop.f32.mrb[0].mxu0
        %v1877 = vadd.f32 %v1716, %v1876
        %v1878 = vpop.f32.mrb[0].mxu0
        %1879 = vmatprep.mubr.bf16.mxu0 0
        %1880 = vmatmul.mubr.bf16.gmra.mrb[0].mxu0 %v1382
        %v1881 = vpop.f32.mrb[0].mxu0
        %v1882 = vadd.f32 %v1721, %v1881
        %v1883 = vpop.f32.mrb[0].mxu0
        %v1884 = vpop.f32.mrb[0].mxu0
        %v1885 = vadd.f32 %v1724, %v1884
        %v1886 = vpop.f32.mrb[0].mxu0
        %1887 = vmatprep.mubr.bf16.mxu0 0
        %1888 = vmatmul.mubr.bf16.gmra.mrb[0].mxu0 %v1385
        %v1889 = vpop.f32.mrb[0].mxu0
        %v1890 = vadd.f32 %v1729, %v1889
        %v1891 = vpop.f32.mrb[0].mxu0
        %v1892 = vpop.f32.mrb[0].mxu0
        %v1893 = vadd.f32 %v1732, %v1892
        %v1894 = vpop.f32.mrb[0].mxu0
        %1895 = vmatprep.mubr.bf16.mxu0 0
        %1896 = vmatmul.mubr.bf16.gmra.mrb[0].mxu0 %v1388
        %v1897 = vpop.f32.mrb[0].mxu0
        %v1898 = vadd.f32 %v1737, %v1897
        %v1899 = vpop.f32.mrb[0].mxu0
        %v1900 = vpop.f32.mrb[0].mxu0
        %v1901 = vadd.f32 %v1740, %v1900
        %v1902 = vpop.f32.mrb[0].mxu0
        %1903 = vdwg.mxu0
        %1904 = vst [vmem:[#allocation3] sm:$0xff] %v1778
        %1905 = vst [vmem:[#allocation3 + $0x8] sm:$0xff] %v1781
        %1906 = vst [vmem:[#allocation3 + $0x10] sm:$0xff] %v1786
        %1907 = vst [vmem:[#allocation3 + $0x18] sm:$0xff] %v1789
        %1908 = vst [vmem:[#allocation3 + $0x20] sm:$0xff] %v1794
        %1909 = vst [vmem:[#allocation3 + $0x28] sm:$0xff] %v1797
        %1910 = vst [vmem:[#allocation3 + $0x30] sm:$0xff] %v1802
        %1911 = vst [vmem:[#allocation3 + $0x38] sm:$0xff] %v1805
        %1912 = vst [vmem:[#allocation3 + $0x40] sm:$0xff] %v1810
        %1913 = vst [vmem:[#allocation3 + $0x48] sm:$0xff] %v1813
        %1914 = vst [vmem:[#allocation3 + $0x50] sm:$0xff] %v1818
        %1915 = vst [vmem:[#allocation3 + $0x58] sm:$0xff] %v1821
        %1916 = vst [vmem:[#allocation3 + $0x60] sm:$0xff] %v1826
        %1917 = vst [vmem:[#allocation3 + $0x68] sm:$0xff] %v1829
        %1918 = vst [vmem:[#allocation3 + $0x70] sm:$0xff] %v1834
        %1919 = vst [vmem:[#allocation3 + $0x78] sm:$0xff] %v1837
        %1920 = vst [vmem:[#allocation3 + $0x80] sm:$0xff] %v1842
        %1921 = vst [vmem:[#allocation3 + $0x88] sm:$0xff] %v1845
        %1922 = vst [vmem:[#allocation3 + $0x90] sm:$0xff] %v1850
        %1923 = vst [vmem:[#allocation3 + $0x98] sm:$0xff] %v1853
        %1924 = vst [vmem:[#allocation3 + $0xa0] sm:$0xff] %v1858
        %1925 = vst [vmem:[#allocation3 + $0xa8] sm:$0xff] %v1861
        %1926 = vst [vmem:[#allocation3 + $0xb0] sm:$0xff] %v1866
        %1927 = vst [vmem:[#allocation3 + $0xb8] sm:$0xff] %v1869
        %1928 = vst [vmem:[#allocation3 + $0xc0] sm:$0xff] %v1874
        %1929 = vst [vmem:[#allocation3 + $0xc8] sm:$0xff] %v1877
        %1930 = vst [vmem:[#allocation3 + $0xd0] sm:$0xff] %v1882
        %1931 = vst [vmem:[#allocation3 + $0xd8] sm:$0xff] %v1885
        %1932 = vst [vmem:[#allocation3 + $0xe0] sm:$0xff] %v1890
        %1933 = vst [vmem:[#allocation3 + $0xe8] sm:$0xff] %v1893
        %1934 = vst [vmem:[#allocation3 + $0xf0] sm:$0xff] %v1898
        %1935 = vst [vmem:[#allocation3 + $0xf8] sm:$0xff] %v1901
        %v1936 = vld [vmem:[#allocation3 + $0x10] sm:$0xff]
        %v1937 = vld [vmem:[#allocation3 + $0x18] sm:$0xff]
        %v1938 = vld [vmem:[#allocation3 + $0x20] sm:$0xff]
        %v1939 = vld [vmem:[#allocation3 + $0x28] sm:$0xff]
        %v1940 = vld [vmem:[#allocation3 + $0x30] sm:$0xff]
        %v1941 = vld [vmem:[#allocation3 + $0x38] sm:$0xff]
        %v1942 = vld [vmem:[#allocation3 + $0x40] sm:$0xff]
        %v1943 = vld [vmem:[#allocation3 + $0x48] sm:$0xff]
        %v1944 = vld [vmem:[#allocation3 + $0x50] sm:$0xff]
        %v1945 = vld [vmem:[#allocation3 + $0x58] sm:$0xff]
        %v1946 = vld [vmem:[#allocation3 + $0x60] sm:$0xff]
        %v1947 = vld [vmem:[#allocation3 + $0x68] sm:$0xff]
        %v1948 = vld [vmem:[#allocation3 + $0x70] sm:$0xff]
        %v1949 = vld [vmem:[#allocation3 + $0x78] sm:$0xff]
        %v1950 = vld [vmem:[#allocation3 + $0x80] sm:$0xff]
        %v1951 = vld [vmem:[#allocation3 + $0x88] sm:$0xff]
        %v1952 = vld [vmem:[#allocation3 + $0x90] sm:$0xff]
        %v1953 = vld [vmem:[#allocation3 + $0x98] sm:$0xff]
        %v1954 = vld [vmem:[#allocation3 + $0xa0] sm:$0xff]
        %v1955 = vld [vmem:[#allocation3 + $0xa8] sm:$0xff]
        %v1956 = vld [vmem:[#allocation3 + $0xb0] sm:$0xff]
        %v1957 = vld [vmem:[#allocation3 + $0xb8] sm:$0xff]
        %v1958 = vld [vmem:[#allocation3 + $0xc0] sm:$0xff]
        %v1959 = vld [vmem:[#allocation3 + $0xc8] sm:$0xff]
        %v1960 = vld [vmem:[#allocation3 + $0xd0] sm:$0xff]
        %v1961 = vld [vmem:[#allocation3 + $0xd8] sm:$0xff]
        %v1962 = vld [vmem:[#allocation3 + $0xe0] sm:$0xff]
        %v1963 = vld [vmem:[#allocation3 + $0xe8] sm:$0xff]
        %v1964 = vld [vmem:[#allocation3 + $0xf0] sm:$0xff]
        %v1965 = vld [vmem:[#allocation3 + $0xf8] sm:$0xff]
        %v1966 = vld [vmem:[#allocation2] sm:$0xff]
        %v1967 = vld [vmem:[#allocation2 + $0x8] sm:$0xff]
        %v1968 = vld [vmem:[#allocation2 + $0x10] sm:$0xff]
        %v1969 = vld [vmem:[#allocation2 + $0x18] sm:$0xff]
        %v1970 = vld [vmem:[#allocation2 + $0x20] sm:$0xff]
        %v1971 = vld [vmem:[#allocation2 + $0x28] sm:$0xff]
        %v1972 = vld [vmem:[#allocation2 + $0x30] sm:$0xff]
        %v1973 = vld [vmem:[#allocation2 + $0x38] sm:$0xff]
        %v1974 = vld [vmem:[#allocation2 + $0x40] sm:$0xff]
        %v1975 = vld [vmem:[#allocation2 + $0x48] sm:$0xff]
        %v1976 = vld [vmem:[#allocation2 + $0x50] sm:$0xff]
        %v1977 = vld [vmem:[#allocation2 + $0x58] sm:$0xff]
        %v1978 = vld [vmem:[#allocation2 + $0x60] sm:$0xff]
        %v1979 = vld [vmem:[#allocation2 + $0x68] sm:$0xff]
        %v1980 = vld [vmem:[#allocation2 + $0x70] sm:$0xff]
        %v1981 = vld [vmem:[#allocation2 + $0x78] sm:$0xff]
        %v1982 = vld [vmem:[#allocation2 + $0x80] sm:$0xff]
        %v1983 = vld [vmem:[#allocation2 + $0x88] sm:$0xff]
        %v1984 = vld [vmem:[#allocation2 + $0x90] sm:$0xff]
        %v1985 = vld [vmem:[#allocation2 + $0x98] sm:$0xff]
        %v1986 = vld [vmem:[#allocation2 + $0xa0] sm:$0xff]
        %v1987 = vld [vmem:[#allocation2 + $0xa8] sm:$0xff]
        %v1988 = vld [vmem:[#allocation2 + $0xb0] sm:$0xff]
        %v1989 = vld [vmem:[#allocation2 + $0xb8] sm:$0xff]
        %v1990 = vld [vmem:[#allocation2 + $0xc0] sm:$0xff]
        %v1991 = vld [vmem:[#allocation2 + $0xc8] sm:$0xff]
        %v1992 = vld [vmem:[#allocation2 + $0xd0] sm:$0xff]
        %v1993 = vld [vmem:[#allocation2 + $0xd8] sm:$0xff]
        %v1994 = vld [vmem:[#allocation2 + $0xe0] sm:$0xff]
        %v1995 = vld [vmem:[#allocation2 + $0xe8] sm:$0xff]
        %v1996 = vld [vmem:[#allocation2 + $0xf0] sm:$0xff]
        %v1997 = vld [vmem:[#allocation2 + $0xf8] sm:$0xff]
        %v1998 = vld [vmem:[#allocation2 + $0x100] sm:$0xff]
        %v1999 = vld [vmem:[#allocation2 + $0x108] sm:$0xff]
        %v2000 = vld [vmem:[#allocation2 + $0x110] sm:$0xff]
        %v2001 = vld [vmem:[#allocation2 + $0x118] sm:$0xff]
        %v2002 = vld [vmem:[#allocation2 + $0x120] sm:$0xff]
        %v2003 = vld [vmem:[#allocation2 + $0x128] sm:$0xff]
        %v2004 = vld [vmem:[#allocation2 + $0x130] sm:$0xff]
        %v2005 = vld [vmem:[#allocation2 + $0x138] sm:$0xff]
        %v2006 = vld [vmem:[#allocation2 + $0x140] sm:$0xff]
        %v2007 = vld [vmem:[#allocation2 + $0x148] sm:$0xff]
        %v2008 = vld [vmem:[#allocation2 + $0x150] sm:$0xff]
        %v2009 = vld [vmem:[#allocation2 + $0x158] sm:$0xff]
        %v2010 = vld [vmem:[#allocation2 + $0x160] sm:$0xff]
        %v2011 = vld [vmem:[#allocation7] sm:$0xf]
        %v2012 = vld [vmem:[#allocation7 + $0x4] sm:$0xf]
        %v2013 = vld [vmem:[#allocation7 + $0x8] sm:$0xf]
        %v2014 = vld [vmem:[#allocation7 + $0xc] sm:$0xf]
        %v2015 = vld [vmem:[#allocation7 + $0x10] sm:$0xf]
        %v2016 = vld [vmem:[#allocation7 + $0x14] sm:$0xf]
        %v2017 = vld [vmem:[#allocation7 + $0x18] sm:$0xf]
        %v2018 = vld [vmem:[#allocation7 + $0x1c] sm:$0xf]
        %v2019 = vld [vmem:[#allocation7 + $0x20] sm:$0xf]
        %v2020 = vld [vmem:[#allocation7 + $0x24] sm:$0xf]
        %v2021 = vld [vmem:[#allocation7 + $0x28] sm:$0xf]
        %v2022 = vld [vmem:[#allocation7 + $0x2c] sm:$0xf]
        %v2023 = vld [vmem:[#allocation7 + $0x30] sm:$0xf]
        %v2024 = vld [vmem:[#allocation7 + $0x34] sm:$0xf]
        %v2025 = vld [vmem:[#allocation7 + $0x38] sm:$0xf]
        %v2026 = vld [vmem:[#allocation7 + $0x3c] sm:$0xf]
        %v2027 = vld [vmem:[#allocation7 + $0x40] sm:$0xf]
        %v2028 = vld [vmem:[#allocation7 + $0x44] sm:$0xf]
        %v2029 = vld [vmem:[#allocation7 + $0x48] sm:$0xf]
        %v2030 = vld [vmem:[#allocation7 + $0x4c] sm:$0xf]
        %v2031 = vld [vmem:[#allocation7 + $0x50] sm:$0xf]
        %v2032 = vld [vmem:[#allocation7 + $0x54] sm:$0xf]
        %v2033 = vld [vmem:[#allocation7 + $0x58] sm:$0xf]
        %v2034 = vld [vmem:[#allocation7 + $0x5c] sm:$0xf]
        %v2035 = vld [vmem:[#allocation7 + $0x60] sm:$0xf]
        %v2036 = vld [vmem:[#allocation7 + $0x64] sm:$0xf]
        %v2037 = vld [vmem:[#allocation7 + $0x68] sm:$0xf]
        %v2038 = vld [vmem:[#allocation7 + $0x6c] sm:$0xf]
        %v2039 = vld [vmem:[#allocation7 + $0x70] sm:$0xf]
        %v2040 = vld [vmem:[#allocation7 + $0x74] sm:$0xf]
        %v2041 = vld [vmem:[#allocation7 + $0x78] sm:$0xf]
        %v2042 = vld [vmem:[#allocation7 + $0x7c] sm:$0xf]
        %v2043 = vld [vmem:[#allocation7 + $0x80] sm:$0xf]
        %v2044 = vld [vmem:[#allocation7 + $0x84] sm:$0xf]
        %v2045 = vld [vmem:[#allocation7 + $0x88] sm:$0xf]
        %v2046 = vld [vmem:[#allocation7 + $0x8c] sm:$0xf]
        %v2047 = vld [vmem:[#allocation7 + $0x90] sm:$0xf]
        %v2048 = vld [vmem:[#allocation7 + $0x94] sm:$0xf]
        %v2049 = vld [vmem:[#allocation7 + $0x98] sm:$0xf]
        %v2050 = vld [vmem:[#allocation7 + $0x9c] sm:$0xf]
        %v2051 = vld [vmem:[#allocation7 + $0xa0] sm:$0xf]
        %v2052 = vld [vmem:[#allocation7 + $0xa4] sm:$0xf]
        %v2053 = vld [vmem:[#allocation7 + $0xa8] sm:$0xf]
        %v2054 = vld [vmem:[#allocation7 + $0xac] sm:$0xf]
        %v2055 = vld [vmem:[#allocation7 + $0xb0] sm:$0xf]
        %v2056 = vld [vmem:[#allocation7 + $0xb4] sm:$0xf]
        %v2057 = vld [vmem:[#allocation7 + $0xb8] sm:$0xf]
        %v2058 = vld [vmem:[#allocation7 + $0xbc] sm:$0xf]
        %v2107 = vunpack.c.l.b16 %v2011
        %v2108 = vunpack.c.l.b16 %v2012
        %v2109 = vunpack.c.l.b16 %v2013
        %v2110 = vunpack.c.l.b16 %v2014
        %v2111 = vunpack.c.l.b16 %v2015
        %v2112 = vunpack.c.l.b16 %v2016
        %v2113 = vunpack.c.l.b16 %v2017
        %v2114 = vunpack.c.l.b16 %v2018
        %v2115 = vunpack.c.l.b16 %v2019
        %v2116 = vunpack.c.l.b16 %v2020
        %v2117 = vunpack.c.l.b16 %v2021
        %v2118 = vunpack.c.l.b16 %v2022
        %v2119 = vunpack.c.l.b16 %v2023
        %v2120 = vunpack.c.l.b16 %v2024
        %v2121 = vunpack.c.l.b16 %v2025
        %v2122 = vunpack.c.l.b16 %v2026
        %v2123 = vunpack.c.l.b16 %v2027
        %v2124 = vunpack.c.l.b16 %v2028
        %v2125 = vunpack.c.l.b16 %v2029
        %v2126 = vunpack.c.l.b16 %v2030
        %v2127 = vunpack.c.l.b16 %v2031
        %v2128 = vunpack.c.l.b16 %v2032
        %v2129 = vunpack.c.l.b16 %v2033
        %v2130 = vunpack.c.l.b16 %v2034
        %v2131 = vunpack.c.l.b16 %v2035
        %v2132 = vunpack.c.l.b16 %v2036
        %v2133 = vunpack.c.l.b16 %v2037
        %v2134 = vunpack.c.l.b16 %v2038
        %v2135 = vunpack.c.l.b16 %v2039
        %v2136 = vunpack.c.l.b16 %v2040
        %v2137 = vunpack.c.l.b16 %v2041
        %v2138 = vunpack.c.l.b16 %v2042
        %v2139 = vunpack.c.l.b16 %v2043
        %v2140 = vunpack.c.l.b16 %v2044
        %v2141 = vunpack.c.l.b16 %v2045
        %v2142 = vunpack.c.l.b16 %v2046
        %v2143 = vunpack.c.l.b16 %v2047
        %v2144 = vunpack.c.l.b16 %v2048
        %v2145 = vunpack.c.l.b16 %v2049
        %v2146 = vunpack.c.l.b16 %v2050
        %v2147 = vunpack.c.l.b16 %v2051
        %v2148 = vunpack.c.l.b16 %v2052
        %v2149 = vunpack.c.l.b16 %v2053
        %v2150 = vunpack.c.l.b16 %v2054
        %v2151 = vunpack.c.l.b16 %v2055
        %v2152 = vunpack.c.l.b16 %v2056
        %v2153 = vunpack.c.l.b16 %v2057
        %v2154 = vunpack.c.l.b16 %v2058
        %v2155 = vpack.c.b16 %v2108, %v2107
        %v2156 = vpack.c.b16 %v2110, %v2109
        %v2157 = vpack.c.b16 %v2112, %v2111
        %v2158 = vpack.c.b16 %v2114, %v2113
        %v2159 = vpack.c.b16 %v2116, %v2115
        %v2160 = vpack.c.b16 %v2118, %v2117
        %v2161 = vpack.c.b16 %v2120, %v2119
        %v2162 = vpack.c.b16 %v2122, %v2121
        %v2163 = vpack.c.b16 %v2124, %v2123
        %v2164 = vpack.c.b16 %v2126, %v2125
        %v2165 = vpack.c.b16 %v2128, %v2127
        %v2166 = vpack.c.b16 %v2130, %v2129
        %v2167 = vpack.c.b16 %v2132, %v2131
        %v2168 = vpack.c.b16 %v2134, %v2133
        %v2169 = vpack.c.b16 %v2136, %v2135
        %v2170 = vpack.c.b16 %v2138, %v2137
        %v2171 = vpack.c.b16 %v2140, %v2139
        %v2172 = vpack.c.b16 %v2142, %v2141
        %v2173 = vpack.c.b16 %v2144, %v2143
        %v2174 = vpack.c.b16 %v2146, %v2145
        %v2175 = vpack.c.b16 %v2148, %v2147
        %v2176 = vpack.c.b16 %v2150, %v2149
        %v2177 = vpack.c.b16 %v2152, %v2151
        %v2178 = vpack.c.b16 %v2154, %v2153
        %2203 = vmatprep.subr.bf16.mxu0 0
        %2204 = vmatpush1.bf16.msra.mxu0 %v2155
        %2205 = vmatprep.subr.bf16.mxu0 0
        %2206 = vmatpush1.bf16.msra.mxu0 %v2156
        %2207 = vmatprep.subr.bf16.mxu0 0
        %2208 = vmatpush1.bf16.msra.mxu0 %v2157
        %2209 = vmatprep.subr.bf16.mxu0 0
        %2210 = vmatpush1.bf16.msra.mxu0 %v2158
        %2211 = vmatprep.subr.bf16.mxu0 0
        %2212 = vmatpush1.bf16.msra.mxu0 %v2159
        %2213 = vmatprep.subr.bf16.mxu0 0
        %2214 = vmatpush1.bf16.msra.mxu0 %v2160
        %2215 = vmatprep.subr.bf16.mxu0 0
        %2216 = vmatpush1.bf16.msra.mxu0 %v2161
        %2217 = vmatprep.subr.bf16.mxu0 0
        %2218 = vmatpush1.bf16.msra.mxu0 %v2162
        %2219 = vmatprep.subr.bf16.mxu0 0
        %2220 = vmatpush1.bf16.msra.mxu0 %v2163
        %2221 = vmatprep.subr.bf16.mxu0 0
        %2222 = vmatpush1.bf16.msra.mxu0 %v2164
        %2223 = vmatprep.subr.bf16.mxu0 0
        %2224 = vmatpush1.bf16.msra.mxu0 %v2165
        %2225 = vmatprep.subr.bf16.mxu0 0
        %2226 = vmatpush1.bf16.msra.mxu0 %v2166
        %2227 = vmatprep.subr.bf16.mxu0 0
        %2228 = vmatpush1.bf16.msra.mxu0 %v2167
        %2229 = vmatprep.subr.bf16.mxu0 0
        %2230 = vmatpush1.bf16.msra.mxu0 %v2168
        %2231 = vmatprep.subr.bf16.mxu0 0
        %2232 = vmatpush1.bf16.msra.mxu0 %v2169
        %2233 = vmatprep.subr.bf16.mxu0 0
        %2234 = vmatpush1.bf16.msra.mxu0 %v2170
        %2235 = vmatprep.mubr.bf16.mxu0 %v1967
        %2236 = vmatmul.mubr.bf16.gmra.mrb[0].mxu0 %v1966
        %v2237 = vpop.f32.mrb[0].mxu0
        %v2238 = vadd.f32 0.0, %v2237
        %v2239 = vpop.f32.mrb[0].mxu0
        %v2240 = vpop.f32.mrb[0].mxu0
        %v2241 = vadd.f32 0.0, %v2240
        %v2242 = vpop.f32.mrb[0].mxu0
        %2243 = vmatprep.mubr.bf16.mxu0 %v1970
        %2244 = vmatmul.mubr.bf16.gmra.mrb[0].mxu0 %v1969
        %v2245 = vpop.f32.mrb[0].mxu0
        %v2246 = vadd.f32 0.0, %v2245
        %v2247 = vpop.f32.mrb[0].mxu0
        %v2248 = vpop.f32.mrb[0].mxu0
        %v2249 = vadd.f32 0.0, %v2248
        %v2250 = vpop.f32.mrb[0].mxu0
        %2251 = vmatprep.mubr.bf16.mxu0 %v1973
        %2252 = vmatmul.mubr.bf16.gmra.mrb[0].mxu0 %v1972
        %v2253 = vpop.f32.mrb[0].mxu0
        %v2254 = vadd.f32 0.0, %v2253
        %v2255 = vpop.f32.mrb[0].mxu0
        %v2256 = vpop.f32.mrb[0].mxu0
        %v2257 = vadd.f32 0.0, %v2256
        %v2258 = vpop.f32.mrb[0].mxu0
        %2259 = vmatprep.mubr.bf16.mxu0 %v1976
        %2260 = vmatmul.mubr.bf16.gmra.mrb[0].mxu0 %v1975
        %v2261 = vpop.f32.mrb[0].mxu0
        %v2262 = vadd.f32 0.0, %v2261
        %v2263 = vpop.f32.mrb[0].mxu0
        %v2264 = vpop.f32.mrb[0].mxu0
        %v2265 = vadd.f32 0.0, %v2264
        %v2266 = vpop.f32.mrb[0].mxu0
        %2267 = vmatprep.mubr.bf16.mxu0 %v1979
        %2268 = vmatmul.mubr.bf16.gmra.mrb[0].mxu0 %v1978
        %v2269 = vpop.f32.mrb[0].mxu0
        %v2270 = vadd.f32 0.0, %v2269
        %v2271 = vpop.f32.mrb[0].mxu0
        %v2272 = vpop.f32.mrb[0].mxu0
        %v2273 = vadd.f32 0.0, %v2272
        %v2274 = vpop.f32.mrb[0].mxu0
        %2275 = vmatprep.mubr.bf16.mxu0 %v1982
        %2276 = vmatmul.mubr.bf16.gmra.mrb[0].mxu0 %v1981
        %v2277 = vpop.f32.mrb[0].mxu0
        %v2278 = vadd.f32 0.0, %v2277
        %v2279 = vpop.f32.mrb[0].mxu0
        %v2280 = vpop.f32.mrb[0].mxu0
        %v2281 = vadd.f32 0.0, %v2280
        %v2282 = vpop.f32.mrb[0].mxu0
        %2283 = vmatprep.mubr.bf16.mxu0 %v1985
        %2284 = vmatmul.mubr.bf16.gmra.mrb[0].mxu0 %v1984
        %v2285 = vpop.f32.mrb[0].mxu0
        %v2286 = vadd.f32 0.0, %v2285
        %v2287 = vpop.f32.mrb[0].mxu0
        %v2288 = vpop.f32.mrb[0].mxu0
        %v2289 = vadd.f32 0.0, %v2288
        %v2290 = vpop.f32.mrb[0].mxu0
        %2291 = vmatprep.mubr.bf16.mxu0 %v1988
        %2292 = vmatmul.mubr.bf16.gmra.mrb[0].mxu0 %v1987
        %v2293 = vpop.f32.mrb[0].mxu0
        %v2294 = vadd.f32 0.0, %v2293
        %v2295 = vpop.f32.mrb[0].mxu0
        %v2296 = vpop.f32.mrb[0].mxu0
        %v2297 = vadd.f32 0.0, %v2296
        %v2298 = vpop.f32.mrb[0].mxu0
        %2299 = vmatprep.mubr.bf16.mxu0 %v1991
        %2300 = vmatmul.mubr.bf16.gmra.mrb[0].mxu0 %v1990
        %v2301 = vpop.f32.mrb[0].mxu0
        %v2302 = vadd.f32 0.0, %v2301
        %v2303 = vpop.f32.mrb[0].mxu0
        %v2304 = vpop.f32.mrb[0].mxu0
        %v2305 = vadd.f32 0.0, %v2304
        %v2306 = vpop.f32.mrb[0].mxu0
        %2307 = vmatprep.mubr.bf16.mxu0 %v1994
        %2308 = vmatmul.mubr.bf16.gmra.mrb[0].mxu0 %v1993
        %v2309 = vpop.f32.mrb[0].mxu0
        %v2310 = vadd.f32 0.0, %v2309
        %v2311 = vpop.f32.mrb[0].mxu0
        %v2312 = vpop.f32.mrb[0].mxu0
        %v2313 = vadd.f32 0.0, %v2312
        %v2314 = vpop.f32.mrb[0].mxu0
        %2315 = vmatprep.mubr.bf16.mxu0 %v1997
        %2316 = vmatmul.mubr.bf16.gmra.mrb[0].mxu0 %v1996
        %v2317 = vpop.f32.mrb[0].mxu0
        %v2318 = vadd.f32 0.0, %v2317
        %v2319 = vpop.f32.mrb[0].mxu0
        %v2320 = vpop.f32.mrb[0].mxu0
        %v2321 = vadd.f32 0.0, %v2320
        %v2322 = vpop.f32.mrb[0].mxu0
        %2323 = vmatprep.mubr.bf16.mxu0 %v2000
        %2324 = vmatmul.mubr.bf16.gmra.mrb[0].mxu0 %v1999
        %v2325 = vpop.f32.mrb[0].mxu0
        %v2326 = vadd.f32 0.0, %v2325
        %v2327 = vpop.f32.mrb[0].mxu0
        %v2328 = vpop.f32.mrb[0].mxu0
        %v2329 = vadd.f32 0.0, %v2328
        %v2330 = vpop.f32.mrb[0].mxu0
        %2331 = vmatprep.mubr.bf16.mxu0 %v2003
        %2332 = vmatmul.mubr.bf16.gmra.mrb[0].mxu0 %v2002
        %v2333 = vpop.f32.mrb[0].mxu0
        %v2334 = vadd.f32 0.0, %v2333
        %v2335 = vpop.f32.mrb[0].mxu0
        %v2336 = vpop.f32.mrb[0].mxu0
        %v2337 = vadd.f32 0.0, %v2336
        %v2338 = vpop.f32.mrb[0].mxu0
        %2339 = vmatprep.mubr.bf16.mxu0 %v2006
        %2340 = vmatmul.mubr.bf16.gmra.mrb[0].mxu0 %v2005
        %v2341 = vpop.f32.mrb[0].mxu0
        %v2342 = vadd.f32 0.0, %v2341
        %v2343 = vpop.f32.mrb[0].mxu0
        %v2344 = vpop.f32.mrb[0].mxu0
        %v2345 = vadd.f32 0.0, %v2344
        %v2346 = vpop.f32.mrb[0].mxu0
        %2347 = vmatprep.mubr.bf16.mxu0 %v2009
        %2348 = vmatmul.mubr.bf16.gmra.mrb[0].mxu0 %v2008
        %v2349 = vpop.f32.mrb[0].mxu0
        %v2350 = vadd.f32 0.0, %v2349
        %v2351 = vpop.f32.mrb[0].mxu0
        %v2352 = vpop.f32.mrb[0].mxu0
        %v2353 = vadd.f32 0.0, %v2352
        %v2354 = vpop.f32.mrb[0].mxu0
        %2355 = vdwg.mxu0
        %2356 = vmatprep.subr.bf16.mxu0 0
        %2357 = vmatpush1.bf16.msra.mxu0 %v2171
        %2358 = vmatprep.subr.bf16.mxu0 0
        %2359 = vmatpush1.bf16.msra.mxu0 %v2172
        %2360 = vmatprep.subr.bf16.mxu0 0
        %2361 = vmatpush1.bf16.msra.mxu0 %v2173
        %2362 = vmatprep.subr.bf16.mxu0 0
        %2363 = vmatpush1.bf16.msra.mxu0 %v2174
        %2364 = vmatprep.subr.bf16.mxu0 0
        %2365 = vmatpush1.bf16.msra.mxu0 %v2175
        %2366 = vmatprep.subr.bf16.mxu0 0
        %2367 = vmatpush1.bf16.msra.mxu0 %v2176
        %2368 = vmatprep.subr.bf16.mxu0 0
        %2369 = vmatpush1.bf16.msra.mxu0 %v2177
        %2370 = vmatprep.subr.bf16.mxu0 0
        %2371 = vmatpush1.bf16.msra.mxu0 %v2178
        %2372 = vmatprep.subr.bf16.mxu0 0
        %2373 = vmatpush1.bf16.msra.mxu0 0
        %2374 = vmatprep.subr.bf16.mxu0 0
        %2375 = vmatpush1.bf16.msra.mxu0 0
        %2376 = vmatprep.subr.bf16.mxu0 0
        %2377 = vmatpush1.bf16.msra.mxu0 0
        %2378 = vmatprep.subr.bf16.mxu0 0
        %2379 = vmatpush1.bf16.msra.mxu0 0
        %2380 = vmatprep.subr.bf16.mxu0 0
        %2381 = vmatpush1.bf16.msra.mxu0 0
        %2382 = vmatprep.subr.bf16.mxu0 0
        %2383 = vmatpush1.bf16.msra.mxu0 0
        %2384 = vmatprep.subr.bf16.mxu0 0
        %2385 = vmatpush1.bf16.msra.mxu0 0
        %2386 = vmatprep.subr.bf16.mxu0 0
        %2387 = vmatpush1.bf16.msra.mxu0 0
        %2388 = vmatprep.mubr.bf16.mxu0 0
        %2389 = vmatmul.mubr.bf16.gmra.mrb[0].mxu0 %v1968
        %v2390 = vpop.f32.mrb[0].mxu0
        %v2391 = vadd.f32 %v2238, %v2390
        %v2392 = vpop.f32.mrb[0].mxu0
        %v2393 = vpop.f32.mrb[0].mxu0
        %v2394 = vadd.f32 %v2241, %v2393
        %v2395 = vpop.f32.mrb[0].mxu0
        %2396 = vmatprep.mubr.bf16.mxu0 0
        %2397 = vmatmul.mubr.bf16.gmra.mrb[0].mxu0 %v1971
        %v2398 = vpop.f32.mrb[0].mxu0
        %v2399 = vadd.f32 %v2246, %v2398
        %v2400 = vpop.f32.mrb[0].mxu0
        %v2401 = vpop.f32.mrb[0].mxu0
        %v2402 = vadd.f32 %v2249, %v2401
        %v2403 = vpop.f32.mrb[0].mxu0
        %2404 = vmatprep.mubr.bf16.mxu0 0
        %2405 = vmatmul.mubr.bf16.gmra.mrb[0].mxu0 %v1974
        %v2406 = vpop.f32.mrb[0].mxu0
        %v2407 = vadd.f32 %v2254, %v2406
        %v2408 = vpop.f32.mrb[0].mxu0
        %v2409 = vpop.f32.mrb[0].mxu0
        %v2410 = vadd.f32 %v2257, %v2409
        %v2411 = vpop.f32.mrb[0].mxu0
        %2412 = vmatprep.mubr.bf16.mxu0 0
        %2413 = vmatmul.mubr.bf16.gmra.mrb[0].mxu0 %v1977
        %v2414 = vpop.f32.mrb[0].mxu0
        %v2415 = vadd.f32 %v2262, %v2414
        %v2416 = vpop.f32.mrb[0].mxu0
        %v2417 = vpop.f32.mrb[0].mxu0
        %v2418 = vadd.f32 %v2265, %v2417
        %v2419 = vpop.f32.mrb[0].mxu0
        %2420 = vmatprep.mubr.bf16.mxu0 0
        %2421 = vmatmul.mubr.bf16.gmra.mrb[0].mxu0 %v1980
        %v2422 = vpop.f32.mrb[0].mxu0
        %v2423 = vadd.f32 %v2270, %v2422
        %v2424 = vpop.f32.mrb[0].mxu0
        %v2425 = vpop.f32.mrb[0].mxu0
        %v2426 = vadd.f32 %v2273, %v2425
        %v2427 = vpop.f32.mrb[0].mxu0
        %2428 = vmatprep.mubr.bf16.mxu0 0
        %2429 = vmatmul.mubr.bf16.gmra.mrb[0].mxu0 %v1983
        %v2430 = vpop.f32.mrb[0].mxu0
        %v2431 = vadd.f32 %v2278, %v2430
        %v2432 = vpop.f32.mrb[0].mxu0
        %v2433 = vpop.f32.mrb[0].mxu0
        %v2434 = vadd.f32 %v2281, %v2433
        %v2435 = vpop.f32.mrb[0].mxu0
        %2436 = vmatprep.mubr.bf16.mxu0 0
        %2437 = vmatmul.mubr.bf16.gmra.mrb[0].mxu0 %v1986
        %v2438 = vpop.f32.mrb[0].mxu0
        %v2439 = vadd.f32 %v2286, %v2438
        %v2440 = vpop.f32.mrb[0].mxu0
        %v2441 = vpop.f32.mrb[0].mxu0
        %v2442 = vadd.f32 %v2289, %v2441
        %v2443 = vpop.f32.mrb[0].mxu0
        %2444 = vmatprep.mubr.bf16.mxu0 0
        %2445 = vmatmul.mubr.bf16.gmra.mrb[0].mxu0 %v1989
        %v2446 = vpop.f32.mrb[0].mxu0
        %v2447 = vadd.f32 %v2294, %v2446
        %v2448 = vpop.f32.mrb[0].mxu0
        %v2449 = vpop.f32.mrb[0].mxu0
        %v2450 = vadd.f32 %v2297, %v2449
        %v2451 = vpop.f32.mrb[0].mxu0
        %2452 = vmatprep.mubr.bf16.mxu0 0
        %2453 = vmatmul.mubr.bf16.gmra.mrb[0].mxu0 %v1992
        %v2454 = vpop.f32.mrb[0].mxu0
        %v2455 = vadd.f32 %v2302, %v2454
        %v2456 = vpop.f32.mrb[0].mxu0
        %v2457 = vpop.f32.mrb[0].mxu0
        %v2458 = vadd.f32 %v2305, %v2457
        %v2459 = vpop.f32.mrb[0].mxu0
        %2460 = vmatprep.mubr.bf16.mxu0 0
        %2461 = vmatmul.mubr.bf16.gmra.mrb[0].mxu0 %v1995
        %v2462 = vpop.f32.mrb[0].mxu0
        %v2463 = vadd.f32 %v2310, %v2462
        %v2464 = vpop.f32.mrb[0].mxu0
        %v2465 = vpop.f32.mrb[0].mxu0
        %v2466 = vadd.f32 %v2313, %v2465
        %v2467 = vpop.f32.mrb[0].mxu0
        %2468 = vmatprep.mubr.bf16.mxu0 0
        %2469 = vmatmul.mubr.bf16.gmra.mrb[0].mxu0 %v1998
        %v2470 = vpop.f32.mrb[0].mxu0
        %v2471 = vadd.f32 %v2318, %v2470
        %v2472 = vpop.f32.mrb[0].mxu0
        %v2473 = vpop.f32.mrb[0].mxu0
        %v2474 = vadd.f32 %v2321, %v2473
        %v2475 = vpop.f32.mrb[0].mxu0
        %2476 = vmatprep.mubr.bf16.mxu0 0
        %2477 = vmatmul.mubr.bf16.gmra.mrb[0].mxu0 %v2001
        %v2478 = vpop.f32.mrb[0].mxu0
        %v2479 = vadd.f32 %v2326, %v2478
        %v2480 = vpop.f32.mrb[0].mxu0
        %v2481 = vpop.f32.mrb[0].mxu0
        %v2482 = vadd.f32 %v2329, %v2481
        %v2483 = vpop.f32.mrb[0].mxu0
        %2484 = vmatprep.mubr.bf16.mxu0 0
        %2485 = vmatmul.mubr.bf16.gmra.mrb[0].mxu0 %v2004
        %v2486 = vpop.f32.mrb[0].mxu0
        %v2487 = vadd.f32 %v2334, %v2486
        %v2488 = vpop.f32.mrb[0].mxu0
        %v2489 = vpop.f32.mrb[0].mxu0
        %v2490 = vadd.f32 %v2337, %v2489
        %v2491 = vpop.f32.mrb[0].mxu0
        %2492 = vmatprep.mubr.bf16.mxu0 0
        %2493 = vmatmul.mubr.bf16.gmra.mrb[0].mxu0 %v2007
        %v2494 = vpop.f32.mrb[0].mxu0
        %v2495 = vadd.f32 %v2342, %v2494
        %v2496 = vpop.f32.mrb[0].mxu0
        %v2497 = vpop.f32.mrb[0].mxu0
        %v2498 = vadd.f32 %v2345, %v2497
        %v2499 = vpop.f32.mrb[0].mxu0
        %2500 = vmatprep.mubr.bf16.mxu0 0
        %2501 = vmatmul.mubr.bf16.gmra.mrb[0].mxu0 %v2010
        %v2502 = vpop.f32.mrb[0].mxu0
        %v2503 = vadd.f32 %v2350, %v2502
        %v2504 = vpop.f32.mrb[0].mxu0
        %v2505 = vpop.f32.mrb[0].mxu0
        %v2506 = vadd.f32 %v2353, %v2505
        %v2507 = vpop.f32.mrb[0].mxu0
        %2508 = vdwg.mxu0
        %v2509 = vadd.f32 %v1936, %v2391
        %v2510 = vadd.f32 %v1937, %v2394
        %v2511 = vadd.f32 %v1938, %v2399
        %v2512 = vadd.f32 %v1939, %v2402
        %v2513 = vadd.f32 %v1940, %v2407
        %v2514 = vadd.f32 %v1941, %v2410
        %v2515 = vadd.f32 %v1942, %v2415
        %v2516 = vadd.f32 %v1943, %v2418
        %v2517 = vadd.f32 %v1944, %v2423
        %v2518 = vadd.f32 %v1945, %v2426
        %v2519 = vadd.f32 %v1946, %v2431
        %v2520 = vadd.f32 %v1947, %v2434
        %v2521 = vadd.f32 %v1948, %v2439
        %v2522 = vadd.f32 %v1949, %v2442
        %v2523 = vadd.f32 %v1950, %v2447
        %v2524 = vadd.f32 %v1951, %v2450
        %v2525 = vadd.f32 %v1952, %v2455
        %v2526 = vadd.f32 %v1953, %v2458
        %v2527 = vadd.f32 %v1954, %v2463
        %v2528 = vadd.f32 %v1955, %v2466
        %v2529 = vadd.f32 %v1956, %v2471
        %v2530 = vadd.f32 %v1957, %v2474
        %v2531 = vadd.f32 %v1958, %v2479
        %v2532 = vadd.f32 %v1959, %v2482
        %v2533 = vadd.f32 %v1960, %v2487
        %v2534 = vadd.f32 %v1961, %v2490
        %v2535 = vadd.f32 %v1962, %v2495
        %v2536 = vadd.f32 %v1963, %v2498
        %v2537 = vadd.f32 %v1964, %v2503
        %v2538 = vadd.f32 %v1965, %v2506
        %2539 = vst [vmem:[#allocation3 + $0x10] sm:$0xff] %v2509
        %2540 = vst [vmem:[#allocation3 + $0x18] sm:$0xff] %v2510
        %2541 = vst [vmem:[#allocation3 + $0x20] sm:$0xff] %v2511
        %2542 = vst [vmem:[#allocation3 + $0x28] sm:$0xff] %v2512
        %2543 = vst [vmem:[#allocation3 + $0x30] sm:$0xff] %v2513
        %2544 = vst [vmem:[#allocation3 + $0x38] sm:$0xff] %v2514
        %2545 = vst [vmem:[#allocation3 + $0x40] sm:$0xff] %v2515
        %2546 = vst [vmem:[#allocation3 + $0x48] sm:$0xff] %v2516
        %2547 = vst [vmem:[#allocation3 + $0x50] sm:$0xff] %v2517
        %2548 = vst [vmem:[#allocation3 + $0x58] sm:$0xff] %v2518
        %2549 = vst [vmem:[#allocation3 + $0x60] sm:$0xff] %v2519
        %2550 = vst [vmem:[#allocation3 + $0x68] sm:$0xff] %v2520
        %2551 = vst [vmem:[#allocation3 + $0x70] sm:$0xff] %v2521
        %2552 = vst [vmem:[#allocation3 + $0x78] sm:$0xff] %v2522
        %2553 = vst [vmem:[#allocation3 + $0x80] sm:$0xff] %v2523
        %2554 = vst [vmem:[#allocation3 + $0x88] sm:$0xff] %v2524
        %2555 = vst [vmem:[#allocation3 + $0x90] sm:$0xff] %v2525
        %2556 = vst [vmem:[#allocation3 + $0x98] sm:$0xff] %v2526
        %2557 = vst [vmem:[#allocation3 + $0xa0] sm:$0xff] %v2527
        %2558 = vst [vmem:[#allocation3 + $0xa8] sm:$0xff] %v2528
        %2559 = vst [vmem:[#allocation3 + $0xb0] sm:$0xff] %v2529
        %2560 = vst [vmem:[#allocation3 + $0xb8] sm:$0xff] %v2530
        %2561 = vst [vmem:[#allocation3 + $0xc0] sm:$0xff] %v2531
        %2562 = vst [vmem:[#allocation3 + $0xc8] sm:$0xff] %v2532
        %2563 = vst [vmem:[#allocation3 + $0xd0] sm:$0xff] %v2533
        %2564 = vst [vmem:[#allocation3 + $0xd8] sm:$0xff] %v2534
        %2565 = vst [vmem:[#allocation3 + $0xe0] sm:$0xff] %v2535
        %2566 = vst [vmem:[#allocation3 + $0xe8] sm:$0xff] %v2536
        %2567 = vst [vmem:[#allocation3 + $0xf0] sm:$0xff] %v2537
        %2568 = vst [vmem:[#allocation3 + $0xf8] sm:$0xff] %v2538
        %v2569 = vld [vmem:[#allocation3] sm:$0xff]
        %v2570 = vld [vmem:[#allocation3 + $0x8] sm:$0xff]
        %v2571 = vld [vmem:[#allocation3 + $0x10] sm:$0xff]
        %v2572 = vld [vmem:[#allocation3 + $0x18] sm:$0xff]
        %v2573 = vld [vmem:[#allocation3 + $0x20] sm:$0xff]
        %v2574 = vld [vmem:[#allocation3 + $0x28] sm:$0xff]
        %v2575 = vld [vmem:[#allocation3 + $0x30] sm:$0xff]
        %v2576 = vld [vmem:[#allocation3 + $0x38] sm:$0xff]
        %v2577 = vld [vmem:[#allocation3 + $0x40] sm:$0xff]
        %v2578 = vld [vmem:[#allocation3 + $0x48] sm:$0xff]
        %v2579 = vld [vmem:[#allocation3 + $0x50] sm:$0xff]
        %v2580 = vld [vmem:[#allocation3 + $0x58] sm:$0xff]
        %v2581 = vld [vmem:[#allocation3 + $0x60] sm:$0xff]
        %v2582 = vld [vmem:[#allocation3 + $0x68] sm:$0xff]
        %v2583 = vld [vmem:[#allocation3 + $0x70] sm:$0xff]
        %v2584 = vld [vmem:[#allocation3 + $0x78] sm:$0xff]
        %v2585 = vld [vmem:[#allocation3 + $0x80] sm:$0xff]
        %v2586 = vld [vmem:[#allocation3 + $0x88] sm:$0xff]
        %v2587 = vld [vmem:[#allocation3 + $0x90] sm:$0xff]
        %v2588 = vld [vmem:[#allocation3 + $0x98] sm:$0xff]
        %v2589 = vld [vmem:[#allocation3 + $0xa0] sm:$0xff]
        %v2590 = vld [vmem:[#allocation3 + $0xa8] sm:$0xff]
        %v2591 = vld [vmem:[#allocation3 + $0xb0] sm:$0xff]
        %v2592 = vld [vmem:[#allocation3 + $0xb8] sm:$0xff]
        %v2593 = vld [vmem:[#allocation3 + $0xc0] sm:$0xff]
        %v2594 = vld [vmem:[#allocation3 + $0xc8] sm:$0xff]
        %v2595 = vld [vmem:[#allocation3 + $0xd0] sm:$0xff]
        %v2596 = vld [vmem:[#allocation3 + $0xd8] sm:$0xff]
        %v2597 = vld [vmem:[#allocation3 + $0xe0] sm:$0xff]
        %v2598 = vld [vmem:[#allocation3 + $0xe8] sm:$0xff]
        %v2599 = vld [vmem:[#allocation2 + $0x18] sm:$0xff]
        %v2600 = vld [vmem:[#allocation2 + $0x20] sm:$0xff]
        %v2601 = vld [vmem:[#allocation2 + $0x28] sm:$0xff]
        %v2602 = vld [vmem:[#allocation2 + $0x30] sm:$0xff]
        %v2603 = vld [vmem:[#allocation2 + $0x38] sm:$0xff]
        %v2604 = vld [vmem:[#allocation2 + $0x40] sm:$0xff]
        %v2605 = vld [vmem:[#allocation2 + $0x48] sm:$0xff]
        %v2606 = vld [vmem:[#allocation2 + $0x50] sm:$0xff]
        %v2607 = vld [vmem:[#allocation2 + $0x58] sm:$0xff]
        %v2608 = vld [vmem:[#allocation2 + $0x60] sm:$0xff]
        %v2609 = vld [vmem:[#allocation2 + $0x68] sm:$0xff]
        %v2610 = vld [vmem:[#allocation2 + $0x70] sm:$0xff]
        %v2611 = vld [vmem:[#allocation2 + $0x78] sm:$0xff]
        %v2612 = vld [vmem:[#allocation2 + $0x80] sm:$0xff]
        %v2613 = vld [vmem:[#allocation2 + $0x88] sm:$0xff]
        %v2614 = vld [vmem:[#allocation2 + $0x90] sm:$0xff]
        %v2615 = vld [vmem:[#allocation2 + $0x98] sm:$0xff]
        %v2616 = vld [vmem:[#allocation2 + $0xa0] sm:$0xff]
        %v2617 = vld [vmem:[#allocation2 + $0xa8] sm:$0xff]
        %v2618 = vld [vmem:[#allocation2 + $0xb0] sm:$0xff]
        %v2619 = vld [vmem:[#allocation2 + $0xb8] sm:$0xff]
        %v2620 = vld [vmem:[#allocation2 + $0xc0] sm:$0xff]
        %v2621 = vld [vmem:[#allocation2 + $0xc8] sm:$0xff]
        %v2622 = vld [vmem:[#allocation2 + $0xd0] sm:$0xff]
        %v2623 = vld [vmem:[#allocation2 + $0xd8] sm:$0xff]
        %v2624 = vld [vmem:[#allocation2 + $0xe0] sm:$0xff]
        %v2625 = vld [vmem:[#allocation2 + $0xe8] sm:$0xff]
        %v2626 = vld [vmem:[#allocation2 + $0xf0] sm:$0xff]
        %v2627 = vld [vmem:[#allocation2 + $0xf8] sm:$0xff]
        %v2628 = vld [vmem:[#allocation2 + $0x100] sm:$0xff]
        %v2629 = vld [vmem:[#allocation2 + $0x108] sm:$0xff]
        %v2630 = vld [vmem:[#allocation2 + $0x110] sm:$0xff]
        %v2631 = vld [vmem:[#allocation2 + $0x118] sm:$0xff]
        %v2632 = vld [vmem:[#allocation2 + $0x120] sm:$0xff]
        %v2633 = vld [vmem:[#allocation2 + $0x128] sm:$0xff]
        %v2634 = vld [vmem:[#allocation2 + $0x130] sm:$0xff]
        %v2635 = vld [vmem:[#allocation2 + $0x138] sm:$0xff]
        %v2636 = vld [vmem:[#allocation2 + $0x140] sm:$0xff]
        %v2637 = vld [vmem:[#allocation2 + $0x148] sm:$0xff]
        %v2638 = vld [vmem:[#allocation2 + $0x150] sm:$0xff]
        %v2639 = vld [vmem:[#allocation2 + $0x158] sm:$0xff]
        %v2640 = vld [vmem:[#allocation2 + $0x160] sm:$0xff]
        %v2641 = vld [vmem:[#allocation2 + $0x168] sm:$0xff]
        %v2642 = vld [vmem:[#allocation2 + $0x170] sm:$0xff]
        %v2643 = vld [vmem:[#allocation2 + $0x178] sm:$0xff]
        %s2644 = scalar_lea.vmem [#allocation7], 384
        %v2645 = vld [vmem:[%s2644] sm:$0xf]
        %v2646 = vld [vmem:[%s2644 + $0x4] sm:$0xf]
        %v2647 = vld [vmem:[%s2644 + $0x8] sm:$0xf]
        %v2648 = vld [vmem:[%s2644 + $0xc] sm:$0xf]
        %v2649 = vld [vmem:[%s2644 + $0x10] sm:$0xf]
        %v2650 = vld [vmem:[%s2644 + $0x14] sm:$0xf]
        %v2651 = vld [vmem:[%s2644 + $0x18] sm:$0xf]
        %v2652 = vld [vmem:[%s2644 + $0x1c] sm:$0xf]
        %v2653 = vld [vmem:[%s2644 + $0x20] sm:$0xf]
        %v2654 = vld [vmem:[%s2644 + $0x24] sm:$0xf]
        %v2655 = vld [vmem:[%s2644 + $0x28] sm:$0xf]
        %v2656 = vld [vmem:[%s2644 + $0x2c] sm:$0xf]
        %v2657 = vld [vmem:[%s2644 + $0x30] sm:$0xf]
        %v2658 = vld [vmem:[%s2644 + $0x34] sm:$0xf]
        %v2659 = vld [vmem:[%s2644 + $0x38] sm:$0xf]
        %v2660 = vld [vmem:[%s2644 + $0x3c] sm:$0xf]
        %v2661 = vld [vmem:[%s2644 + $0x40] sm:$0xf]
        %v2662 = vld [vmem:[%s2644 + $0x44] sm:$0xf]
        %v2663 = vld [vmem:[%s2644 + $0x48] sm:$0xf]
        %v2664 = vld [vmem:[%s2644 + $0x4c] sm:$0xf]
        %v2665 = vld [vmem:[%s2644 + $0x50] sm:$0xf]
        %v2666 = vld [vmem:[%s2644 + $0x54] sm:$0xf]
        %v2667 = vld [vmem:[%s2644 + $0x58] sm:$0xf]
        %v2668 = vld [vmem:[%s2644 + $0x5c] sm:$0xf]
        %v2669 = vld [vmem:[%s2644 + $0x60] sm:$0xf]
        %v2670 = vld [vmem:[%s2644 + $0x64] sm:$0xf]
        %v2671 = vld [vmem:[%s2644 + $0x68] sm:$0xf]
        %v2672 = vld [vmem:[%s2644 + $0x6c] sm:$0xf]
        %v2673 = vld [vmem:[%s2644 + $0x70] sm:$0xf]
        %v2674 = vld [vmem:[%s2644 + $0x74] sm:$0xf]
        %v2675 = vld [vmem:[%s2644 + $0x78] sm:$0xf]
        %v2676 = vld [vmem:[%s2644 + $0x7c] sm:$0xf]
        %v2677 = vld [vmem:[%s2644 + $0x80] sm:$0xf]
        %v2678 = vld [vmem:[%s2644 + $0x84] sm:$0xf]
        %v2679 = vld [vmem:[%s2644 + $0x88] sm:$0xf]
        %v2680 = vld [vmem:[%s2644 + $0x8c] sm:$0xf]
        %v2681 = vld [vmem:[%s2644 + $0x90] sm:$0xf]
        %v2682 = vld [vmem:[%s2644 + $0x94] sm:$0xf]
        %v2683 = vld [vmem:[%s2644 + $0x98] sm:$0xf]
        %v2684 = vld [vmem:[%s2644 + $0x9c] sm:$0xf]
        %v2685 = vld [vmem:[%s2644 + $0xa0] sm:$0xf]
        %v2686 = vld [vmem:[%s2644 + $0xa4] sm:$0xf]
        %v2687 = vld [vmem:[%s2644 + $0xa8] sm:$0xf]
        %v2688 = vld [vmem:[%s2644 + $0xac] sm:$0xf]
        %v2689 = vld [vmem:[%s2644 + $0xb0] sm:$0xf]
        %v2690 = vld [vmem:[%s2644 + $0xb4] sm:$0xf]
        %v2691 = vld [vmem:[%s2644 + $0xb8] sm:$0xf]
        %v2692 = vld [vmem:[%s2644 + $0xbc] sm:$0xf]
        %v2741 = vunpack.c.l.b16 %v2645
        %v2742 = vunpack.c.l.b16 %v2646
        %v2743 = vunpack.c.l.b16 %v2647
        %v2744 = vunpack.c.l.b16 %v2648
        %v2745 = vunpack.c.l.b16 %v2649
        %v2746 = vunpack.c.l.b16 %v2650
        %v2747 = vunpack.c.l.b16 %v2651
        %v2748 = vunpack.c.l.b16 %v2652
        %v2749 = vunpack.c.l.b16 %v2653
        %v2750 = vunpack.c.l.b16 %v2654
        %v2751 = vunpack.c.l.b16 %v2655
        %v2752 = vunpack.c.l.b16 %v2656
        %v2753 = vunpack.c.l.b16 %v2657
        %v2754 = vunpack.c.l.b16 %v2658
        %v2755 = vunpack.c.l.b16 %v2659
        %v2756 = vunpack.c.l.b16 %v2660
        %v2757 = vunpack.c.l.b16 %v2661
        %v2758 = vunpack.c.l.b16 %v2662
        %v2759 = vunpack.c.l.b16 %v2663
        %v2760 = vunpack.c.l.b16 %v2664
        %v2761 = vunpack.c.l.b16 %v2665
        %v2762 = vunpack.c.l.b16 %v2666
        %v2763 = vunpack.c.l.b16 %v2667
        %v2764 = vunpack.c.l.b16 %v2668
        %v2765 = vunpack.c.l.b16 %v2669
        %v2766 = vunpack.c.l.b16 %v2670
        %v2767 = vunpack.c.l.b16 %v2671
        %v2768 = vunpack.c.l.b16 %v2672
        %v2769 = vunpack.c.l.b16 %v2673
        %v2770 = vunpack.c.l.b16 %v2674
        %v2771 = vunpack.c.l.b16 %v2675
        %v2772 = vunpack.c.l.b16 %v2676
        %v2773 = vunpack.c.l.b16 %v2677
        %v2774 = vunpack.c.l.b16 %v2678
        %v2775 = vunpack.c.l.b16 %v2679
        %v2776 = vunpack.c.l.b16 %v2680
        %v2777 = vunpack.c.l.b16 %v2681
        %v2778 = vunpack.c.l.b16 %v2682
        %v2779 = vunpack.c.l.b16 %v2683
        %v2780 = vunpack.c.l.b16 %v2684
        %v2781 = vunpack.c.l.b16 %v2685
        %v2782 = vunpack.c.l.b16 %v2686
        %v2783 = vunpack.c.l.b16 %v2687
        %v2784 = vunpack.c.l.b16 %v2688
        %v2785 = vunpack.c.l.b16 %v2689
        %v2786 = vunpack.c.l.b16 %v2690
        %v2787 = vunpack.c.l.b16 %v2691
        %v2788 = vunpack.c.l.b16 %v2692
        %v2789 = vpack.c.b16 %v2742, %v2741
        %v2790 = vpack.c.b16 %v2744, %v2743
        %v2791 = vpack.c.b16 %v2746, %v2745
        %v2792 = vpack.c.b16 %v2748, %v2747
        %v2793 = vpack.c.b16 %v2750, %v2749
        %v2794 = vpack.c.b16 %v2752, %v2751
        %v2795 = vpack.c.b16 %v2754, %v2753
        %v2796 = vpack.c.b16 %v2756, %v2755
        %v2797 = vpack.c.b16 %v2758, %v2757
        %v2798 = vpack.c.b16 %v2760, %v2759
        %v2799 = vpack.c.b16 %v2762, %v2761
        %v2800 = vpack.c.b16 %v2764, %v2763
        %v2801 = vpack.c.b16 %v2766, %v2765
        %v2802 = vpack.c.b16 %v2768, %v2767
        %v2803 = vpack.c.b16 %v2770, %v2769
        %v2804 = vpack.c.b16 %v2772, %v2771
        %v2805 = vpack.c.b16 %v2774, %v2773
        %v2806 = vpack.c.b16 %v2776, %v2775
        %v2807 = vpack.c.b16 %v2778, %v2777
        %v2808 = vpack.c.b16 %v2780, %v2779
        %v2809 = vpack.c.b16 %v2782, %v2781
        %v2810 = vpack.c.b16 %v2784, %v2783
        %v2811 = vpack.c.b16 %v2786, %v2785
        %v2812 = vpack.c.b16 %v2788, %v2787
        %2837 = vmatprep.subr.bf16.mxu0 0
        %2838 = vmatpush1.bf16.msra.mxu0 %v2789
        %2839 = vmatprep.subr.bf16.mxu0 0
        %2840 = vmatpush1.bf16.msra.mxu0 %v2790
        %2841 = vmatprep.subr.bf16.mxu0 0
        %2842 = vmatpush1.bf16.msra.mxu0 %v2791
        %2843 = vmatprep.subr.bf16.mxu0 0
        %2844 = vmatpush1.bf16.msra.mxu0 %v2792
        %2845 = vmatprep.subr.bf16.mxu0 0
        %2846 = vmatpush1.bf16.msra.mxu0 %v2793
        %2847 = vmatprep.subr.bf16.mxu0 0
        %2848 = vmatpush1.bf16.msra.mxu0 %v2794
        %2849 = vmatprep.subr.bf16.mxu0 0
        %2850 = vmatpush1.bf16.msra.mxu0 %v2795
        %2851 = vmatprep.subr.bf16.mxu0 0
        %2852 = vmatpush1.bf16.msra.mxu0 %v2796
        %2853 = vmatprep.subr.bf16.mxu0 0
        %2854 = vmatpush1.bf16.msra.mxu0 %v2797
        %2855 = vmatprep.subr.bf16.mxu0 0
        %2856 = vmatpush1.bf16.msra.mxu0 %v2798
        %2857 = vmatprep.subr.bf16.mxu0 0
        %2858 = vmatpush1.bf16.msra.mxu0 %v2799
        %2859 = vmatprep.subr.bf16.mxu0 0
        %2860 = vmatpush1.bf16.msra.mxu0 %v2800
        %2861 = vmatprep.subr.bf16.mxu0 0
        %2862 = vmatpush1.bf16.msra.mxu0 %v2801
        %2863 = vmatprep.subr.bf16.mxu0 0
        %2864 = vmatpush1.bf16.msra.mxu0 %v2802
        %2865 = vmatprep.subr.bf16.mxu0 0
        %2866 = vmatpush1.bf16.msra.mxu0 %v2803
        %2867 = vmatprep.subr.bf16.mxu0 0
        %2868 = vmatpush1.bf16.msra.mxu0 %v2804
        %2869 = vmatprep.mubr.bf16.mxu0 %v2600
        %2870 = vmatmul.mubr.bf16.gmra.mrb[0].mxu0 %v2599
        %v2871 = vpop.f32.mrb[0].mxu0
        %v2872 = vadd.f32 0.0, %v2871
        %v2873 = vpop.f32.mrb[0].mxu0
        %v2874 = vpop.f32.mrb[0].mxu0
        %v2875 = vadd.f32 0.0, %v2874
        %v2876 = vpop.f32.mrb[0].mxu0
        %2877 = vmatprep.mubr.bf16.mxu0 %v2603
        %2878 = vmatmul.mubr.bf16.gmra.mrb[0].mxu0 %v2602
        %v2879 = vpop.f32.mrb[0].mxu0
        %v2880 = vadd.f32 0.0, %v2879
        %v2881 = vpop.f32.mrb[0].mxu0
        %v2882 = vpop.f32.mrb[0].mxu0
        %v2883 = vadd.f32 0.0, %v2882
        %v2884 = vpop.f32.mrb[0].mxu0
        %2885 = vmatprep.mubr.bf16.mxu0 %v2606
        %2886 = vmatmul.mubr.bf16.gmra.mrb[0].mxu0 %v2605
        %v2887 = vpop.f32.mrb[0].mxu0
        %v2888 = vadd.f32 0.0, %v2887
        %v2889 = vpop.f32.mrb[0].mxu0
        %v2890 = vpop.f32.mrb[0].mxu0
        %v2891 = vadd.f32 0.0, %v2890
        %v2892 = vpop.f32.mrb[0].mxu0
        %2893 = vmatprep.mubr.bf16.mxu0 %v2609
        %2894 = vmatmul.mubr.bf16.gmra.mrb[0].mxu0 %v2608
        %v2895 = vpop.f32.mrb[0].mxu0
        %v2896 = vadd.f32 0.0, %v2895
        %v2897 = vpop.f32.mrb[0].mxu0
        %v2898 = vpop.f32.mrb[0].mxu0
        %v2899 = vadd.f32 0.0, %v2898
        %v2900 = vpop.f32.mrb[0].mxu0
        %2901 = vmatprep.mubr.bf16.mxu0 %v2612
        %2902 = vmatmul.mubr.bf16.gmra.mrb[0].mxu0 %v2611
        %v2903 = vpop.f32.mrb[0].mxu0
        %v2904 = vadd.f32 0.0, %v2903
        %v2905 = vpop.f32.mrb[0].mxu0
        %v2906 = vpop.f32.mrb[0].mxu0
        %v2907 = vadd.f32 0.0, %v2906
        %v2908 = vpop.f32.mrb[0].mxu0
        %2909 = vmatprep.mubr.bf16.mxu0 %v2615
        %2910 = vmatmul.mubr.bf16.gmra.mrb[0].mxu0 %v2614
        %v2911 = vpop.f32.mrb[0].mxu0
        %v2912 = vadd.f32 0.0, %v2911
        %v2913 = vpop.f32.mrb[0].mxu0
        %v2914 = vpop.f32.mrb[0].mxu0
        %v2915 = vadd.f32 0.0, %v2914
        %v2916 = vpop.f32.mrb[0].mxu0
        %2917 = vmatprep.mubr.bf16.mxu0 %v2618
        %2918 = vmatmul.mubr.bf16.gmra.mrb[0].mxu0 %v2617
        %v2919 = vpop.f32.mrb[0].mxu0
        %v2920 = vadd.f32 0.0, %v2919
        %v2921 = vpop.f32.mrb[0].mxu0
        %v2922 = vpop.f32.mrb[0].mxu0
        %v2923 = vadd.f32 0.0, %v2922
        %v2924 = vpop.f32.mrb[0].mxu0
        %2925 = vmatprep.mubr.bf16.mxu0 %v2621
        %2926 = vmatmul.mubr.bf16.gmra.mrb[0].mxu0 %v2620
        %v2927 = vpop.f32.mrb[0].mxu0
        %v2928 = vadd.f32 0.0, %v2927
        %v2929 = vpop.f32.mrb[0].mxu0
        %v2930 = vpop.f32.mrb[0].mxu0
        %v2931 = vadd.f32 0.0, %v2930
        %v2932 = vpop.f32.mrb[0].mxu0
        %2933 = vmatprep.mubr.bf16.mxu0 %v2624
        %2934 = vmatmul.mubr.bf16.gmra.mrb[0].mxu0 %v2623
        %v2935 = vpop.f32.mrb[0].mxu0
        %v2936 = vadd.f32 0.0, %v2935
        %v2937 = vpop.f32.mrb[0].mxu0
        %v2938 = vpop.f32.mrb[0].mxu0
        %v2939 = vadd.f32 0.0, %v2938
        %v2940 = vpop.f32.mrb[0].mxu0
        %2941 = vmatprep.mubr.bf16.mxu0 %v2627
        %2942 = vmatmul.mubr.bf16.gmra.mrb[0].mxu0 %v2626
        %v2943 = vpop.f32.mrb[0].mxu0
        %v2944 = vadd.f32 0.0, %v2943
        %v2945 = vpop.f32.mrb[0].mxu0
        %v2946 = vpop.f32.mrb[0].mxu0
        %v2947 = vadd.f32 0.0, %v2946
        %v2948 = vpop.f32.mrb[0].mxu0
        %2949 = vmatprep.mubr.bf16.mxu0 %v2630
        %2950 = vmatmul.mubr.bf16.gmra.mrb[0].mxu0 %v2629
        %v2951 = vpop.f32.mrb[0].mxu0
        %v2952 = vadd.f32 0.0, %v2951
        %v2953 = vpop.f32.mrb[0].mxu0
        %v2954 = vpop.f32.mrb[0].mxu0
        %v2955 = vadd.f32 0.0, %v2954
        %v2956 = vpop.f32.mrb[0].mxu0
        %2957 = vmatprep.mubr.bf16.mxu0 %v2633
        %2958 = vmatmul.mubr.bf16.gmra.mrb[0].mxu0 %v2632
        %v2959 = vpop.f32.mrb[0].mxu0
        %v2960 = vadd.f32 0.0, %v2959
        %v2961 = vpop.f32.mrb[0].mxu0
        %v2962 = vpop.f32.mrb[0].mxu0
        %v2963 = vadd.f32 0.0, %v2962
        %v2964 = vpop.f32.mrb[0].mxu0
        %2965 = vmatprep.mubr.bf16.mxu0 %v2636
        %2966 = vmatmul.mubr.bf16.gmra.mrb[0].mxu0 %v2635
        %v2967 = vpop.f32.mrb[0].mxu0
        %v2968 = vadd.f32 0.0, %v2967
        %v2969 = vpop.f32.mrb[0].mxu0
        %v2970 = vpop.f32.mrb[0].mxu0
        %v2971 = vadd.f32 0.0, %v2970
        %v2972 = vpop.f32.mrb[0].mxu0
        %2973 = vmatprep.mubr.bf16.mxu0 %v2639
        %2974 = vmatmul.mubr.bf16.gmra.mrb[0].mxu0 %v2638
        %v2975 = vpop.f32.mrb[0].mxu0
        %v2976 = vadd.f32 0.0, %v2975
        %v2977 = vpop.f32.mrb[0].mxu0
        %v2978 = vpop.f32.mrb[0].mxu0
        %v2979 = vadd.f32 0.0, %v2978
        %v2980 = vpop.f32.mrb[0].mxu0
        %2981 = vmatprep.mubr.bf16.mxu0 %v2642
        %2982 = vmatmul.mubr.bf16.gmra.mrb[0].mxu0 %v2641
        %v2983 = vpop.f32.mrb[0].mxu0
        %v2984 = vadd.f32 0.0, %v2983
        %v2985 = vpop.f32.mrb[0].mxu0
        %v2986 = vpop.f32.mrb[0].mxu0
        %v2987 = vadd.f32 0.0, %v2986
        %v2988 = vpop.f32.mrb[0].mxu0
        %2989 = vdwg.mxu0
        %2990 = vmatprep.subr.bf16.mxu0 0
        %2991 = vmatpush1.bf16.msra.mxu0 %v2805
        %2992 = vmatprep.subr.bf16.mxu0 0
        %2993 = vmatpush1.bf16.msra.mxu0 %v2806
        %2994 = vmatprep.subr.bf16.mxu0 0
        %2995 = vmatpush1.bf16.msra.mxu0 %v2807
        %2996 = vmatprep.subr.bf16.mxu0 0
        %2997 = vmatpush1.bf16.msra.mxu0 %v2808
        %2998 = vmatprep.subr.bf16.mxu0 0
        %2999 = vmatpush1.bf16.msra.mxu0 %v2809
        %3000 = vmatprep.subr.bf16.mxu0 0
        %3001 = vmatpush1.bf16.msra.mxu0 %v2810
        %3002 = vmatprep.subr.bf16.mxu0 0
        %3003 = vmatpush1.bf16.msra.mxu0 %v2811
        %3004 = vmatprep.subr.bf16.mxu0 0
        %3005 = vmatpush1.bf16.msra.mxu0 %v2812
        %3006 = vmatprep.subr.bf16.mxu0 0
        %3007 = vmatpush1.bf16.msra.mxu0 0
        %3008 = vmatprep.subr.bf16.mxu0 0
        %3009 = vmatpush1.bf16.msra.mxu0 0
        %3010 = vmatprep.subr.bf16.mxu0 0
        %3011 = vmatpush1.bf16.msra.mxu0 0
        %3012 = vmatprep.subr.bf16.mxu0 0
        %3013 = vmatpush1.bf16.msra.mxu0 0
        %3014 = vmatprep.subr.bf16.mxu0 0
        %3015 = vmatpush1.bf16.msra.mxu0 0
        %3016 = vmatprep.subr.bf16.mxu0 0
        %3017 = vmatpush1.bf16.msra.mxu0 0
        %3018 = vmatprep.subr.bf16.mxu0 0
        %3019 = vmatpush1.bf16.msra.mxu0 0
        %3020 = vmatprep.subr.bf16.mxu0 0
        %3021 = vmatpush1.bf16.msra.mxu0 0
        %3022 = vmatprep.mubr.bf16.mxu0 0
        %3023 = vmatmul.mubr.bf16.gmra.mrb[0].mxu0 %v2601
        %v3024 = vpop.f32.mrb[0].mxu0
        %v3025 = vadd.f32 %v2872, %v3024
        %v3026 = vpop.f32.mrb[0].mxu0
        %v3027 = vpop.f32.mrb[0].mxu0
        %v3028 = vadd.f32 %v2875, %v3027
        %v3029 = vpop.f32.mrb[0].mxu0
        %3030 = vmatprep.mubr.bf16.mxu0 0
        %3031 = vmatmul.mubr.bf16.gmra.mrb[0].mxu0 %v2604
        %v3032 = vpop.f32.mrb[0].mxu0
        %v3033 = vadd.f32 %v2880, %v3032
        %v3034 = vpop.f32.mrb[0].mxu0
        %v3035 = vpop.f32.mrb[0].mxu0
        %v3036 = vadd.f32 %v2883, %v3035
        %v3037 = vpop.f32.mrb[0].mxu0
        %3038 = vmatprep.mubr.bf16.mxu0 0
        %3039 = vmatmul.mubr.bf16.gmra.mrb[0].mxu0 %v2607
        %v3040 = vpop.f32.mrb[0].mxu0
        %v3041 = vadd.f32 %v2888, %v3040
        %v3042 = vpop.f32.mrb[0].mxu0
        %v3043 = vpop.f32.mrb[0].mxu0
        %v3044 = vadd.f32 %v2891, %v3043
        %v3045 = vpop.f32.mrb[0].mxu0
        %3046 = vmatprep.mubr.bf16.mxu0 0
        %3047 = vmatmul.mubr.bf16.gmra.mrb[0].mxu0 %v2610
        %v3048 = vpop.f32.mrb[0].mxu0
        %v3049 = vadd.f32 %v2896, %v3048
        %v3050 = vpop.f32.mrb[0].mxu0
        %v3051 = vpop.f32.mrb[0].mxu0
        %v3052 = vadd.f32 %v2899, %v3051
        %v3053 = vpop.f32.mrb[0].mxu0
        %3054 = vmatprep.mubr.bf16.mxu0 0
        %3055 = vmatmul.mubr.bf16.gmra.mrb[0].mxu0 %v2613
        %v3056 = vpop.f32.mrb[0].mxu0
        %v3057 = vadd.f32 %v2904, %v3056
        %v3058 = vpop.f32.mrb[0].mxu0
        %v3059 = vpop.f32.mrb[0].mxu0
        %v3060 = vadd.f32 %v2907, %v3059
        %v3061 = vpop.f32.mrb[0].mxu0
        %3062 = vmatprep.mubr.bf16.mxu0 0
        %3063 = vmatmul.mubr.bf16.gmra.mrb[0].mxu0 %v2616
        %v3064 = vpop.f32.mrb[0].mxu0
        %v3065 = vadd.f32 %v2912, %v3064
        %v3066 = vpop.f32.mrb[0].mxu0
        %v3067 = vpop.f32.mrb[0].mxu0
        %v3068 = vadd.f32 %v2915, %v3067
        %v3069 = vpop.f32.mrb[0].mxu0
        %3070 = vmatprep.mubr.bf16.mxu0 0
        %3071 = vmatmul.mubr.bf16.gmra.mrb[0].mxu0 %v2619
        %v3072 = vpop.f32.mrb[0].mxu0
        %v3073 = vadd.f32 %v2920, %v3072
        %v3074 = vpop.f32.mrb[0].mxu0
        %v3075 = vpop.f32.mrb[0].mxu0
        %v3076 = vadd.f32 %v2923, %v3075
        %v3077 = vpop.f32.mrb[0].mxu0
        %3078 = vmatprep.mubr.bf16.mxu0 0
        %3079 = vmatmul.mubr.bf16.gmra.mrb[0].mxu0 %v2622
        %v3080 = vpop.f32.mrb[0].mxu0
        %v3081 = vadd.f32 %v2928, %v3080
        %v3082 = vpop.f32.mrb[0].mxu0
        %v3083 = vpop.f32.mrb[0].mxu0
        %v3084 = vadd.f32 %v2931, %v3083
        %v3085 = vpop.f32.mrb[0].mxu0
        %3086 = vmatprep.mubr.bf16.mxu0 0
        %3087 = vmatmul.mubr.bf16.gmra.mrb[0].mxu0 %v2625
        %v3088 = vpop.f32.mrb[0].mxu0
        %v3089 = vadd.f32 %v2936, %v3088
        %v3090 = vpop.f32.mrb[0].mxu0
        %v3091 = vpop.f32.mrb[0].mxu0
        %v3092 = vadd.f32 %v2939, %v3091
        %v3093 = vpop.f32.mrb[0].mxu0
        %3094 = vmatprep.mubr.bf16.mxu0 0
        %3095 = vmatmul.mubr.bf16.gmra.mrb[0].mxu0 %v2628
        %v3096 = vpop.f32.mrb[0].mxu0
        %v3097 = vadd.f32 %v2944, %v3096
        %v3098 = vpop.f32.mrb[0].mxu0
        %v3099 = vpop.f32.mrb[0].mxu0
        %v3100 = vadd.f32 %v2947, %v3099
        %v3101 = vpop.f32.mrb[0].mxu0
        %3102 = vmatprep.mubr.bf16.mxu0 0
        %3103 = vmatmul.mubr.bf16.gmra.mrb[0].mxu0 %v2631
        %v3104 = vpop.f32.mrb[0].mxu0
        %v3105 = vadd.f32 %v2952, %v3104
        %v3106 = vpop.f32.mrb[0].mxu0
        %v3107 = vpop.f32.mrb[0].mxu0
        %v3108 = vadd.f32 %v2955, %v3107
        %v3109 = vpop.f32.mrb[0].mxu0
        %3110 = vmatprep.mubr.bf16.mxu0 0
        %3111 = vmatmul.mubr.bf16.gmra.mrb[0].mxu0 %v2634
        %v3112 = vpop.f32.mrb[0].mxu0
        %v3113 = vadd.f32 %v2960, %v3112
        %v3114 = vpop.f32.mrb[0].mxu0
        %v3115 = vpop.f32.mrb[0].mxu0
        %v3116 = vadd.f32 %v2963, %v3115
        %v3117 = vpop.f32.mrb[0].mxu0
        %3118 = vmatprep.mubr.bf16.mxu0 0
        %3119 = vmatmul.mubr.bf16.gmra.mrb[0].mxu0 %v2637
        %v3120 = vpop.f32.mrb[0].mxu0
        %v3121 = vadd.f32 %v2968, %v3120
        %v3122 = vpop.f32.mrb[0].mxu0
        %v3123 = vpop.f32.mrb[0].mxu0
        %v3124 = vadd.f32 %v2971, %v3123
        %v3125 = vpop.f32.mrb[0].mxu0
        %3126 = vmatprep.mubr.bf16.mxu0 0
        %3127 = vmatmul.mubr.bf16.gmra.mrb[0].mxu0 %v2640
        %v3128 = vpop.f32.mrb[0].mxu0
        %v3129 = vadd.f32 %v2976, %v3128
        %v3130 = vpop.f32.mrb[0].mxu0
        %v3131 = vpop.f32.mrb[0].mxu0
        %v3132 = vadd.f32 %v2979, %v3131
        %v3133 = vpop.f32.mrb[0].mxu0
        %3134 = vmatprep.mubr.bf16.mxu0 0
        %3135 = vmatmul.mubr.bf16.gmra.mrb[0].mxu0 %v2643
        %v3136 = vpop.f32.mrb[0].mxu0
        %v3137 = vadd.f32 %v2984, %v3136
        %v3138 = vpop.f32.mrb[0].mxu0
        %v3139 = vpop.f32.mrb[0].mxu0
        %v3140 = vadd.f32 %v2987, %v3139
        %v3141 = vpop.f32.mrb[0].mxu0
        %3142 = vdwg.mxu0
        %v3143 = vadd.f32 %v2569, %v3025
        %v3144 = vadd.f32 %v2570, %v3028
        %v3145 = vadd.f32 %v2571, %v3033
        %v3146 = vadd.f32 %v2572, %v3036
        %v3147 = vadd.f32 %v2573, %v3041
        %v3148 = vadd.f32 %v2574, %v3044
        %v3149 = vadd.f32 %v2575, %v3049
        %v3150 = vadd.f32 %v2576, %v3052
        %v3151 = vadd.f32 %v2577, %v3057
        %v3152 = vadd.f32 %v2578, %v3060
        %v3153 = vadd.f32 %v2579, %v3065
        %v3154 = vadd.f32 %v2580, %v3068
        %v3155 = vadd.f32 %v2581, %v3073
        %v3156 = vadd.f32 %v2582, %v3076
        %v3157 = vadd.f32 %v2583, %v3081
        %v3158 = vadd.f32 %v2584, %v3084
        %v3159 = vadd.f32 %v2585, %v3089
        %v3160 = vadd.f32 %v2586, %v3092
        %v3161 = vadd.f32 %v2587, %v3097
        %v3162 = vadd.f32 %v2588, %v3100
        %v3163 = vadd.f32 %v2589, %v3105
        %v3164 = vadd.f32 %v2590, %v3108
        %v3165 = vadd.f32 %v2591, %v3113
        %v3166 = vadd.f32 %v2592, %v3116
        %v3167 = vadd.f32 %v2593, %v3121
        %v3168 = vadd.f32 %v2594, %v3124
        %v3169 = vadd.f32 %v2595, %v3129
        %v3170 = vadd.f32 %v2596, %v3132
        %v3171 = vadd.f32 %v2597, %v3137
        %v3172 = vadd.f32 %v2598, %v3140
        %3173 = vst [vmem:[#allocation3] sm:$0xff] %v3143
        %3174 = vst [vmem:[#allocation3 + $0x8] sm:$0xff] %v3144
        %3175 = vst [vmem:[#allocation3 + $0x10] sm:$0xff] %v3145
        %3176 = vst [vmem:[#allocation3 + $0x18] sm:$0xff] %v3146
        %3177 = vst [vmem:[#allocation3 + $0x20] sm:$0xff] %v3147
        %3178 = vst [vmem:[#allocation3 + $0x28] sm:$0xff] %v3148
        %3179 = vst [vmem:[#allocation3 + $0x30] sm:$0xff] %v3149
        %3180 = vst [vmem:[#allocation3 + $0x38] sm:$0xff] %v3150
        %3181 = vst [vmem:[#allocation3 + $0x40] sm:$0xff] %v3151
        %3182 = vst [vmem:[#allocation3 + $0x48] sm:$0xff] %v3152
        %3183 = vst [vmem:[#allocation3 + $0x50] sm:$0xff] %v3153
        %3184 = vst [vmem:[#allocation3 + $0x58] sm:$0xff] %v3154
        %3185 = vst [vmem:[#allocation3 + $0x60] sm:$0xff] %v3155
        %3186 = vst [vmem:[#allocation3 + $0x68] sm:$0xff] %v3156
        %3187 = vst [vmem:[#allocation3 + $0x70] sm:$0xff] %v3157
        %3188 = vst [vmem:[#allocation3 + $0x78] sm:$0xff] %v3158
        %3189 = vst [vmem:[#allocation3 + $0x80] sm:$0xff] %v3159
        %3190 = vst [vmem:[#allocation3 + $0x88] sm:$0xff] %v3160
        %3191 = vst [vmem:[#allocation3 + $0x90] sm:$0xff] %v3161
        %3192 = vst [vmem:[#allocation3 + $0x98] sm:$0xff] %v3162
        %3193 = vst [vmem:[#allocation3 + $0xa0] sm:$0xff] %v3163
        %3194 = vst [vmem:[#allocation3 + $0xa8] sm:$0xff] %v3164
        %3195 = vst [vmem:[#allocation3 + $0xb0] sm:$0xff] %v3165
        %3196 = vst [vmem:[#allocation3 + $0xb8] sm:$0xff] %v3166
        %3197 = vst [vmem:[#allocation3 + $0xc0] sm:$0xff] %v3167
        %3198 = vst [vmem:[#allocation3 + $0xc8] sm:$0xff] %v3168
        %3199 = vst [vmem:[#allocation3 + $0xd0] sm:$0xff] %v3169
        %3200 = vst [vmem:[#allocation3 + $0xd8] sm:$0xff] %v3170
        %3201 = vst [vmem:[#allocation3 + $0xe0] sm:$0xff] %v3171
        %3202 = vst [vmem:[#allocation3 + $0xe8] sm:$0xff] %v3172
        %v3203 = vld [vmem:[#allocation3] sm:$0xff]
        %v3204 = vld [vmem:[#allocation3 + $0x8] sm:$0xff]
        %v3205 = vld [vmem:[#allocation3 + $0x10] sm:$0xff]
        %v3206 = vld [vmem:[#allocation3 + $0x18] sm:$0xff]
        %v3207 = vld [vmem:[#allocation3 + $0x20] sm:$0xff]
        %v3208 = vld [vmem:[#allocation3 + $0x28] sm:$0xff]
        %v3209 = vld [vmem:[#allocation3 + $0x30] sm:$0xff]
        %v3210 = vld [vmem:[#allocation3 + $0x38] sm:$0xff]
        %v3211 = vld [vmem:[#allocation3 + $0x40] sm:$0xff]
        %v3212 = vld [vmem:[#allocation3 + $0x48] sm:$0xff]
        %v3213 = vld [vmem:[#allocation3 + $0x50] sm:$0xff]
        %v3214 = vld [vmem:[#allocation3 + $0x58] sm:$0xff]
        %v3215 = vld [vmem:[#allocation3 + $0x60] sm:$0xff]
        %v3216 = vld [vmem:[#allocation3 + $0x68] sm:$0xff]
        %v3217 = vld [vmem:[#allocation3 + $0x70] sm:$0xff]
        %v3218 = vld [vmem:[#allocation3 + $0x78] sm:$0xff]
        %v3219 = vld [vmem:[#allocation3 + $0x80] sm:$0xff]
        %v3220 = vld [vmem:[#allocation3 + $0x88] sm:$0xff]
        %v3221 = vld [vmem:[#allocation3 + $0x90] sm:$0xff]
        %v3222 = vld [vmem:[#allocation3 + $0x98] sm:$0xff]
        %v3223 = vld [vmem:[#allocation3 + $0xa0] sm:$0xff]
        %v3224 = vld [vmem:[#allocation3 + $0xa8] sm:$0xff]
        %v3225 = vld [vmem:[#allocation3 + $0xb0] sm:$0xff]
        %v3226 = vld [vmem:[#allocation3 + $0xb8] sm:$0xff]
        %v3227 = vld [vmem:[#allocation3 + $0xc0] sm:$0xff]
        %v3228 = vld [vmem:[#allocation3 + $0xc8] sm:$0xff]
        %v3229 = vld [vmem:[#allocation3 + $0xd0] sm:$0xff]
        %v3230 = vld [vmem:[#allocation3 + $0xd8] sm:$0xff]
        %v3231 = vld [vmem:[#allocation3 + $0xe0] sm:$0xff]
        %v3232 = vld [vmem:[#allocation3 + $0xe8] sm:$0xff]
        %v3233 = vld [vmem:[#allocation3 + $0xf0] sm:$0xff]
        %v3234 = vld [vmem:[#allocation3 + $0xf8] sm:$0xff]
        %v3235 = vld [vmem:[#allocation9] sm:$0x1]
        %v3237 = vlaneseq
        %v3238 = vshrl.u32 %v3237, 7
        %v3239 = vsub.s32 0, %v3238
        %v3240 = vrot.slane %v3235, %v3239
        %v3242 = vadd.f32 %v3203, %v3240
        %v3243 = vadd.f32 %v3204, %v3240
        %v3244 = vadd.f32 %v3205, %v3240
        %v3245 = vadd.f32 %v3206, %v3240
        %v3246 = vadd.f32 %v3207, %v3240
        %v3247 = vadd.f32 %v3208, %v3240
        %v3248 = vadd.f32 %v3209, %v3240
        %v3249 = vadd.f32 %v3210, %v3240
        %v3250 = vadd.f32 %v3211, %v3240
        %v3251 = vadd.f32 %v3212, %v3240
        %v3252 = vadd.f32 %v3213, %v3240
        %v3253 = vadd.f32 %v3214, %v3240
        %v3254 = vadd.f32 %v3215, %v3240
        %v3255 = vadd.f32 %v3216, %v3240
        %v3256 = vadd.f32 %v3217, %v3240
        %v3257 = vadd.f32 %v3218, %v3240
        %v3258 = vadd.f32 %v3219, %v3240
        %v3259 = vadd.f32 %v3220, %v3240
        %v3260 = vadd.f32 %v3221, %v3240
        %v3261 = vadd.f32 %v3222, %v3240
        %v3262 = vadd.f32 %v3223, %v3240
        %v3263 = vadd.f32 %v3224, %v3240
        %v3264 = vadd.f32 %v3225, %v3240
        %v3265 = vadd.f32 %v3226, %v3240
        %v3266 = vadd.f32 %v3227, %v3240
        %v3267 = vadd.f32 %v3228, %v3240
        %v3268 = vadd.f32 %v3229, %v3240
        %v3269 = vadd.f32 %v3230, %v3240
        %v3270 = vadd.f32 %v3231, %v3240
        %v3271 = vadd.f32 %v3232, %v3240
        %v3272 = vadd.f32 %v3233, %v3240
        %v3273 = vadd.f32 %v3234, %v3240
        %v3274 = vmax.f32 %v3242, 0.0
        %v3275 = vmax.f32 %v3243, 0.0
        %v3276 = vmax.f32 %v3244, 0.0
        %v3277 = vmax.f32 %v3245, 0.0
        %v3278 = vmax.f32 %v3246, 0.0
        %v3279 = vmax.f32 %v3247, 0.0
        %v3280 = vmax.f32 %v3248, 0.0
        %v3281 = vmax.f32 %v3249, 0.0
        %v3282 = vmax.f32 %v3250, 0.0
        %v3283 = vmax.f32 %v3251, 0.0
        %v3284 = vmax.f32 %v3252, 0.0
        %v3285 = vmax.f32 %v3253, 0.0
        %v3286 = vmax.f32 %v3254, 0.0
        %v3287 = vmax.f32 %v3255, 0.0
        %v3288 = vmax.f32 %v3256, 0.0
        %v3289 = vmax.f32 %v3257, 0.0
        %v3290 = vmax.f32 %v3258, 0.0
        %v3291 = vmax.f32 %v3259, 0.0
        %v3292 = vmax.f32 %v3260, 0.0
        %v3293 = vmax.f32 %v3261, 0.0
        %v3294 = vmax.f32 %v3262, 0.0
        %v3295 = vmax.f32 %v3263, 0.0
        %v3296 = vmax.f32 %v3264, 0.0
        %v3297 = vmax.f32 %v3265, 0.0
        %v3298 = vmax.f32 %v3266, 0.0
        %v3299 = vmax.f32 %v3267, 0.0
        %v3300 = vmax.f32 %v3268, 0.0
        %v3301 = vmax.f32 %v3269, 0.0
        %v3302 = vmax.f32 %v3270, 0.0
        %v3303 = vmax.f32 %v3271, 0.0
        %v3304 = vmax.f32 %v3272, 0.0
        %v3305 = vmax.f32 %v3273, 0.0
        %v3306 = vpack.c.bf16 %v3275, %v3274
        %v3307 = vpack.c.bf16 %v3277, %v3276
        %v3308 = vpack.c.bf16 %v3279, %v3278
        %v3309 = vpack.c.bf16 %v3281, %v3280
        %v3310 = vpack.c.bf16 %v3283, %v3282
        %v3311 = vpack.c.bf16 %v3285, %v3284
        %v3312 = vpack.c.bf16 %v3287, %v3286
        %v3313 = vpack.c.bf16 %v3289, %v3288
        %v3314 = vpack.c.bf16 %v3291, %v3290
        %v3315 = vpack.c.bf16 %v3293, %v3292
        %v3316 = vpack.c.bf16 %v3295, %v3294
        %v3317 = vpack.c.bf16 %v3297, %v3296
        %v3318 = vpack.c.bf16 %v3299, %v3298
        %v3319 = vpack.c.bf16 %v3301, %v3300
        %v3320 = vpack.c.bf16 %v3303, %v3302
        %v3321 = vpack.c.bf16 %v3305, %v3304
        %3322 = vst [vmem:[#allocation2 + $0x8] sm:$0xff] %v3306
        %3323 = vst [vmem:[#allocation2 + $0x20] sm:$0xff] %v3307
        %3324 = vst [vmem:[#allocation2 + $0x38] sm:$0xff] %v3308
        %3325 = vst [vmem:[#allocation2 + $0x50] sm:$0xff] %v3309
        %3326 = vst [vmem:[#allocation2 + $0x68] sm:$0xff] %v3310
        %3327 = vst [vmem:[#allocation2 + $0x80] sm:$0xff] %v3311
        %3328 = vst [vmem:[#allocation2 + $0x98] sm:$0xff] %v3312
        %3329 = vst [vmem:[#allocation2 + $0xb0] sm:$0xff] %v3313
        %3330 = vst [vmem:[#allocation2 + $0xc8] sm:$0xff] %v3314
        %3331 = vst [vmem:[#allocation2 + $0xe0] sm:$0xff] %v3315
        %3332 = vst [vmem:[#allocation2 + $0xf8] sm:$0xff] %v3316
        %3333 = vst [vmem:[#allocation2 + $0x110] sm:$0xff] %v3317
        %3334 = vst [vmem:[#allocation2 + $0x128] sm:$0xff] %v3318
        %3335 = vst [vmem:[#allocation2 + $0x140] sm:$0xff] %v3319
        %3336 = vst [vmem:[#allocation2 + $0x158] sm:$0xff] %v3320
        %3337 = vst [vmem:[#allocation2 + $0x170] sm:$0xff] %v3321
        %v3338 = vrot.slane %v3274, 7
        %v3339 = vrot.slane %v3275, 7
        %v3340 = vrot.slane %v3276, 7
        %v3341 = vrot.slane %v3277, 7
        %v3342 = vrot.slane %v3278, 7
        %v3343 = vrot.slane %v3279, 7
        %v3344 = vrot.slane %v3280, 7
        %v3345 = vrot.slane %v3281, 7
        %v3346 = vrot.slane %v3282, 7
        %v3347 = vrot.slane %v3283, 7
        %v3348 = vrot.slane %v3284, 7
        %v3349 = vrot.slane %v3285, 7
        %v3350 = vrot.slane %v3286, 7
        %v3351 = vrot.slane %v3287, 7
        %v3352 = vrot.slane %v3288, 7
        %v3353 = vrot.slane %v3289, 7
        %v3354 = vrot.slane %v3290, 7
        %v3355 = vrot.slane %v3291, 7
        %v3356 = vrot.slane %v3292, 7
        %v3357 = vrot.slane %v3293, 7
        %v3358 = vrot.slane %v3294, 7
        %v3359 = vrot.slane %v3295, 7
        %v3360 = vrot.slane %v3296, 7
        %v3361 = vrot.slane %v3297, 7
        %v3362 = vrot.slane %v3298, 7
        %v3363 = vrot.slane %v3299, 7
        %v3364 = vrot.slane %v3300, 7
        %v3365 = vrot.slane %v3301, 7
        %v3366 = vrot.slane %v3302, 7
        %v3367 = vrot.slane %v3303, 7
        %v3368 = vrot.slane %v3304, 7
        %v3369 = vrot.slane %v3305, 7
        %v3370 = vsel %vm987, %v3368, %v3369
        %v3371 = vsel %vm987, %v3367, %v3368
        %v3372 = vsel %vm987, %v3366, %v3367
        %v3373 = vsel %vm987, %v3365, %v3366
        %v3374 = vsel %vm987, %v3364, %v3365
        %v3375 = vsel %vm987, %v3363, %v3364
        %v3376 = vsel %vm987, %v3362, %v3363
        %v3377 = vsel %vm987, %v3361, %v3362
        %v3378 = vsel %vm987, %v3360, %v3361
        %v3379 = vsel %vm987, %v3359, %v3360
        %v3380 = vsel %vm987, %v3358, %v3359
        %v3381 = vsel %vm987, %v3357, %v3358
        %v3382 = vsel %vm987, %v3356, %v3357
        %v3383 = vsel %vm987, %v3355, %v3356
        %v3384 = vsel %vm987, %v3354, %v3355
        %v3385 = vsel %vm987, %v3353, %v3354
        %v3386 = vsel %vm987, %v3352, %v3353
        %v3387 = vsel %vm987, %v3351, %v3352
        %v3388 = vsel %vm987, %v3350, %v3351
        %v3389 = vsel %vm987, %v3349, %v3350
        %v3390 = vsel %vm987, %v3348, %v3349
        %v3391 = vsel %vm987, %v3347, %v3348
        %v3392 = vsel %vm987, %v3346, %v3347
        %v3393 = vsel %vm987, %v3345, %v3346
        %v3394 = vsel %vm987, %v3344, %v3345
        %v3395 = vsel %vm987, %v3343, %v3344
        %v3396 = vsel %vm987, %v3342, %v3343
        %v3397 = vsel %vm987, %v3341, %v3342
        %v3398 = vsel %vm987, %v3340, %v3341
        %v3399 = vsel %vm987, %v3339, %v3340
        %v3400 = vsel %vm987, %v3338, %v3339
        %v3401 = vsel %vm987, %v3369, %v3338
        %v3402 = vsel %vm1052, %v3401, 0.0
        %v3403 = vsel %vm1053, %v3400, 0.0
        %v3404 = vsel %vm1054, %v3399, 0.0
        %v3405 = vsel %vm1055, %v3398, 0.0
        %v3406 = vsel %vm1056, %v3397, 0.0
        %v3407 = vsel %vm1057, %v3396, 0.0
        %v3408 = vsel %vm1058, %v3395, 0.0
        %v3409 = vsel %vm1059, %v3394, 0.0
        %v3410 = vsel %vm1060, %v3393, 0.0
        %v3411 = vsel %vm1061, %v3392, 0.0
        %v3412 = vsel %vm1062, %v3391, 0.0
        %v3413 = vsel %vm1063, %v3390, 0.0
        %v3414 = vsel %vm1064, %v3389, 0.0
        %v3415 = vsel %vm1065, %v3388, 0.0
        %v3416 = vsel %vm1066, %v3387, 0.0
        %v3417 = vsel %vm1067, %v3386, 0.0
        %v3418 = vsel %vm1068, %v3385, 0.0
        %v3419 = vsel %vm1069, %v3384, 0.0
        %v3420 = vsel %vm1070, %v3383, 0.0
        %v3421 = vsel %vm1071, %v3382, 0.0
        %v3422 = vsel %vm1072, %v3381, 0.0
        %v3423 = vsel %vm1073, %v3380, 0.0
        %v3424 = vsel %vm1074, %v3379, 0.0
        %v3425 = vsel %vm1075, %v3378, 0.0
        %v3426 = vsel %vm1076, %v3377, 0.0
        %v3427 = vsel %vm1077, %v3376, 0.0
        %v3428 = vsel %vm1078, %v3375, 0.0
        %v3429 = vsel %vm1079, %v3374, 0.0
        %v3430 = vsel %vm1080, %v3373, 0.0
        %v3431 = vsel %vm1081, %v3372, 0.0
        %v3432 = vsel %vm1082, %v3371, 0.0
        %v3433 = vsel %vm1083, %v3370, 0.0
        %v3434 = vpack.c.bf16 %v3403, %v3402
        %v3435 = vpack.c.bf16 %v3405, %v3404
        %v3436 = vpack.c.bf16 %v3407, %v3406
        %v3437 = vpack.c.bf16 %v3409, %v3408
        %v3438 = vpack.c.bf16 %v3411, %v3410
        %v3439 = vpack.c.bf16 %v3413, %v3412
        %v3440 = vpack.c.bf16 %v3415, %v3414
        %v3441 = vpack.c.bf16 %v3417, %v3416
        %v3442 = vpack.c.bf16 %v3419, %v3418
        %v3443 = vpack.c.bf16 %v3421, %v3420
        %v3444 = vpack.c.bf16 %v3423, %v3422
        %v3445 = vpack.c.bf16 %v3425, %v3424
        %v3446 = vpack.c.bf16 %v3427, %v3426
        %v3447 = vpack.c.bf16 %v3429, %v3428
        %v3448 = vpack.c.bf16 %v3431, %v3430
        %v3449 = vpack.c.bf16 %v3433, %v3432
        %3450 = vst [vmem:[#allocation2] sm:$0xff] %v3434
        %3451 = vst [vmem:[#allocation2 + $0x18] sm:$0xff] %v3435
        %3452 = vst [vmem:[#allocation2 + $0x30] sm:$0xff] %v3436
        %3453 = vst [vmem:[#allocation2 + $0x48] sm:$0xff] %v3437
        %3454 = vst [vmem:[#allocation2 + $0x60] sm:$0xff] %v3438
        %3455 = vst [vmem:[#allocation2 + $0x78] sm:$0xff] %v3439
        %3456 = vst [vmem:[#allocation2 + $0x90] sm:$0xff] %v3440
        %3457 = vst [vmem:[#allocation2 + $0xa8] sm:$0xff] %v3441
        %3458 = vst [vmem:[#allocation2 + $0xc0] sm:$0xff] %v3442
        %3459 = vst [vmem:[#allocation2 + $0xd8] sm:$0xff] %v3443
        %3460 = vst [vmem:[#allocation2 + $0xf0] sm:$0xff] %v3444
        %3461 = vst [vmem:[#allocation2 + $0x108] sm:$0xff] %v3445
        %3462 = vst [vmem:[#allocation2 + $0x120] sm:$0xff] %v3446
        %3463 = vst [vmem:[#allocation2 + $0x138] sm:$0xff] %v3447
        %3464 = vst [vmem:[#allocation2 + $0x150] sm:$0xff] %v3448
        %3465 = vst [vmem:[#allocation2 + $0x168] sm:$0xff] %v3449
        %v3466 = vrot.slane %v3274, 1
        %v3467 = vrot.slane %v3275, 1
        %v3468 = vrot.slane %v3276, 1
        %v3469 = vrot.slane %v3277, 1
        %v3470 = vrot.slane %v3278, 1
        %v3471 = vrot.slane %v3279, 1
        %v3472 = vrot.slane %v3280, 1
        %v3473 = vrot.slane %v3281, 1
        %v3474 = vrot.slane %v3282, 1
        %v3475 = vrot.slane %v3283, 1
        %v3476 = vrot.slane %v3284, 1
        %v3477 = vrot.slane %v3285, 1
        %v3478 = vrot.slane %v3286, 1
        %v3479 = vrot.slane %v3287, 1
        %v3480 = vrot.slane %v3288, 1
        %v3481 = vrot.slane %v3289, 1
        %v3482 = vrot.slane %v3290, 1
        %v3483 = vrot.slane %v3291, 1
        %v3484 = vrot.slane %v3292, 1
        %v3485 = vrot.slane %v3293, 1
        %v3486 = vrot.slane %v3294, 1
        %v3487 = vrot.slane %v3295, 1
        %v3488 = vrot.slane %v3296, 1
        %v3489 = vrot.slane %v3297, 1
        %v3490 = vrot.slane %v3298, 1
        %v3491 = vrot.slane %v3299, 1
        %v3492 = vrot.slane %v3300, 1
        %v3493 = vrot.slane %v3301, 1
        %v3494 = vrot.slane %v3302, 1
        %v3495 = vrot.slane %v3303, 1
        %v3496 = vrot.slane %v3304, 1
        %v3497 = vrot.slane %v3305, 1
        %v3498 = vsel %vm1180, %v3496, %v3497
        %v3499 = vsel %vm1180, %v3495, %v3496
        %v3500 = vsel %vm1180, %v3494, %v3495
        %v3501 = vsel %vm1180, %v3493, %v3494
        %v3502 = vsel %vm1180, %v3492, %v3493
        %v3503 = vsel %vm1180, %v3491, %v3492
        %v3504 = vsel %vm1180, %v3490, %v3491
        %v3505 = vsel %vm1180, %v3489, %v3490
        %v3506 = vsel %vm1180, %v3488, %v3489
        %v3507 = vsel %vm1180, %v3487, %v3488
        %v3508 = vsel %vm1180, %v3486, %v3487
        %v3509 = vsel %vm1180, %v3485, %v3486
        %v3510 = vsel %vm1180, %v3484, %v3485
        %v3511 = vsel %vm1180, %v3483, %v3484
        %v3512 = vsel %vm1180, %v3482, %v3483
        %v3513 = vsel %vm1180, %v3481, %v3482
        %v3514 = vsel %vm1180, %v3480, %v3481
        %v3515 = vsel %vm1180, %v3479, %v3480
        %v3516 = vsel %vm1180, %v3478, %v3479
        %v3517 = vsel %vm1180, %v3477, %v3478
        %v3518 = vsel %vm1180, %v3476, %v3477
        %v3519 = vsel %vm1180, %v3475, %v3476
        %v3520 = vsel %vm1180, %v3474, %v3475
        %v3521 = vsel %vm1180, %v3473, %v3474
        %v3522 = vsel %vm1180, %v3472, %v3473
        %v3523 = vsel %vm1180, %v3471, %v3472
        %v3524 = vsel %vm1180, %v3470, %v3471
        %v3525 = vsel %vm1180, %v3469, %v3470
        %v3526 = vsel %vm1180, %v3468, %v3469
        %v3527 = vsel %vm1180, %v3467, %v3468
        %v3528 = vsel %vm1180, %v3466, %v3467
        %v3529 = vsel %vm1180, %v3497, %v3466
        %v3530 = vsel %vm1245, %v3528, 0.0
        %v3531 = vsel %vm1246, %v3527, 0.0
        %v3532 = vsel %vm1247, %v3526, 0.0
        %v3533 = vsel %vm1248, %v3525, 0.0
        %v3534 = vsel %vm1249, %v3524, 0.0
        %v3535 = vsel %vm1250, %v3523, 0.0
        %v3536 = vsel %vm1251, %v3522, 0.0
        %v3537 = vsel %vm1252, %v3521, 0.0
        %v3538 = vsel %vm1253, %v3520, 0.0
        %v3539 = vsel %vm1254, %v3519, 0.0
        %v3540 = vsel %vm1255, %v3518, 0.0
        %v3541 = vsel %vm1256, %v3517, 0.0
        %v3542 = vsel %vm1257, %v3516, 0.0
        %v3543 = vsel %vm1258, %v3515, 0.0
        %v3544 = vsel %vm1259, %v3514, 0.0
        %v3545 = vsel %vm1260, %v3513, 0.0
        %v3546 = vsel %vm1261, %v3512, 0.0
        %v3547 = vsel %vm1262, %v3511, 0.0
        %v3548 = vsel %vm1263, %v3510, 0.0
        %v3549 = vsel %vm1264, %v3509, 0.0
        %v3550 = vsel %vm1265, %v3508, 0.0
        %v3551 = vsel %vm1266, %v3507, 0.0
        %v3552 = vsel %vm1267, %v3506, 0.0
        %v3553 = vsel %vm1268, %v3505, 0.0
        %v3554 = vsel %vm1269, %v3504, 0.0
        %v3555 = vsel %vm1270, %v3503, 0.0
        %v3556 = vsel %vm1271, %v3502, 0.0
        %v3557 = vsel %vm1272, %v3501, 0.0
        %v3558 = vsel %vm1273, %v3500, 0.0
        %v3559 = vsel %vm1274, %v3499, 0.0
        %v3560 = vsel %vm1275, %v3498, 0.0
        %v3561 = vsel %vm1276, %v3529, 0.0
        %v3562 = vpack.c.bf16 %v3531, %v3530
        %v3563 = vpack.c.bf16 %v3533, %v3532
        %v3564 = vpack.c.bf16 %v3535, %v3534
        %v3565 = vpack.c.bf16 %v3537, %v3536
        %v3566 = vpack.c.bf16 %v3539, %v3538
        %v3567 = vpack.c.bf16 %v3541, %v3540
        %v3568 = vpack.c.bf16 %v3543, %v3542
        %v3569 = vpack.c.bf16 %v3545, %v3544
        %v3570 = vpack.c.bf16 %v3547, %v3546
        %v3571 = vpack.c.bf16 %v3549, %v3548
        %v3572 = vpack.c.bf16 %v3551, %v3550
        %v3573 = vpack.c.bf16 %v3553, %v3552
        %v3574 = vpack.c.bf16 %v3555, %v3554
        %v3575 = vpack.c.bf16 %v3557, %v3556
        %v3576 = vpack.c.bf16 %v3559, %v3558
        %v3577 = vpack.c.bf16 %v3561, %v3560
        %3578 = vst [vmem:[#allocation2 + $0x10] sm:$0xff] %v3562
        %3579 = vst [vmem:[#allocation2 + $0x28] sm:$0xff] %v3563
        %3580 = vst [vmem:[#allocation2 + $0x40] sm:$0xff] %v3564
        %3581 = vst [vmem:[#allocation2 + $0x58] sm:$0xff] %v3565
        %3582 = vst [vmem:[#allocation2 + $0x70] sm:$0xff] %v3566
        %3583 = vst [vmem:[#allocation2 + $0x88] sm:$0xff] %v3567
        %3584 = vst [vmem:[#allocation2 + $0xa0] sm:$0xff] %v3568
        %3585 = vst [vmem:[#allocation2 + $0xb8] sm:$0xff] %v3569
        %3586 = vst [vmem:[#allocation2 + $0xd0] sm:$0xff] %v3570
        %3587 = vst [vmem:[#allocation2 + $0xe8] sm:$0xff] %v3571
        %3588 = vst [vmem:[#allocation2 + $0x100] sm:$0xff] %v3572
        %3589 = vst [vmem:[#allocation2 + $0x118] sm:$0xff] %v3573
        %3590 = vst [vmem:[#allocation2 + $0x130] sm:$0xff] %v3574
        %3591 = vst [vmem:[#allocation2 + $0x148] sm:$0xff] %v3575
        %3592 = vst [vmem:[#allocation2 + $0x160] sm:$0xff] %v3576
        %3593 = vst [vmem:[#allocation2 + $0x178] sm:$0xff] %v3577
        %v3594 = vld [vmem:[#allocation2] sm:$0xff]
        %v3595 = vld [vmem:[#allocation2 + $0x8] sm:$0xff]
        %v3596 = vld [vmem:[#allocation2 + $0x10] sm:$0xff]
        %v3597 = vld [vmem:[#allocation2 + $0x18] sm:$0xff]
        %v3598 = vld [vmem:[#allocation2 + $0x20] sm:$0xff]
        %v3599 = vld [vmem:[#allocation2 + $0x28] sm:$0xff]
        %v3600 = vld [vmem:[#allocation2 + $0x30] sm:$0xff]
        %v3601 = vld [vmem:[#allocation2 + $0x38] sm:$0xff]
        %v3602 = vld [vmem:[#allocation2 + $0x40] sm:$0xff]
        %v3603 = vld [vmem:[#allocation2 + $0x48] sm:$0xff]
        %v3604 = vld [vmem:[#allocation2 + $0x50] sm:$0xff]
        %v3605 = vld [vmem:[#allocation2 + $0x58] sm:$0xff]
        %v3606 = vld [vmem:[#allocation2 + $0x60] sm:$0xff]
        %v3607 = vld [vmem:[#allocation2 + $0x68] sm:$0xff]
        %v3608 = vld [vmem:[#allocation2 + $0x70] sm:$0xff]
        %v3609 = vld [vmem:[#allocation2 + $0x78] sm:$0xff]
        %v3610 = vld [vmem:[#allocation2 + $0x80] sm:$0xff]
        %v3611 = vld [vmem:[#allocation2 + $0x88] sm:$0xff]
        %v3612 = vld [vmem:[#allocation2 + $0x90] sm:$0xff]
        %v3613 = vld [vmem:[#allocation2 + $0x98] sm:$0xff]
        %v3614 = vld [vmem:[#allocation2 + $0xa0] sm:$0xff]
        %v3615 = vld [vmem:[#allocation2 + $0xa8] sm:$0xff]
        %v3616 = vld [vmem:[#allocation2 + $0xb0] sm:$0xff]
        %v3617 = vld [vmem:[#allocation2 + $0xb8] sm:$0xff]
        %v3618 = vld [vmem:[#allocation2 + $0xc0] sm:$0xff]
        %v3619 = vld [vmem:[#allocation2 + $0xc8] sm:$0xff]
        %v3620 = vld [vmem:[#allocation2 + $0xd0] sm:$0xff]
        %v3621 = vld [vmem:[#allocation2 + $0xd8] sm:$0xff]
        %v3622 = vld [vmem:[#allocation2 + $0xe0] sm:$0xff]
        %v3623 = vld [vmem:[#allocation2 + $0xe8] sm:$0xff]
        %v3624 = vld [vmem:[#allocation2 + $0xf0] sm:$0xff]
        %v3625 = vld [vmem:[#allocation2 + $0xf8] sm:$0xff]
        %v3626 = vld [vmem:[#allocation2 + $0x100] sm:$0xff]
        %v3627 = vld [vmem:[#allocation2 + $0x108] sm:$0xff]
        %v3628 = vld [vmem:[#allocation2 + $0x110] sm:$0xff]
        %v3629 = vld [vmem:[#allocation2 + $0x118] sm:$0xff]
        %v3630 = vld [vmem:[#allocation2 + $0x120] sm:$0xff]
        %v3631 = vld [vmem:[#allocation2 + $0x128] sm:$0xff]
        %v3632 = vld [vmem:[#allocation2 + $0x130] sm:$0xff]
        %v3633 = vld [vmem:[#allocation2 + $0x138] sm:$0xff]
        %v3634 = vld [vmem:[#allocation2 + $0x140] sm:$0xff]
        %v3635 = vld [vmem:[#allocation2 + $0x148] sm:$0xff]
        %v3636 = vld [vmem:[#allocation2 + $0x150] sm:$0xff]
        %v3637 = vld [vmem:[#allocation2 + $0x158] sm:$0xff]
        %v3638 = vld [vmem:[#allocation2 + $0x160] sm:$0xff]
        %v3639 = vld [vmem:[#allocation2 + $0x168] sm:$0xff]
        %v3640 = vld [vmem:[#allocation2 + $0x170] sm:$0xff]
        %v3641 = vld [vmem:[#allocation2 + $0x178] sm:$0xff]
        %s3642 = scalar_lea.vmem [#allocation10], 192
        %v3643 = vld [vmem:[%s3642] sm:$0xf]
        %v3644 = vld [vmem:[%s3642 + $0x4] sm:$0xf]
        %v3645 = vld [vmem:[%s3642 + $0x8] sm:$0xf]
        %v3646 = vld [vmem:[%s3642 + $0xc] sm:$0xf]
        %v3647 = vld [vmem:[%s3642 + $0x10] sm:$0xf]
        %v3648 = vld [vmem:[%s3642 + $0x14] sm:$0xf]
        %v3649 = vld [vmem:[%s3642 + $0x18] sm:$0xf]
        %v3650 = vld [vmem:[%s3642 + $0x1c] sm:$0xf]
        %v3651 = vld [vmem:[%s3642 + $0x20] sm:$0xf]
        %v3652 = vld [vmem:[%s3642 + $0x24] sm:$0xf]
        %v3653 = vld [vmem:[%s3642 + $0x28] sm:$0xf]
        %v3654 = vld [vmem:[%s3642 + $0x2c] sm:$0xf]
        %v3655 = vld [vmem:[%s3642 + $0x30] sm:$0xf]
        %v3656 = vld [vmem:[%s3642 + $0x34] sm:$0xf]
        %v3657 = vld [vmem:[%s3642 + $0x38] sm:$0xf]
        %v3658 = vld [vmem:[%s3642 + $0x3c] sm:$0xf]
        %v3659 = vld [vmem:[%s3642 + $0x40] sm:$0xf]
        %v3660 = vld [vmem:[%s3642 + $0x44] sm:$0xf]
        %v3661 = vld [vmem:[%s3642 + $0x48] sm:$0xf]
        %v3662 = vld [vmem:[%s3642 + $0x4c] sm:$0xf]
        %v3663 = vld [vmem:[%s3642 + $0x50] sm:$0xf]
        %v3664 = vld [vmem:[%s3642 + $0x54] sm:$0xf]
        %v3665 = vld [vmem:[%s3642 + $0x58] sm:$0xf]
        %v3666 = vld [vmem:[%s3642 + $0x5c] sm:$0xf]
        %v3667 = vld [vmem:[%s3642 + $0x60] sm:$0xf]
        %v3668 = vld [vmem:[%s3642 + $0x64] sm:$0xf]
        %v3669 = vld [vmem:[%s3642 + $0x68] sm:$0xf]
        %v3670 = vld [vmem:[%s3642 + $0x6c] sm:$0xf]
        %v3671 = vld [vmem:[%s3642 + $0x70] sm:$0xf]
        %v3672 = vld [vmem:[%s3642 + $0x74] sm:$0xf]
        %v3673 = vld [vmem:[%s3642 + $0x78] sm:$0xf]
        %v3674 = vld [vmem:[%s3642 + $0x7c] sm:$0xf]
        %v3675 = vld [vmem:[%s3642 + $0x80] sm:$0xf]
        %v3676 = vld [vmem:[%s3642 + $0x84] sm:$0xf]
        %v3677 = vld [vmem:[%s3642 + $0x88] sm:$0xf]
        %v3678 = vld [vmem:[%s3642 + $0x8c] sm:$0xf]
        %v3679 = vld [vmem:[%s3642 + $0x90] sm:$0xf]
        %v3680 = vld [vmem:[%s3642 + $0x94] sm:$0xf]
        %v3681 = vld [vmem:[%s3642 + $0x98] sm:$0xf]
        %v3682 = vld [vmem:[%s3642 + $0x9c] sm:$0xf]
        %v3683 = vld [vmem:[%s3642 + $0xa0] sm:$0xf]
        %v3684 = vld [vmem:[%s3642 + $0xa4] sm:$0xf]
        %v3685 = vld [vmem:[%s3642 + $0xa8] sm:$0xf]
        %v3686 = vld [vmem:[%s3642 + $0xac] sm:$0xf]
        %v3687 = vld [vmem:[%s3642 + $0xb0] sm:$0xf]
        %v3688 = vld [vmem:[%s3642 + $0xb4] sm:$0xf]
        %v3689 = vld [vmem:[%s3642 + $0xb8] sm:$0xf]
        %v3690 = vld [vmem:[%s3642 + $0xbc] sm:$0xf]
        %v3739 = vunpack.c.l.b16 %v3643
        %v3740 = vunpack.c.l.b16 %v3644
        %v3741 = vunpack.c.l.b16 %v3645
        %v3742 = vunpack.c.l.b16 %v3646
        %v3743 = vunpack.c.l.b16 %v3647
        %v3744 = vunpack.c.l.b16 %v3648
        %v3745 = vunpack.c.l.b16 %v3649
        %v3746 = vunpack.c.l.b16 %v3650
        %v3747 = vunpack.c.l.b16 %v3651
        %v3748 = vunpack.c.l.b16 %v3652
        %v3749 = vunpack.c.l.b16 %v3653
        %v3750 = vunpack.c.l.b16 %v3654
        %v3751 = vunpack.c.l.b16 %v3655
        %v3752 = vunpack.c.l.b16 %v3656
        %v3753 = vunpack.c.l.b16 %v3657
        %v3754 = vunpack.c.l.b16 %v3658
        %v3755 = vunpack.c.l.b16 %v3659
        %v3756 = vunpack.c.l.b16 %v3660
        %v3757 = vunpack.c.l.b16 %v3661
        %v3758 = vunpack.c.l.b16 %v3662
        %v3759 = vunpack.c.l.b16 %v3663
        %v3760 = vunpack.c.l.b16 %v3664
        %v3761 = vunpack.c.l.b16 %v3665
        %v3762 = vunpack.c.l.b16 %v3666
        %v3763 = vunpack.c.l.b16 %v3667
        %v3764 = vunpack.c.l.b16 %v3668
        %v3765 = vunpack.c.l.b16 %v3669
        %v3766 = vunpack.c.l.b16 %v3670
        %v3767 = vunpack.c.l.b16 %v3671
        %v3768 = vunpack.c.l.b16 %v3672
        %v3769 = vunpack.c.l.b16 %v3673
        %v3770 = vunpack.c.l.b16 %v3674
        %v3771 = vunpack.c.l.b16 %v3675
        %v3772 = vunpack.c.l.b16 %v3676
        %v3773 = vunpack.c.l.b16 %v3677
        %v3774 = vunpack.c.l.b16 %v3678
        %v3775 = vunpack.c.l.b16 %v3679
        %v3776 = vunpack.c.l.b16 %v3680
        %v3777 = vunpack.c.l.b16 %v3681
        %v3778 = vunpack.c.l.b16 %v3682
        %v3779 = vunpack.c.l.b16 %v3683
        %v3780 = vunpack.c.l.b16 %v3684
        %v3781 = vunpack.c.l.b16 %v3685
        %v3782 = vunpack.c.l.b16 %v3686
        %v3783 = vunpack.c.l.b16 %v3687
        %v3784 = vunpack.c.l.b16 %v3688
        %v3785 = vunpack.c.l.b16 %v3689
        %v3786 = vunpack.c.l.b16 %v3690
        %v3787 = vpack.c.b16 %v3740, %v3739
        %v3788 = vpack.c.b16 %v3742, %v3741
        %v3789 = vpack.c.b16 %v3744, %v3743
        %v3790 = vpack.c.b16 %v3746, %v3745
        %v3791 = vpack.c.b16 %v3748, %v3747
        %v3792 = vpack.c.b16 %v3750, %v3749
        %v3793 = vpack.c.b16 %v3752, %v3751
        %v3794 = vpack.c.b16 %v3754, %v3753
        %v3795 = vpack.c.b16 %v3756, %v3755
        %v3796 = vpack.c.b16 %v3758, %v3757
        %v3797 = vpack.c.b16 %v3760, %v3759
        %v3798 = vpack.c.b16 %v3762, %v3761
        %v3799 = vpack.c.b16 %v3764, %v3763
        %v3800 = vpack.c.b16 %v3766, %v3765
        %v3801 = vpack.c.b16 %v3768, %v3767
        %v3802 = vpack.c.b16 %v3770, %v3769
        %v3803 = vpack.c.b16 %v3772, %v3771
        %v3804 = vpack.c.b16 %v3774, %v3773
        %v3805 = vpack.c.b16 %v3776, %v3775
        %v3806 = vpack.c.b16 %v3778, %v3777
        %v3807 = vpack.c.b16 %v3780, %v3779
        %v3808 = vpack.c.b16 %v3782, %v3781
        %v3809 = vpack.c.b16 %v3784, %v3783
        %v3810 = vpack.c.b16 %v3786, %v3785
        %3835 = vmatprep.subr.bf16.mxu0 0
        %3836 = vmatpush1.bf16.msra.mxu0 %v3787
        %3837 = vmatprep.subr.bf16.mxu0 0
        %3838 = vmatpush1.bf16.msra.mxu0 %v3788
        %3839 = vmatprep.subr.bf16.mxu0 0
        %3840 = vmatpush1.bf16.msra.mxu0 %v3789
        %3841 = vmatprep.subr.bf16.mxu0 0
        %3842 = vmatpush1.bf16.msra.mxu0 %v3790
        %3843 = vmatprep.subr.bf16.mxu0 0
        %3844 = vmatpush1.bf16.msra.mxu0 %v3791
        %3845 = vmatprep.subr.bf16.mxu0 0
        %3846 = vmatpush1.bf16.msra.mxu0 %v3792
        %3847 = vmatprep.subr.bf16.mxu0 0
        %3848 = vmatpush1.bf16.msra.mxu0 %v3793
        %3849 = vmatprep.subr.bf16.mxu0 0
        %3850 = vmatpush1.bf16.msra.mxu0 %v3794
        %3851 = vmatprep.subr.bf16.mxu0 0
        %3852 = vmatpush1.bf16.msra.mxu0 %v3795
        %3853 = vmatprep.subr.bf16.mxu0 0
        %3854 = vmatpush1.bf16.msra.mxu0 %v3796
        %3855 = vmatprep.subr.bf16.mxu0 0
        %3856 = vmatpush1.bf16.msra.mxu0 %v3797
        %3857 = vmatprep.subr.bf16.mxu0 0
        %3858 = vmatpush1.bf16.msra.mxu0 %v3798
        %3859 = vmatprep.subr.bf16.mxu0 0
        %3860 = vmatpush1.bf16.msra.mxu0 %v3799
        %3861 = vmatprep.subr.bf16.mxu0 0
        %3862 = vmatpush1.bf16.msra.mxu0 %v3800
        %3863 = vmatprep.subr.bf16.mxu0 0
        %3864 = vmatpush1.bf16.msra.mxu0 %v3801
        %3865 = vmatprep.subr.bf16.mxu0 0
        %3866 = vmatpush1.bf16.msra.mxu0 %v3802
        %3867 = vmatprep.mubr.bf16.mxu0 %v3595
        %3868 = vmatmul.mubr.bf16.gmra.mrb[0].mxu0 %v3594
        %v3869 = vpop.f32.mrb[0].mxu0
        %v3870 = vadd.f32 0.0, %v3869
        %v3871 = vpop.f32.mrb[0].mxu0
        %v3872 = vpop.f32.mrb[0].mxu0
        %v3873 = vadd.f32 0.0, %v3872
        %v3874 = vpop.f32.mrb[0].mxu0
        %3875 = vmatprep.mubr.bf16.mxu0 %v3598
        %3876 = vmatmul.mubr.bf16.gmra.mrb[0].mxu0 %v3597
        %v3877 = vpop.f32.mrb[0].mxu0
        %v3878 = vadd.f32 0.0, %v3877
        %v3879 = vpop.f32.mrb[0].mxu0
        %v3880 = vpop.f32.mrb[0].mxu0
        %v3881 = vadd.f32 0.0, %v3880
        %v3882 = vpop.f32.mrb[0].mxu0
        %3883 = vmatprep.mubr.bf16.mxu0 %v3601
        %3884 = vmatmul.mubr.bf16.gmra.mrb[0].mxu0 %v3600
        %v3885 = vpop.f32.mrb[0].mxu0
        %v3886 = vadd.f32 0.0, %v3885
        %v3887 = vpop.f32.mrb[0].mxu0
        %v3888 = vpop.f32.mrb[0].mxu0
        %v3889 = vadd.f32 0.0, %v3888
        %v3890 = vpop.f32.mrb[0].mxu0
        %3891 = vmatprep.mubr.bf16.mxu0 %v3604
        %3892 = vmatmul.mubr.bf16.gmra.mrb[0].mxu0 %v3603
        %v3893 = vpop.f32.mrb[0].mxu0
        %v3894 = vadd.f32 0.0, %v3893
        %v3895 = vpop.f32.mrb[0].mxu0
        %v3896 = vpop.f32.mrb[0].mxu0
        %v3897 = vadd.f32 0.0, %v3896
        %v3898 = vpop.f32.mrb[0].mxu0
        %3899 = vmatprep.mubr.bf16.mxu0 %v3607
        %3900 = vmatmul.mubr.bf16.gmra.mrb[0].mxu0 %v3606
        %v3901 = vpop.f32.mrb[0].mxu0
        %v3902 = vadd.f32 0.0, %v3901
        %v3903 = vpop.f32.mrb[0].mxu0
        %v3904 = vpop.f32.mrb[0].mxu0
        %v3905 = vadd.f32 0.0, %v3904
        %v3906 = vpop.f32.mrb[0].mxu0
        %3907 = vmatprep.mubr.bf16.mxu0 %v3610
        %3908 = vmatmul.mubr.bf16.gmra.mrb[0].mxu0 %v3609
        %v3909 = vpop.f32.mrb[0].mxu0
        %v3910 = vadd.f32 0.0, %v3909
        %v3911 = vpop.f32.mrb[0].mxu0
        %v3912 = vpop.f32.mrb[0].mxu0
        %v3913 = vadd.f32 0.0, %v3912
        %v3914 = vpop.f32.mrb[0].mxu0
        %3915 = vmatprep.mubr.bf16.mxu0 %v3613
        %3916 = vmatmul.mubr.bf16.gmra.mrb[0].mxu0 %v3612
        %v3917 = vpop.f32.mrb[0].mxu0
        %v3918 = vadd.f32 0.0, %v3917
        %v3919 = vpop.f32.mrb[0].mxu0
        %v3920 = vpop.f32.mrb[0].mxu0
        %v3921 = vadd.f32 0.0, %v3920
        %v3922 = vpop.f32.mrb[0].mxu0
        %3923 = vmatprep.mubr.bf16.mxu0 %v3616
        %3924 = vmatmul.mubr.bf16.gmra.mrb[0].mxu0 %v3615
        %v3925 = vpop.f32.mrb[0].mxu0
        %v3926 = vadd.f32 0.0, %v3925
        %v3927 = vpop.f32.mrb[0].mxu0
        %v3928 = vpop.f32.mrb[0].mxu0
        %v3929 = vadd.f32 0.0, %v3928
        %v3930 = vpop.f32.mrb[0].mxu0
        %3931 = vmatprep.mubr.bf16.mxu0 %v3619
        %3932 = vmatmul.mubr.bf16.gmra.mrb[0].mxu0 %v3618
        %v3933 = vpop.f32.mrb[0].mxu0
        %v3934 = vadd.f32 0.0, %v3933
        %v3935 = vpop.f32.mrb[0].mxu0
        %v3936 = vpop.f32.mrb[0].mxu0
        %v3937 = vadd.f32 0.0, %v3936
        %v3938 = vpop.f32.mrb[0].mxu0
        %3939 = vmatprep.mubr.bf16.mxu0 %v3622
        %3940 = vmatmul.mubr.bf16.gmra.mrb[0].mxu0 %v3621
        %v3941 = vpop.f32.mrb[0].mxu0
        %v3942 = vadd.f32 0.0, %v3941
        %v3943 = vpop.f32.mrb[0].mxu0
        %v3944 = vpop.f32.mrb[0].mxu0
        %v3945 = vadd.f32 0.0, %v3944
        %v3946 = vpop.f32.mrb[0].mxu0
        %3947 = vmatprep.mubr.bf16.mxu0 %v3625
        %3948 = vmatmul.mubr.bf16.gmra.mrb[0].mxu0 %v3624
        %v3949 = vpop.f32.mrb[0].mxu0
        %v3950 = vadd.f32 0.0, %v3949
        %v3951 = vpop.f32.mrb[0].mxu0
        %v3952 = vpop.f32.mrb[0].mxu0
        %v3953 = vadd.f32 0.0, %v3952
        %v3954 = vpop.f32.mrb[0].mxu0
        %3955 = vmatprep.mubr.bf16.mxu0 %v3628
        %3956 = vmatmul.mubr.bf16.gmra.mrb[0].mxu0 %v3627
        %v3957 = vpop.f32.mrb[0].mxu0
        %v3958 = vadd.f32 0.0, %v3957
        %v3959 = vpop.f32.mrb[0].mxu0
        %v3960 = vpop.f32.mrb[0].mxu0
        %v3961 = vadd.f32 0.0, %v3960
        %v3962 = vpop.f32.mrb[0].mxu0
        %3963 = vmatprep.mubr.bf16.mxu0 %v3631
        %3964 = vmatmul.mubr.bf16.gmra.mrb[0].mxu0 %v3630
        %v3965 = vpop.f32.mrb[0].mxu0
        %v3966 = vadd.f32 0.0, %v3965
        %v3967 = vpop.f32.mrb[0].mxu0
        %v3968 = vpop.f32.mrb[0].mxu0
        %v3969 = vadd.f32 0.0, %v3968
        %v3970 = vpop.f32.mrb[0].mxu0
        %3971 = vmatprep.mubr.bf16.mxu0 %v3634
        %3972 = vmatmul.mubr.bf16.gmra.mrb[0].mxu0 %v3633
        %v3973 = vpop.f32.mrb[0].mxu0
        %v3974 = vadd.f32 0.0, %v3973
        %v3975 = vpop.f32.mrb[0].mxu0
        %v3976 = vpop.f32.mrb[0].mxu0
        %v3977 = vadd.f32 0.0, %v3976
        %v3978 = vpop.f32.mrb[0].mxu0
        %3979 = vmatprep.mubr.bf16.mxu0 %v3637
        %3980 = vmatmul.mubr.bf16.gmra.mrb[0].mxu0 %v3636
        %v3981 = vpop.f32.mrb[0].mxu0
        %v3982 = vadd.f32 0.0, %v3981
        %v3983 = vpop.f32.mrb[0].mxu0
        %v3984 = vpop.f32.mrb[0].mxu0
        %v3985 = vadd.f32 0.0, %v3984
        %v3986 = vpop.f32.mrb[0].mxu0
        %3987 = vmatprep.mubr.bf16.mxu0 %v3640
        %3988 = vmatmul.mubr.bf16.gmra.mrb[0].mxu0 %v3639
        %v3989 = vpop.f32.mrb[0].mxu0
        %v3990 = vadd.f32 0.0, %v3989
        %v3991 = vpop.f32.mrb[0].mxu0
        %v3992 = vpop.f32.mrb[0].mxu0
        %v3993 = vadd.f32 0.0, %v3992
        %v3994 = vpop.f32.mrb[0].mxu0
        %3995 = vdwg.mxu0
        %3996 = vmatprep.subr.bf16.mxu0 0
        %3997 = vmatpush1.bf16.msra.mxu0 %v3803
        %3998 = vmatprep.subr.bf16.mxu0 0
        %3999 = vmatpush1.bf16.msra.mxu0 %v3804
        %4000 = vmatprep.subr.bf16.mxu0 0
        %4001 = vmatpush1.bf16.msra.mxu0 %v3805
        %4002 = vmatprep.subr.bf16.mxu0 0
        %4003 = vmatpush1.bf16.msra.mxu0 %v3806
        %4004 = vmatprep.subr.bf16.mxu0 0
        %4005 = vmatpush1.bf16.msra.mxu0 %v3807
        %4006 = vmatprep.subr.bf16.mxu0 0
        %4007 = vmatpush1.bf16.msra.mxu0 %v3808
        %4008 = vmatprep.subr.bf16.mxu0 0
        %4009 = vmatpush1.bf16.msra.mxu0 %v3809
        %4010 = vmatprep.subr.bf16.mxu0 0
        %4011 = vmatpush1.bf16.msra.mxu0 %v3810
        %4012 = vmatprep.subr.bf16.mxu0 0
        %4013 = vmatpush1.bf16.msra.mxu0 0
        %4014 = vmatprep.subr.bf16.mxu0 0
        %4015 = vmatpush1.bf16.msra.mxu0 0
        %4016 = vmatprep.subr.bf16.mxu0 0
        %4017 = vmatpush1.bf16.msra.mxu0 0
        %4018 = vmatprep.subr.bf16.mxu0 0
        %4019 = vmatpush1.bf16.msra.mxu0 0
        %4020 = vmatprep.subr.bf16.mxu0 0
        %4021 = vmatpush1.bf16.msra.mxu0 0
        %4022 = vmatprep.subr.bf16.mxu0 0
        %4023 = vmatpush1.bf16.msra.mxu0 0
        %4024 = vmatprep.subr.bf16.mxu0 0
        %4025 = vmatpush1.bf16.msra.mxu0 0
        %4026 = vmatprep.subr.bf16.mxu0 0
        %4027 = vmatpush1.bf16.msra.mxu0 0
        %4028 = vmatprep.mubr.bf16.mxu0 0
        %4029 = vmatmul.mubr.bf16.gmra.mrb[0].mxu0 %v3596
        %v4030 = vpop.f32.mrb[0].mxu0
        %v4031 = vadd.f32 %v3870, %v4030
        %v4032 = vpop.f32.mrb[0].mxu0
        %v4033 = vpop.f32.mrb[0].mxu0
        %v4034 = vadd.f32 %v3873, %v4033
        %v4035 = vpop.f32.mrb[0].mxu0
        %4036 = vmatprep.mubr.bf16.mxu0 0
        %4037 = vmatmul.mubr.bf16.gmra.mrb[0].mxu0 %v3599
        %v4038 = vpop.f32.mrb[0].mxu0
        %v4039 = vadd.f32 %v3878, %v4038
        %v4040 = vpop.f32.mrb[0].mxu0
        %v4041 = vpop.f32.mrb[0].mxu0
        %v4042 = vadd.f32 %v3881, %v4041
        %v4043 = vpop.f32.mrb[0].mxu0
        %4044 = vmatprep.mubr.bf16.mxu0 0
        %4045 = vmatmul.mubr.bf16.gmra.mrb[0].mxu0 %v3602
        %v4046 = vpop.f32.mrb[0].mxu0
        %v4047 = vadd.f32 %v3886, %v4046
        %v4048 = vpop.f32.mrb[0].mxu0
        %v4049 = vpop.f32.mrb[0].mxu0
        %v4050 = vadd.f32 %v3889, %v4049
        %v4051 = vpop.f32.mrb[0].mxu0
        %4052 = vmatprep.mubr.bf16.mxu0 0
        %4053 = vmatmul.mubr.bf16.gmra.mrb[0].mxu0 %v3605
        %v4054 = vpop.f32.mrb[0].mxu0
        %v4055 = vadd.f32 %v3894, %v4054
        %v4056 = vpop.f32.mrb[0].mxu0
        %v4057 = vpop.f32.mrb[0].mxu0
        %v4058 = vadd.f32 %v3897, %v4057
        %v4059 = vpop.f32.mrb[0].mxu0
        %4060 = vmatprep.mubr.bf16.mxu0 0
        %4061 = vmatmul.mubr.bf16.gmra.mrb[0].mxu0 %v3608
        %v4062 = vpop.f32.mrb[0].mxu0
        %v4063 = vadd.f32 %v3902, %v4062
        %v4064 = vpop.f32.mrb[0].mxu0
        %v4065 = vpop.f32.mrb[0].mxu0
        %v4066 = vadd.f32 %v3905, %v4065
        %v4067 = vpop.f32.mrb[0].mxu0
        %4068 = vmatprep.mubr.bf16.mxu0 0
        %4069 = vmatmul.mubr.bf16.gmra.mrb[0].mxu0 %v3611
        %v4070 = vpop.f32.mrb[0].mxu0
        %v4071 = vadd.f32 %v3910, %v4070
        %v4072 = vpop.f32.mrb[0].mxu0
        %v4073 = vpop.f32.mrb[0].mxu0
        %v4074 = vadd.f32 %v3913, %v4073
        %v4075 = vpop.f32.mrb[0].mxu0
        %4076 = vmatprep.mubr.bf16.mxu0 0
        %4077 = vmatmul.mubr.bf16.gmra.mrb[0].mxu0 %v3614
        %v4078 = vpop.f32.mrb[0].mxu0
        %v4079 = vadd.f32 %v3918, %v4078
        %v4080 = vpop.f32.mrb[0].mxu0
        %v4081 = vpop.f32.mrb[0].mxu0
        %v4082 = vadd.f32 %v3921, %v4081
        %v4083 = vpop.f32.mrb[0].mxu0
        %4084 = vmatprep.mubr.bf16.mxu0 0
        %4085 = vmatmul.mubr.bf16.gmra.mrb[0].mxu0 %v3617
        %v4086 = vpop.f32.mrb[0].mxu0
        %v4087 = vadd.f32 %v3926, %v4086
        %v4088 = vpop.f32.mrb[0].mxu0
        %v4089 = vpop.f32.mrb[0].mxu0
        %v4090 = vadd.f32 %v3929, %v4089
        %v4091 = vpop.f32.mrb[0].mxu0
        %4092 = vmatprep.mubr.bf16.mxu0 0
        %4093 = vmatmul.mubr.bf16.gmra.mrb[0].mxu0 %v3620
        %v4094 = vpop.f32.mrb[0].mxu0
        %v4095 = vadd.f32 %v3934, %v4094
        %v4096 = vpop.f32.mrb[0].mxu0
        %v4097 = vpop.f32.mrb[0].mxu0
        %v4098 = vadd.f32 %v3937, %v4097
        %v4099 = vpop.f32.mrb[0].mxu0
        %4100 = vmatprep.mubr.bf16.mxu0 0
        %4101 = vmatmul.mubr.bf16.gmra.mrb[0].mxu0 %v3623
        %v4102 = vpop.f32.mrb[0].mxu0
        %v4103 = vadd.f32 %v3942, %v4102
        %v4104 = vpop.f32.mrb[0].mxu0
        %v4105 = vpop.f32.mrb[0].mxu0
        %v4106 = vadd.f32 %v3945, %v4105
        %v4107 = vpop.f32.mrb[0].mxu0
        %4108 = vmatprep.mubr.bf16.mxu0 0
        %4109 = vmatmul.mubr.bf16.gmra.mrb[0].mxu0 %v3626
        %v4110 = vpop.f32.mrb[0].mxu0
        %v4111 = vadd.f32 %v3950, %v4110
        %v4112 = vpop.f32.mrb[0].mxu0
        %v4113 = vpop.f32.mrb[0].mxu0
        %v4114 = vadd.f32 %v3953, %v4113
        %v4115 = vpop.f32.mrb[0].mxu0
        %4116 = vmatprep.mubr.bf16.mxu0 0
        %4117 = vmatmul.mubr.bf16.gmra.mrb[0].mxu0 %v3629
        %v4118 = vpop.f32.mrb[0].mxu0
        %v4119 = vadd.f32 %v3958, %v4118
        %v4120 = vpop.f32.mrb[0].mxu0
        %v4121 = vpop.f32.mrb[0].mxu0
        %v4122 = vadd.f32 %v3961, %v4121
        %v4123 = vpop.f32.mrb[0].mxu0
        %4124 = vmatprep.mubr.bf16.mxu0 0
        %4125 = vmatmul.mubr.bf16.gmra.mrb[0].mxu0 %v3632
        %v4126 = vpop.f32.mrb[0].mxu0
        %v4127 = vadd.f32 %v3966, %v4126
        %v4128 = vpop.f32.mrb[0].mxu0
        %v4129 = vpop.f32.mrb[0].mxu0
        %v4130 = vadd.f32 %v3969, %v4129
        %v4131 = vpop.f32.mrb[0].mxu0
        %4132 = vmatprep.mubr.bf16.mxu0 0
        %4133 = vmatmul.mubr.bf16.gmra.mrb[0].mxu0 %v3635
        %v4134 = vpop.f32.mrb[0].mxu0
        %v4135 = vadd.f32 %v3974, %v4134
        %v4136 = vpop.f32.mrb[0].mxu0
        %v4137 = vpop.f32.mrb[0].mxu0
        %v4138 = vadd.f32 %v3977, %v4137
        %v4139 = vpop.f32.mrb[0].mxu0
        %4140 = vmatprep.mubr.bf16.mxu0 0
        %4141 = vmatmul.mubr.bf16.gmra.mrb[0].mxu0 %v3638
        %v4142 = vpop.f32.mrb[0].mxu0
        %v4143 = vadd.f32 %v3982, %v4142
        %v4144 = vpop.f32.mrb[0].mxu0
        %v4145 = vpop.f32.mrb[0].mxu0
        %v4146 = vadd.f32 %v3985, %v4145
        %v4147 = vpop.f32.mrb[0].mxu0
        %4148 = vmatprep.mubr.bf16.mxu0 0
        %4149 = vmatmul.mubr.bf16.gmra.mrb[0].mxu0 %v3641
        %v4150 = vpop.f32.mrb[0].mxu0
        %v4151 = vadd.f32 %v3990, %v4150
        %v4152 = vpop.f32.mrb[0].mxu0
        %v4153 = vpop.f32.mrb[0].mxu0
        %v4154 = vadd.f32 %v3993, %v4153
        %v4155 = vpop.f32.mrb[0].mxu0
        %4156 = vdwg.mxu0
        %4157 = vst [vmem:[#allocation3] sm:$0xff] %v4031
        %4158 = vst [vmem:[#allocation3 + $0x8] sm:$0xff] %v4034
        %4159 = vst [vmem:[#allocation3 + $0x10] sm:$0xff] %v4039
        %4160 = vst [vmem:[#allocation3 + $0x18] sm:$0xff] %v4042
        %4161 = vst [vmem:[#allocation3 + $0x20] sm:$0xff] %v4047
        %4162 = vst [vmem:[#allocation3 + $0x28] sm:$0xff] %v4050
        %4163 = vst [vmem:[#allocation3 + $0x30] sm:$0xff] %v4055
        %4164 = vst [vmem:[#allocation3 + $0x38] sm:$0xff] %v4058
        %4165 = vst [vmem:[#allocation3 + $0x40] sm:$0xff] %v4063
        %4166 = vst [vmem:[#allocation3 + $0x48] sm:$0xff] %v4066
        %4167 = vst [vmem:[#allocation3 + $0x50] sm:$0xff] %v4071
        %4168 = vst [vmem:[#allocation3 + $0x58] sm:$0xff] %v4074
        %4169 = vst [vmem:[#allocation3 + $0x60] sm:$0xff] %v4079
        %4170 = vst [vmem:[#allocation3 + $0x68] sm:$0xff] %v4082
        %4171 = vst [vmem:[#allocation3 + $0x70] sm:$0xff] %v4087
        %4172 = vst [vmem:[#allocation3 + $0x78] sm:$0xff] %v4090
        %4173 = vst [vmem:[#allocation3 + $0x80] sm:$0xff] %v4095
        %4174 = vst [vmem:[#allocation3 + $0x88] sm:$0xff] %v4098
        %4175 = vst [vmem:[#allocation3 + $0x90] sm:$0xff] %v4103
        %4176 = vst [vmem:[#allocation3 + $0x98] sm:$0xff] %v4106
        %4177 = vst [vmem:[#allocation3 + $0xa0] sm:$0xff] %v4111
        %4178 = vst [vmem:[#allocation3 + $0xa8] sm:$0xff] %v4114
        %4179 = vst [vmem:[#allocation3 + $0xb0] sm:$0xff] %v4119
        %4180 = vst [vmem:[#allocation3 + $0xb8] sm:$0xff] %v4122
        %4181 = vst [vmem:[#allocation3 + $0xc0] sm:$0xff] %v4127
        %4182 = vst [vmem:[#allocation3 + $0xc8] sm:$0xff] %v4130
        %4183 = vst [vmem:[#allocation3 + $0xd0] sm:$0xff] %v4135
        %4184 = vst [vmem:[#allocation3 + $0xd8] sm:$0xff] %v4138
        %4185 = vst [vmem:[#allocation3 + $0xe0] sm:$0xff] %v4143
        %4186 = vst [vmem:[#allocation3 + $0xe8] sm:$0xff] %v4146
        %4187 = vst [vmem:[#allocation3 + $0xf0] sm:$0xff] %v4151
        %4188 = vst [vmem:[#allocation3 + $0xf8] sm:$0xff] %v4154
        %v4189 = vld [vmem:[#allocation3 + $0x10] sm:$0xff]
        %v4190 = vld [vmem:[#allocation3 + $0x18] sm:$0xff]
        %v4191 = vld [vmem:[#allocation3 + $0x20] sm:$0xff]
        %v4192 = vld [vmem:[#allocation3 + $0x28] sm:$0xff]
        %v4193 = vld [vmem:[#allocation3 + $0x30] sm:$0xff]
        %v4194 = vld [vmem:[#allocation3 + $0x38] sm:$0xff]
        %v4195 = vld [vmem:[#allocation3 + $0x40] sm:$0xff]
        %v4196 = vld [vmem:[#allocation3 + $0x48] sm:$0xff]
        %v4197 = vld [vmem:[#allocation3 + $0x50] sm:$0xff]
        %v4198 = vld [vmem:[#allocation3 + $0x58] sm:$0xff]
        %v4199 = vld [vmem:[#allocation3 + $0x60] sm:$0xff]
        %v4200 = vld [vmem:[#allocation3 + $0x68] sm:$0xff]
        %v4201 = vld [vmem:[#allocation3 + $0x70] sm:$0xff]
        %v4202 = vld [vmem:[#allocation3 + $0x78] sm:$0xff]
        %v4203 = vld [vmem:[#allocation3 + $0x80] sm:$0xff]
        %v4204 = vld [vmem:[#allocation3 + $0x88] sm:$0xff]
        %v4205 = vld [vmem:[#allocation3 + $0x90] sm:$0xff]
        %v4206 = vld [vmem:[#allocation3 + $0x98] sm:$0xff]
        %v4207 = vld [vmem:[#allocation3 + $0xa0] sm:$0xff]
        %v4208 = vld [vmem:[#allocation3 + $0xa8] sm:$0xff]
        %v4209 = vld [vmem:[#allocation3 + $0xb0] sm:$0xff]
        %v4210 = vld [vmem:[#allocation3 + $0xb8] sm:$0xff]
        %v4211 = vld [vmem:[#allocation3 + $0xc0] sm:$0xff]
        %v4212 = vld [vmem:[#allocation3 + $0xc8] sm:$0xff]
        %v4213 = vld [vmem:[#allocation3 + $0xd0] sm:$0xff]
        %v4214 = vld [vmem:[#allocation3 + $0xd8] sm:$0xff]
        %v4215 = vld [vmem:[#allocation3 + $0xe0] sm:$0xff]
        %v4216 = vld [vmem:[#allocation3 + $0xe8] sm:$0xff]
        %v4217 = vld [vmem:[#allocation3 + $0xf0] sm:$0xff]
        %v4218 = vld [vmem:[#allocation3 + $0xf8] sm:$0xff]
        %v4219 = vld [vmem:[#allocation2] sm:$0xff]
        %v4220 = vld [vmem:[#allocation2 + $0x8] sm:$0xff]
        %v4221 = vld [vmem:[#allocation2 + $0x10] sm:$0xff]
        %v4222 = vld [vmem:[#allocation2 + $0x18] sm:$0xff]
        %v4223 = vld [vmem:[#allocation2 + $0x20] sm:$0xff]
        %v4224 = vld [vmem:[#allocation2 + $0x28] sm:$0xff]
        %v4225 = vld [vmem:[#allocation2 + $0x30] sm:$0xff]
        %v4226 = vld [vmem:[#allocation2 + $0x38] sm:$0xff]
        %v4227 = vld [vmem:[#allocation2 + $0x40] sm:$0xff]
        %v4228 = vld [vmem:[#allocation2 + $0x48] sm:$0xff]
        %v4229 = vld [vmem:[#allocation2 + $0x50] sm:$0xff]
        %v4230 = vld [vmem:[#allocation2 + $0x58] sm:$0xff]
        %v4231 = vld [vmem:[#allocation2 + $0x60] sm:$0xff]
        %v4232 = vld [vmem:[#allocation2 + $0x68] sm:$0xff]
        %v4233 = vld [vmem:[#allocation2 + $0x70] sm:$0xff]
        %v4234 = vld [vmem:[#allocation2 + $0x78] sm:$0xff]
        %v4235 = vld [vmem:[#allocation2 + $0x80] sm:$0xff]
        %v4236 = vld [vmem:[#allocation2 + $0x88] sm:$0xff]
        %v4237 = vld [vmem:[#allocation2 + $0x90] sm:$0xff]
        %v4238 = vld [vmem:[#allocation2 + $0x98] sm:$0xff]
        %v4239 = vld [vmem:[#allocation2 + $0xa0] sm:$0xff]
        %v4240 = vld [vmem:[#allocation2 + $0xa8] sm:$0xff]
        %v4241 = vld [vmem:[#allocation2 + $0xb0] sm:$0xff]
        %v4242 = vld [vmem:[#allocation2 + $0xb8] sm:$0xff]
        %v4243 = vld [vmem:[#allocation2 + $0xc0] sm:$0xff]
        %v4244 = vld [vmem:[#allocation2 + $0xc8] sm:$0xff]
        %v4245 = vld [vmem:[#allocation2 + $0xd0] sm:$0xff]
        %v4246 = vld [vmem:[#allocation2 + $0xd8] sm:$0xff]
        %v4247 = vld [vmem:[#allocation2 + $0xe0] sm:$0xff]
        %v4248 = vld [vmem:[#allocation2 + $0xe8] sm:$0xff]
        %v4249 = vld [vmem:[#allocation2 + $0xf0] sm:$0xff]
        %v4250 = vld [vmem:[#allocation2 + $0xf8] sm:$0xff]
        %v4251 = vld [vmem:[#allocation2 + $0x100] sm:$0xff]
        %v4252 = vld [vmem:[#allocation2 + $0x108] sm:$0xff]
        %v4253 = vld [vmem:[#allocation2 + $0x110] sm:$0xff]
        %v4254 = vld [vmem:[#allocation2 + $0x118] sm:$0xff]
        %v4255 = vld [vmem:[#allocation2 + $0x120] sm:$0xff]
        %v4256 = vld [vmem:[#allocation2 + $0x128] sm:$0xff]
        %v4257 = vld [vmem:[#allocation2 + $0x130] sm:$0xff]
        %v4258 = vld [vmem:[#allocation2 + $0x138] sm:$0xff]
        %v4259 = vld [vmem:[#allocation2 + $0x140] sm:$0xff]
        %v4260 = vld [vmem:[#allocation2 + $0x148] sm:$0xff]
        %v4261 = vld [vmem:[#allocation2 + $0x150] sm:$0xff]
        %v4262 = vld [vmem:[#allocation2 + $0x158] sm:$0xff]
        %v4263 = vld [vmem:[#allocation2 + $0x160] sm:$0xff]
        %v4264 = vld [vmem:[#allocation10] sm:$0xf]
        %v4265 = vld [vmem:[#allocation10 + $0x4] sm:$0xf]
        %v4266 = vld [vmem:[#allocation10 + $0x8] sm:$0xf]
        %v4267 = vld [vmem:[#allocation10 + $0xc] sm:$0xf]
        %v4268 = vld [vmem:[#allocation10 + $0x10] sm:$0xf]
        %v4269 = vld [vmem:[#allocation10 + $0x14] sm:$0xf]
        %v4270 = vld [vmem:[#allocation10 + $0x18] sm:$0xf]
        %v4271 = vld [vmem:[#allocation10 + $0x1c] sm:$0xf]
        %v4272 = vld [vmem:[#allocation10 + $0x20] sm:$0xf]
        %v4273 = vld [vmem:[#allocation10 + $0x24] sm:$0xf]
        %v4274 = vld [vmem:[#allocation10 + $0x28] sm:$0xf]
        %v4275 = vld [vmem:[#allocation10 + $0x2c] sm:$0xf]
        %v4276 = vld [vmem:[#allocation10 + $0x30] sm:$0xf]
        %v4277 = vld [vmem:[#allocation10 + $0x34] sm:$0xf]
        %v4278 = vld [vmem:[#allocation10 + $0x38] sm:$0xf]
        %v4279 = vld [vmem:[#allocation10 + $0x3c] sm:$0xf]
        %v4280 = vld [vmem:[#allocation10 + $0x40] sm:$0xf]
        %v4281 = vld [vmem:[#allocation10 + $0x44] sm:$0xf]
        %v4282 = vld [vmem:[#allocation10 + $0x48] sm:$0xf]
        %v4283 = vld [vmem:[#allocation10 + $0x4c] sm:$0xf]
        %v4284 = vld [vmem:[#allocation10 + $0x50] sm:$0xf]
        %v4285 = vld [vmem:[#allocation10 + $0x54] sm:$0xf]
        %v4286 = vld [vmem:[#allocation10 + $0x58] sm:$0xf]
        %v4287 = vld [vmem:[#allocation10 + $0x5c] sm:$0xf]
        %v4288 = vld [vmem:[#allocation10 + $0x60] sm:$0xf]
        %v4289 = vld [vmem:[#allocation10 + $0x64] sm:$0xf]
        %v4290 = vld [vmem:[#allocation10 + $0x68] sm:$0xf]
        %v4291 = vld [vmem:[#allocation10 + $0x6c] sm:$0xf]
        %v4292 = vld [vmem:[#allocation10 + $0x70] sm:$0xf]
        %v4293 = vld [vmem:[#allocation10 + $0x74] sm:$0xf]
        %v4294 = vld [vmem:[#allocation10 + $0x78] sm:$0xf]
        %v4295 = vld [vmem:[#allocation10 + $0x7c] sm:$0xf]
        %v4296 = vld [vmem:[#allocation10 + $0x80] sm:$0xf]
        %v4297 = vld [vmem:[#allocation10 + $0x84] sm:$0xf]
        %v4298 = vld [vmem:[#allocation10 + $0x88] sm:$0xf]
        %v4299 = vld [vmem:[#allocation10 + $0x8c] sm:$0xf]
        %v4300 = vld [vmem:[#allocation10 + $0x90] sm:$0xf]
        %v4301 = vld [vmem:[#allocation10 + $0x94] sm:$0xf]
        %v4302 = vld [vmem:[#allocation10 + $0x98] sm:$0xf]
        %v4303 = vld [vmem:[#allocation10 + $0x9c] sm:$0xf]
        %v4304 = vld [vmem:[#allocation10 + $0xa0] sm:$0xf]
        %v4305 = vld [vmem:[#allocation10 + $0xa4] sm:$0xf]
        %v4306 = vld [vmem:[#allocation10 + $0xa8] sm:$0xf]
        %v4307 = vld [vmem:[#allocation10 + $0xac] sm:$0xf]
        %v4308 = vld [vmem:[#allocation10 + $0xb0] sm:$0xf]
        %v4309 = vld [vmem:[#allocation10 + $0xb4] sm:$0xf]
        %v4310 = vld [vmem:[#allocation10 + $0xb8] sm:$0xf]
        %v4311 = vld [vmem:[#allocation10 + $0xbc] sm:$0xf]
        %v4360 = vunpack.c.l.b16 %v4264
        %v4361 = vunpack.c.l.b16 %v4265
        %v4362 = vunpack.c.l.b16 %v4266
        %v4363 = vunpack.c.l.b16 %v4267
        %v4364 = vunpack.c.l.b16 %v4268
        %v4365 = vunpack.c.l.b16 %v4269
        %v4366 = vunpack.c.l.b16 %v4270
        %v4367 = vunpack.c.l.b16 %v4271
        %v4368 = vunpack.c.l.b16 %v4272
        %v4369 = vunpack.c.l.b16 %v4273
        %v4370 = vunpack.c.l.b16 %v4274
        %v4371 = vunpack.c.l.b16 %v4275
        %v4372 = vunpack.c.l.b16 %v4276
        %v4373 = vunpack.c.l.b16 %v4277
        %v4374 = vunpack.c.l.b16 %v4278
        %v4375 = vunpack.c.l.b16 %v4279
        %v4376 = vunpack.c.l.b16 %v4280
        %v4377 = vunpack.c.l.b16 %v4281
        %v4378 = vunpack.c.l.b16 %v4282
        %v4379 = vunpack.c.l.b16 %v4283
        %v4380 = vunpack.c.l.b16 %v4284
        %v4381 = vunpack.c.l.b16 %v4285
        %v4382 = vunpack.c.l.b16 %v4286
        %v4383 = vunpack.c.l.b16 %v4287
        %v4384 = vunpack.c.l.b16 %v4288
        %v4385 = vunpack.c.l.b16 %v4289
        %v4386 = vunpack.c.l.b16 %v4290
        %v4387 = vunpack.c.l.b16 %v4291
        %v4388 = vunpack.c.l.b16 %v4292
        %v4389 = vunpack.c.l.b16 %v4293
        %v4390 = vunpack.c.l.b16 %v4294
        %v4391 = vunpack.c.l.b16 %v4295
        %v4392 = vunpack.c.l.b16 %v4296
        %v4393 = vunpack.c.l.b16 %v4297
        %v4394 = vunpack.c.l.b16 %v4298
        %v4395 = vunpack.c.l.b16 %v4299
        %v4396 = vunpack.c.l.b16 %v4300
        %v4397 = vunpack.c.l.b16 %v4301
        %v4398 = vunpack.c.l.b16 %v4302
        %v4399 = vunpack.c.l.b16 %v4303
        %v4400 = vunpack.c.l.b16 %v4304
        %v4401 = vunpack.c.l.b16 %v4305
        %v4402 = vunpack.c.l.b16 %v4306
        %v4403 = vunpack.c.l.b16 %v4307
        %v4404 = vunpack.c.l.b16 %v4308
        %v4405 = vunpack.c.l.b16 %v4309
        %v4406 = vunpack.c.l.b16 %v4310
        %v4407 = vunpack.c.l.b16 %v4311
        %v4408 = vpack.c.b16 %v4361, %v4360
        %v4409 = vpack.c.b16 %v4363, %v4362
        %v4410 = vpack.c.b16 %v4365, %v4364
        %v4411 = vpack.c.b16 %v4367, %v4366
        %v4412 = vpack.c.b16 %v4369, %v4368
        %v4413 = vpack.c.b16 %v4371, %v4370
        %v4414 = vpack.c.b16 %v4373, %v4372
        %v4415 = vpack.c.b16 %v4375, %v4374
        %v4416 = vpack.c.b16 %v4377, %v4376
        %v4417 = vpack.c.b16 %v4379, %v4378
        %v4418 = vpack.c.b16 %v4381, %v4380
        %v4419 = vpack.c.b16 %v4383, %v4382
        %v4420 = vpack.c.b16 %v4385, %v4384
        %v4421 = vpack.c.b16 %v4387, %v4386
        %v4422 = vpack.c.b16 %v4389, %v4388
        %v4423 = vpack.c.b16 %v4391, %v4390
        %v4424 = vpack.c.b16 %v4393, %v4392
        %v4425 = vpack.c.b16 %v4395, %v4394
        %v4426 = vpack.c.b16 %v4397, %v4396
        %v4427 = vpack.c.b16 %v4399, %v4398
        %v4428 = vpack.c.b16 %v4401, %v4400
        %v4429 = vpack.c.b16 %v4403, %v4402
        %v4430 = vpack.c.b16 %v4405, %v4404
        %v4431 = vpack.c.b16 %v4407, %v4406
        %4456 = vmatprep.subr.bf16.mxu0 0
        %4457 = vmatpush1.bf16.msra.mxu0 %v4408
        %4458 = vmatprep.subr.bf16.mxu0 0
        %4459 = vmatpush1.bf16.msra.mxu0 %v4409
        %4460 = vmatprep.subr.bf16.mxu0 0
        %4461 = vmatpush1.bf16.msra.mxu0 %v4410
        %4462 = vmatprep.subr.bf16.mxu0 0
        %4463 = vmatpush1.bf16.msra.mxu0 %v4411
        %4464 = vmatprep.subr.bf16.mxu0 0
        %4465 = vmatpush1.bf16.msra.mxu0 %v4412
        %4466 = vmatprep.subr.bf16.mxu0 0
        %4467 = vmatpush1.bf16.msra.mxu0 %v4413
        %4468 = vmatprep.subr.bf16.mxu0 0
        %4469 = vmatpush1.bf16.msra.mxu0 %v4414
        %4470 = vmatprep.subr.bf16.mxu0 0
        %4471 = vmatpush1.bf16.msra.mxu0 %v4415
        %4472 = vmatprep.subr.bf16.mxu0 0
        %4473 = vmatpush1.bf16.msra.mxu0 %v4416
        %4474 = vmatprep.subr.bf16.mxu0 0
        %4475 = vmatpush1.bf16.msra.mxu0 %v4417
        %4476 = vmatprep.subr.bf16.mxu0 0
        %4477 = vmatpush1.bf16.msra.mxu0 %v4418
        %4478 = vmatprep.subr.bf16.mxu0 0
        %4479 = vmatpush1.bf16.msra.mxu0 %v4419
        %4480 = vmatprep.subr.bf16.mxu0 0
        %4481 = vmatpush1.bf16.msra.mxu0 %v4420
        %4482 = vmatprep.subr.bf16.mxu0 0
        %4483 = vmatpush1.bf16.msra.mxu0 %v4421
        %4484 = vmatprep.subr.bf16.mxu0 0
        %4485 = vmatpush1.bf16.msra.mxu0 %v4422
        %4486 = vmatprep.subr.bf16.mxu0 0
        %4487 = vmatpush1.bf16.msra.mxu0 %v4423
        %4488 = vmatprep.mubr.bf16.mxu0 %v4220
        %4489 = vmatmul.mubr.bf16.gmra.mrb[0].mxu0 %v4219
        %v4490 = vpop.f32.mrb[0].mxu0
        %v4491 = vadd.f32 0.0, %v4490
        %v4492 = vpop.f32.mrb[0].mxu0
        %v4493 = vpop.f32.mrb[0].mxu0
        %v4494 = vadd.f32 0.0, %v4493
        %v4495 = vpop.f32.mrb[0].mxu0
        %4496 = vmatprep.mubr.bf16.mxu0 %v4223
        %4497 = vmatmul.mubr.bf16.gmra.mrb[0].mxu0 %v4222
        %v4498 = vpop.f32.mrb[0].mxu0
        %v4499 = vadd.f32 0.0, %v4498
        %v4500 = vpop.f32.mrb[0].mxu0
        %v4501 = vpop.f32.mrb[0].mxu0
        %v4502 = vadd.f32 0.0, %v4501
        %v4503 = vpop.f32.mrb[0].mxu0
        %4504 = vmatprep.mubr.bf16.mxu0 %v4226
        %4505 = vmatmul.mubr.bf16.gmra.mrb[0].mxu0 %v4225
        %v4506 = vpop.f32.mrb[0].mxu0
        %v4507 = vadd.f32 0.0, %v4506
        %v4508 = vpop.f32.mrb[0].mxu0
        %v4509 = vpop.f32.mrb[0].mxu0
        %v4510 = vadd.f32 0.0, %v4509
        %v4511 = vpop.f32.mrb[0].mxu0
        %4512 = vmatprep.mubr.bf16.mxu0 %v4229
        %4513 = vmatmul.mubr.bf16.gmra.mrb[0].mxu0 %v4228
        %v4514 = vpop.f32.mrb[0].mxu0
        %v4515 = vadd.f32 0.0, %v4514
        %v4516 = vpop.f32.mrb[0].mxu0
        %v4517 = vpop.f32.mrb[0].mxu0
        %v4518 = vadd.f32 0.0, %v4517
        %v4519 = vpop.f32.mrb[0].mxu0
        %4520 = vmatprep.mubr.bf16.mxu0 %v4232
        %4521 = vmatmul.mubr.bf16.gmra.mrb[0].mxu0 %v4231
        %v4522 = vpop.f32.mrb[0].mxu0
        %v4523 = vadd.f32 0.0, %v4522
        %v4524 = vpop.f32.mrb[0].mxu0
        %v4525 = vpop.f32.mrb[0].mxu0
        %v4526 = vadd.f32 0.0, %v4525
        %v4527 = vpop.f32.mrb[0].mxu0
        %4528 = vmatprep.mubr.bf16.mxu0 %v4235
        %4529 = vmatmul.mubr.bf16.gmra.mrb[0].mxu0 %v4234
        %v4530 = vpop.f32.mrb[0].mxu0
        %v4531 = vadd.f32 0.0, %v4530
        %v4532 = vpop.f32.mrb[0].mxu0
        %v4533 = vpop.f32.mrb[0].mxu0
        %v4534 = vadd.f32 0.0, %v4533
        %v4535 = vpop.f32.mrb[0].mxu0
        %4536 = vmatprep.mubr.bf16.mxu0 %v4238
        %4537 = vmatmul.mubr.bf16.gmra.mrb[0].mxu0 %v4237
        %v4538 = vpop.f32.mrb[0].mxu0
        %v4539 = vadd.f32 0.0, %v4538
        %v4540 = vpop.f32.mrb[0].mxu0
        %v4541 = vpop.f32.mrb[0].mxu0
        %v4542 = vadd.f32 0.0, %v4541
        %v4543 = vpop.f32.mrb[0].mxu0
        %4544 = vmatprep.mubr.bf16.mxu0 %v4241
        %4545 = vmatmul.mubr.bf16.gmra.mrb[0].mxu0 %v4240
        %v4546 = vpop.f32.mrb[0].mxu0
        %v4547 = vadd.f32 0.0, %v4546
        %v4548 = vpop.f32.mrb[0].mxu0
        %v4549 = vpop.f32.mrb[0].mxu0
        %v4550 = vadd.f32 0.0, %v4549
        %v4551 = vpop.f32.mrb[0].mxu0
        %4552 = vmatprep.mubr.bf16.mxu0 %v4244
        %4553 = vmatmul.mubr.bf16.gmra.mrb[0].mxu0 %v4243
        %v4554 = vpop.f32.mrb[0].mxu0
        %v4555 = vadd.f32 0.0, %v4554
        %v4556 = vpop.f32.mrb[0].mxu0
        %v4557 = vpop.f32.mrb[0].mxu0
        %v4558 = vadd.f32 0.0, %v4557
        %v4559 = vpop.f32.mrb[0].mxu0
        %4560 = vmatprep.mubr.bf16.mxu0 %v4247
        %4561 = vmatmul.mubr.bf16.gmra.mrb[0].mxu0 %v4246
        %v4562 = vpop.f32.mrb[0].mxu0
        %v4563 = vadd.f32 0.0, %v4562
        %v4564 = vpop.f32.mrb[0].mxu0
        %v4565 = vpop.f32.mrb[0].mxu0
        %v4566 = vadd.f32 0.0, %v4565
        %v4567 = vpop.f32.mrb[0].mxu0
        %4568 = vmatprep.mubr.bf16.mxu0 %v4250
        %4569 = vmatmul.mubr.bf16.gmra.mrb[0].mxu0 %v4249
        %v4570 = vpop.f32.mrb[0].mxu0
        %v4571 = vadd.f32 0.0, %v4570
        %v4572 = vpop.f32.mrb[0].mxu0
        %v4573 = vpop.f32.mrb[0].mxu0
        %v4574 = vadd.f32 0.0, %v4573
        %v4575 = vpop.f32.mrb[0].mxu0
        %4576 = vmatprep.mubr.bf16.mxu0 %v4253
        %4577 = vmatmul.mubr.bf16.gmra.mrb[0].mxu0 %v4252
        %v4578 = vpop.f32.mrb[0].mxu0
        %v4579 = vadd.f32 0.0, %v4578
        %v4580 = vpop.f32.mrb[0].mxu0
        %v4581 = vpop.f32.mrb[0].mxu0
        %v4582 = vadd.f32 0.0, %v4581
        %v4583 = vpop.f32.mrb[0].mxu0
        %4584 = vmatprep.mubr.bf16.mxu0 %v4256
        %4585 = vmatmul.mubr.bf16.gmra.mrb[0].mxu0 %v4255
        %v4586 = vpop.f32.mrb[0].mxu0
        %v4587 = vadd.f32 0.0, %v4586
        %v4588 = vpop.f32.mrb[0].mxu0
        %v4589 = vpop.f32.mrb[0].mxu0
        %v4590 = vadd.f32 0.0, %v4589
        %v4591 = vpop.f32.mrb[0].mxu0
        %4592 = vmatprep.mubr.bf16.mxu0 %v4259
        %4593 = vmatmul.mubr.bf16.gmra.mrb[0].mxu0 %v4258
        %v4594 = vpop.f32.mrb[0].mxu0
        %v4595 = vadd.f32 0.0, %v4594
        %v4596 = vpop.f32.mrb[0].mxu0
        %v4597 = vpop.f32.mrb[0].mxu0
        %v4598 = vadd.f32 0.0, %v4597
        %v4599 = vpop.f32.mrb[0].mxu0
        %4600 = vmatprep.mubr.bf16.mxu0 %v4262
        %4601 = vmatmul.mubr.bf16.gmra.mrb[0].mxu0 %v4261
        %v4602 = vpop.f32.mrb[0].mxu0
        %v4603 = vadd.f32 0.0, %v4602
        %v4604 = vpop.f32.mrb[0].mxu0
        %v4605 = vpop.f32.mrb[0].mxu0
        %v4606 = vadd.f32 0.0, %v4605
        %v4607 = vpop.f32.mrb[0].mxu0
        %4608 = vdwg.mxu0
        %4609 = vmatprep.subr.bf16.mxu0 0
        %4610 = vmatpush1.bf16.msra.mxu0 %v4424
        %4611 = vmatprep.subr.bf16.mxu0 0
        %4612 = vmatpush1.bf16.msra.mxu0 %v4425
        %4613 = vmatprep.subr.bf16.mxu0 0
        %4614 = vmatpush1.bf16.msra.mxu0 %v4426
        %4615 = vmatprep.subr.bf16.mxu0 0
        %4616 = vmatpush1.bf16.msra.mxu0 %v4427
        %4617 = vmatprep.subr.bf16.mxu0 0
        %4618 = vmatpush1.bf16.msra.mxu0 %v4428
        %4619 = vmatprep.subr.bf16.mxu0 0
        %4620 = vmatpush1.bf16.msra.mxu0 %v4429
        %4621 = vmatprep.subr.bf16.mxu0 0
        %4622 = vmatpush1.bf16.msra.mxu0 %v4430
        %4623 = vmatprep.subr.bf16.mxu0 0
        %4624 = vmatpush1.bf16.msra.mxu0 %v4431
        %4625 = vmatprep.subr.bf16.mxu0 0
        %4626 = vmatpush1.bf16.msra.mxu0 0
        %4627 = vmatprep.subr.bf16.mxu0 0
        %4628 = vmatpush1.bf16.msra.mxu0 0
        %4629 = vmatprep.subr.bf16.mxu0 0
        %4630 = vmatpush1.bf16.msra.mxu0 0
        %4631 = vmatprep.subr.bf16.mxu0 0
        %4632 = vmatpush1.bf16.msra.mxu0 0
        %4633 = vmatprep.subr.bf16.mxu0 0
        %4634 = vmatpush1.bf16.msra.mxu0 0
        %4635 = vmatprep.subr.bf16.mxu0 0
        %4636 = vmatpush1.bf16.msra.mxu0 0
        %4637 = vmatprep.subr.bf16.mxu0 0
        %4638 = vmatpush1.bf16.msra.mxu0 0
        %4639 = vmatprep.subr.bf16.mxu0 0
        %4640 = vmatpush1.bf16.msra.mxu0 0
        %4641 = vmatprep.mubr.bf16.mxu0 0
        %4642 = vmatmul.mubr.bf16.gmra.mrb[0].mxu0 %v4221
        %v4643 = vpop.f32.mrb[0].mxu0
        %v4644 = vadd.f32 %v4491, %v4643
        %v4645 = vpop.f32.mrb[0].mxu0
        %v4646 = vpop.f32.mrb[0].mxu0
        %v4647 = vadd.f32 %v4494, %v4646
        %v4648 = vpop.f32.mrb[0].mxu0
        %4649 = vmatprep.mubr.bf16.mxu0 0
        %4650 = vmatmul.mubr.bf16.gmra.mrb[0].mxu0 %v4224
        %v4651 = vpop.f32.mrb[0].mxu0
        %v4652 = vadd.f32 %v4499, %v4651
        %v4653 = vpop.f32.mrb[0].mxu0
        %v4654 = vpop.f32.mrb[0].mxu0
        %v4655 = vadd.f32 %v4502, %v4654
        %v4656 = vpop.f32.mrb[0].mxu0
        %4657 = vmatprep.mubr.bf16.mxu0 0
        %4658 = vmatmul.mubr.bf16.gmra.mrb[0].mxu0 %v4227
        %v4659 = vpop.f32.mrb[0].mxu0
        %v4660 = vadd.f32 %v4507, %v4659
        %v4661 = vpop.f32.mrb[0].mxu0
        %v4662 = vpop.f32.mrb[0].mxu0
        %v4663 = vadd.f32 %v4510, %v4662
        %v4664 = vpop.f32.mrb[0].mxu0
        %4665 = vmatprep.mubr.bf16.mxu0 0
        %4666 = vmatmul.mubr.bf16.gmra.mrb[0].mxu0 %v4230
        %v4667 = vpop.f32.mrb[0].mxu0
        %v4668 = vadd.f32 %v4515, %v4667
        %v4669 = vpop.f32.mrb[0].mxu0
        %v4670 = vpop.f32.mrb[0].mxu0
        %v4671 = vadd.f32 %v4518, %v4670
        %v4672 = vpop.f32.mrb[0].mxu0
        %4673 = vmatprep.mubr.bf16.mxu0 0
        %4674 = vmatmul.mubr.bf16.gmra.mrb[0].mxu0 %v4233
        %v4675 = vpop.f32.mrb[0].mxu0
        %v4676 = vadd.f32 %v4523, %v4675
        %v4677 = vpop.f32.mrb[0].mxu0
        %v4678 = vpop.f32.mrb[0].mxu0
        %v4679 = vadd.f32 %v4526, %v4678
        %v4680 = vpop.f32.mrb[0].mxu0
        %4681 = vmatprep.mubr.bf16.mxu0 0
        %4682 = vmatmul.mubr.bf16.gmra.mrb[0].mxu0 %v4236
        %v4683 = vpop.f32.mrb[0].mxu0
        %v4684 = vadd.f32 %v4531, %v4683
        %v4685 = vpop.f32.mrb[0].mxu0
        %v4686 = vpop.f32.mrb[0].mxu0
        %v4687 = vadd.f32 %v4534, %v4686
        %v4688 = vpop.f32.mrb[0].mxu0
        %4689 = vmatprep.mubr.bf16.mxu0 0
        %4690 = vmatmul.mubr.bf16.gmra.mrb[0].mxu0 %v4239
        %v4691 = vpop.f32.mrb[0].mxu0
        %v4692 = vadd.f32 %v4539, %v4691
        %v4693 = vpop.f32.mrb[0].mxu0
        %v4694 = vpop.f32.mrb[0].mxu0
        %v4695 = vadd.f32 %v4542, %v4694
        %v4696 = vpop.f32.mrb[0].mxu0
        %4697 = vmatprep.mubr.bf16.mxu0 0
        %4698 = vmatmul.mubr.bf16.gmra.mrb[0].mxu0 %v4242
        %v4699 = vpop.f32.mrb[0].mxu0
        %v4700 = vadd.f32 %v4547, %v4699
        %v4701 = vpop.f32.mrb[0].mxu0
        %v4702 = vpop.f32.mrb[0].mxu0
        %v4703 = vadd.f32 %v4550, %v4702
        %v4704 = vpop.f32.mrb[0].mxu0
        %4705 = vmatprep.mubr.bf16.mxu0 0
        %4706 = vmatmul.mubr.bf16.gmra.mrb[0].mxu0 %v4245
        %v4707 = vpop.f32.mrb[0].mxu0
        %v4708 = vadd.f32 %v4555, %v4707
        %v4709 = vpop.f32.mrb[0].mxu0
        %v4710 = vpop.f32.mrb[0].mxu0
        %v4711 = vadd.f32 %v4558, %v4710
        %v4712 = vpop.f32.mrb[0].mxu0
        %4713 = vmatprep.mubr.bf16.mxu0 0
        %4714 = vmatmul.mubr.bf16.gmra.mrb[0].mxu0 %v4248
        %v4715 = vpop.f32.mrb[0].mxu0
        %v4716 = vadd.f32 %v4563, %v4715
        %v4717 = vpop.f32.mrb[0].mxu0
        %v4718 = vpop.f32.mrb[0].mxu0
        %v4719 = vadd.f32 %v4566, %v4718
        %v4720 = vpop.f32.mrb[0].mxu0
        %4721 = vmatprep.mubr.bf16.mxu0 0
        %4722 = vmatmul.mubr.bf16.gmra.mrb[0].mxu0 %v4251
        %v4723 = vpop.f32.mrb[0].mxu0
        %v4724 = vadd.f32 %v4571, %v4723
        %v4725 = vpop.f32.mrb[0].mxu0
        %v4726 = vpop.f32.mrb[0].mxu0
        %v4727 = vadd.f32 %v4574, %v4726
        %v4728 = vpop.f32.mrb[0].mxu0
        %4729 = vmatprep.mubr.bf16.mxu0 0
        %4730 = vmatmul.mubr.bf16.gmra.mrb[0].mxu0 %v4254
        %v4731 = vpop.f32.mrb[0].mxu0
        %v4732 = vadd.f32 %v4579, %v4731
        %v4733 = vpop.f32.mrb[0].mxu0
        %v4734 = vpop.f32.mrb[0].mxu0
        %v4735 = vadd.f32 %v4582, %v4734
        %v4736 = vpop.f32.mrb[0].mxu0
        %4737 = vmatprep.mubr.bf16.mxu0 0
        %4738 = vmatmul.mubr.bf16.gmra.mrb[0].mxu0 %v4257
        %v4739 = vpop.f32.mrb[0].mxu0
        %v4740 = vadd.f32 %v4587, %v4739
        %v4741 = vpop.f32.mrb[0].mxu0
        %v4742 = vpop.f32.mrb[0].mxu0
        %v4743 = vadd.f32 %v4590, %v4742
        %v4744 = vpop.f32.mrb[0].mxu0
        %4745 = vmatprep.mubr.bf16.mxu0 0
        %4746 = vmatmul.mubr.bf16.gmra.mrb[0].mxu0 %v4260
        %v4747 = vpop.f32.mrb[0].mxu0
        %v4748 = vadd.f32 %v4595, %v4747
        %v4749 = vpop.f32.mrb[0].mxu0
        %v4750 = vpop.f32.mrb[0].mxu0
        %v4751 = vadd.f32 %v4598, %v4750
        %v4752 = vpop.f32.mrb[0].mxu0
        %4753 = vmatprep.mubr.bf16.mxu0 0
        %4754 = vmatmul.mubr.bf16.gmra.mrb[0].mxu0 %v4263
        %v4755 = vpop.f32.mrb[0].mxu0
        %v4756 = vadd.f32 %v4603, %v4755
        %v4757 = vpop.f32.mrb[0].mxu0
        %v4758 = vpop.f32.mrb[0].mxu0
        %v4759 = vadd.f32 %v4606, %v4758
        %v4760 = vpop.f32.mrb[0].mxu0
        %4761 = vdwg.mxu0
        %v4762 = vadd.f32 %v4189, %v4644
        %v4763 = vadd.f32 %v4190, %v4647
        %v4764 = vadd.f32 %v4191, %v4652
        %v4765 = vadd.f32 %v4192, %v4655
        %v4766 = vadd.f32 %v4193, %v4660
        %v4767 = vadd.f32 %v4194, %v4663
        %v4768 = vadd.f32 %v4195, %v4668
        %v4769 = vadd.f32 %v4196, %v4671
        %v4770 = vadd.f32 %v4197, %v4676
        %v4771 = vadd.f32 %v4198, %v4679
        %v4772 = vadd.f32 %v4199, %v4684
        %v4773 = vadd.f32 %v4200, %v4687
        %v4774 = vadd.f32 %v4201, %v4692
        %v4775 = vadd.f32 %v4202, %v4695
        %v4776 = vadd.f32 %v4203, %v4700
        %v4777 = vadd.f32 %v4204, %v4703
        %v4778 = vadd.f32 %v4205, %v4708
        %v4779 = vadd.f32 %v4206, %v4711
        %v4780 = vadd.f32 %v4207, %v4716
        %v4781 = vadd.f32 %v4208, %v4719
        %v4782 = vadd.f32 %v4209, %v4724
        %v4783 = vadd.f32 %v4210, %v4727
        %v4784 = vadd.f32 %v4211, %v4732
        %v4785 = vadd.f32 %v4212, %v4735
        %v4786 = vadd.f32 %v4213, %v4740
        %v4787 = vadd.f32 %v4214, %v4743
        %v4788 = vadd.f32 %v4215, %v4748
        %v4789 = vadd.f32 %v4216, %v4751
        %v4790 = vadd.f32 %v4217, %v4756
        %v4791 = vadd.f32 %v4218, %v4759
        %4792 = vst [vmem:[#allocation3 + $0x10] sm:$0xff] %v4762
        %4793 = vst [vmem:[#allocation3 + $0x18] sm:$0xff] %v4763
        %4794 = vst [vmem:[#allocation3 + $0x20] sm:$0xff] %v4764
        %4795 = vst [vmem:[#allocation3 + $0x28] sm:$0xff] %v4765
        %4796 = vst [vmem:[#allocation3 + $0x30] sm:$0xff] %v4766
        %4797 = vst [vmem:[#allocation3 + $0x38] sm:$0xff] %v4767
        %4798 = vst [vmem:[#allocation3 + $0x40] sm:$0xff] %v4768
        %4799 = vst [vmem:[#allocation3 + $0x48] sm:$0xff] %v4769
        %4800 = vst [vmem:[#allocation3 + $0x50] sm:$0xff] %v4770
        %4801 = vst [vmem:[#allocation3 + $0x58] sm:$0xff] %v4771
        %4802 = vst [vmem:[#allocation3 + $0x60] sm:$0xff] %v4772
        %4803 = vst [vmem:[#allocation3 + $0x68] sm:$0xff] %v4773
        %4804 = vst [vmem:[#allocation3 + $0x70] sm:$0xff] %v4774
        %4805 = vst [vmem:[#allocation3 + $0x78] sm:$0xff] %v4775
        %4806 = vst [vmem:[#allocation3 + $0x80] sm:$0xff] %v4776
        %4807 = vst [vmem:[#allocation3 + $0x88] sm:$0xff] %v4777
        %4808 = vst [vmem:[#allocation3 + $0x90] sm:$0xff] %v4778
        %4809 = vst [vmem:[#allocation3 + $0x98] sm:$0xff] %v4779
        %4810 = vst [vmem:[#allocation3 + $0xa0] sm:$0xff] %v4780
        %4811 = vst [vmem:[#allocation3 + $0xa8] sm:$0xff] %v4781
        %4812 = vst [vmem:[#allocation3 + $0xb0] sm:$0xff] %v4782
        %4813 = vst [vmem:[#allocation3 + $0xb8] sm:$0xff] %v4783
        %4814 = vst [vmem:[#allocation3 + $0xc0] sm:$0xff] %v4784
        %4815 = vst [vmem:[#allocation3 + $0xc8] sm:$0xff] %v4785
        %4816 = vst [vmem:[#allocation3 + $0xd0] sm:$0xff] %v4786
        %4817 = vst [vmem:[#allocation3 + $0xd8] sm:$0xff] %v4787
        %4818 = vst [vmem:[#allocation3 + $0xe0] sm:$0xff] %v4788
        %4819 = vst [vmem:[#allocation3 + $0xe8] sm:$0xff] %v4789
        %4820 = vst [vmem:[#allocation3 + $0xf0] sm:$0xff] %v4790
        %4821 = vst [vmem:[#allocation3 + $0xf8] sm:$0xff] %v4791
        %v4822 = vld [vmem:[#allocation3] sm:$0xff]
        %v4823 = vld [vmem:[#allocation3 + $0x8] sm:$0xff]
        %v4824 = vld [vmem:[#allocation3 + $0x10] sm:$0xff]
        %v4825 = vld [vmem:[#allocation3 + $0x18] sm:$0xff]
        %v4826 = vld [vmem:[#allocation3 + $0x20] sm:$0xff]
        %v4827 = vld [vmem:[#allocation3 + $0x28] sm:$0xff]
        %v4828 = vld [vmem:[#allocation3 + $0x30] sm:$0xff]
        %v4829 = vld [vmem:[#allocation3 + $0x38] sm:$0xff]
        %v4830 = vld [vmem:[#allocation3 + $0x40] sm:$0xff]
        %v4831 = vld [vmem:[#allocation3 + $0x48] sm:$0xff]
        %v4832 = vld [vmem:[#allocation3 + $0x50] sm:$0xff]
        %v4833 = vld [vmem:[#allocation3 + $0x58] sm:$0xff]
        %v4834 = vld [vmem:[#allocation3 + $0x60] sm:$0xff]
        %v4835 = vld [vmem:[#allocation3 + $0x68] sm:$0xff]
        %v4836 = vld [vmem:[#allocation3 + $0x70] sm:$0xff]
        %v4837 = vld [vmem:[#allocation3 + $0x78] sm:$0xff]
        %v4838 = vld [vmem:[#allocation3 + $0x80] sm:$0xff]
        %v4839 = vld [vmem:[#allocation3 + $0x88] sm:$0xff]
        %v4840 = vld [vmem:[#allocation3 + $0x90] sm:$0xff]
        %v4841 = vld [vmem:[#allocation3 + $0x98] sm:$0xff]
        %v4842 = vld [vmem:[#allocation3 + $0xa0] sm:$0xff]
        %v4843 = vld [vmem:[#allocation3 + $0xa8] sm:$0xff]
        %v4844 = vld [vmem:[#allocation3 + $0xb0] sm:$0xff]
        %v4845 = vld [vmem:[#allocation3 + $0xb8] sm:$0xff]
        %v4846 = vld [vmem:[#allocation3 + $0xc0] sm:$0xff]
        %v4847 = vld [vmem:[#allocation3 + $0xc8] sm:$0xff]
        %v4848 = vld [vmem:[#allocation3 + $0xd0] sm:$0xff]
        %v4849 = vld [vmem:[#allocation3 + $0xd8] sm:$0xff]
        %v4850 = vld [vmem:[#allocation3 + $0xe0] sm:$0xff]
        %v4851 = vld [vmem:[#allocation3 + $0xe8] sm:$0xff]
        %v4852 = vld [vmem:[#allocation2 + $0x18] sm:$0xff]
        %v4853 = vld [vmem:[#allocation2 + $0x20] sm:$0xff]
        %v4854 = vld [vmem:[#allocation2 + $0x28] sm:$0xff]
        %v4855 = vld [vmem:[#allocation2 + $0x30] sm:$0xff]
        %v4856 = vld [vmem:[#allocation2 + $0x38] sm:$0xff]
        %v4857 = vld [vmem:[#allocation2 + $0x40] sm:$0xff]
        %v4858 = vld [vmem:[#allocation2 + $0x48] sm:$0xff]
        %v4859 = vld [vmem:[#allocation2 + $0x50] sm:$0xff]
        %v4860 = vld [vmem:[#allocation2 + $0x58] sm:$0xff]
        %v4861 = vld [vmem:[#allocation2 + $0x60] sm:$0xff]
        %v4862 = vld [vmem:[#allocation2 + $0x68] sm:$0xff]
        %v4863 = vld [vmem:[#allocation2 + $0x70] sm:$0xff]
        %v4864 = vld [vmem:[#allocation2 + $0x78] sm:$0xff]
        %v4865 = vld [vmem:[#allocation2 + $0x80] sm:$0xff]
        %v4866 = vld [vmem:[#allocation2 + $0x88] sm:$0xff]
        %v4867 = vld [vmem:[#allocation2 + $0x90] sm:$0xff]
        %v4868 = vld [vmem:[#allocation2 + $0x98] sm:$0xff]
        %v4869 = vld [vmem:[#allocation2 + $0xa0] sm:$0xff]
        %v4870 = vld [vmem:[#allocation2 + $0xa8] sm:$0xff]
        %v4871 = vld [vmem:[#allocation2 + $0xb0] sm:$0xff]
        %v4872 = vld [vmem:[#allocation2 + $0xb8] sm:$0xff]
        %v4873 = vld [vmem:[#allocation2 + $0xc0] sm:$0xff]
        %v4874 = vld [vmem:[#allocation2 + $0xc8] sm:$0xff]
        %v4875 = vld [vmem:[#allocation2 + $0xd0] sm:$0xff]
        %v4876 = vld [vmem:[#allocation2 + $0xd8] sm:$0xff]
        %v4877 = vld [vmem:[#allocation2 + $0xe0] sm:$0xff]
        %v4878 = vld [vmem:[#allocation2 + $0xe8] sm:$0xff]
        %v4879 = vld [vmem:[#allocation2 + $0xf0] sm:$0xff]
        %v4880 = vld [vmem:[#allocation2 + $0xf8] sm:$0xff]
        %v4881 = vld [vmem:[#allocation2 + $0x100] sm:$0xff]
        %v4882 = vld [vmem:[#allocation2 + $0x108] sm:$0xff]
        %v4883 = vld [vmem:[#allocation2 + $0x110] sm:$0xff]
        %v4884 = vld [vmem:[#allocation2 + $0x118] sm:$0xff]
        %v4885 = vld [vmem:[#allocation2 + $0x120] sm:$0xff]
        %v4886 = vld [vmem:[#allocation2 + $0x128] sm:$0xff]
        %v4887 = vld [vmem:[#allocation2 + $0x130] sm:$0xff]
        %v4888 = vld [vmem:[#allocation2 + $0x138] sm:$0xff]
        %v4889 = vld [vmem:[#allocation2 + $0x140] sm:$0xff]
        %v4890 = vld [vmem:[#allocation2 + $0x148] sm:$0xff]
        %v4891 = vld [vmem:[#allocation2 + $0x150] sm:$0xff]
        %v4892 = vld [vmem:[#allocation2 + $0x158] sm:$0xff]
        %v4893 = vld [vmem:[#allocation2 + $0x160] sm:$0xff]
        %v4894 = vld [vmem:[#allocation2 + $0x168] sm:$0xff]
        %v4895 = vld [vmem:[#allocation2 + $0x170] sm:$0xff]
        %v4896 = vld [vmem:[#allocation2 + $0x178] sm:$0xff]
        %s4897 = scalar_lea.vmem [#allocation10], 384
        %v4898 = vld [vmem:[%s4897] sm:$0xf]
        %v4899 = vld [vmem:[%s4897 + $0x4] sm:$0xf]
        %v4900 = vld [vmem:[%s4897 + $0x8] sm:$0xf]
        %v4901 = vld [vmem:[%s4897 + $0xc] sm:$0xf]
        %v4902 = vld [vmem:[%s4897 + $0x10] sm:$0xf]
        %v4903 = vld [vmem:[%s4897 + $0x14] sm:$0xf]
        %v4904 = vld [vmem:[%s4897 + $0x18] sm:$0xf]
        %v4905 = vld [vmem:[%s4897 + $0x1c] sm:$0xf]
        %v4906 = vld [vmem:[%s4897 + $0x20] sm:$0xf]
        %v4907 = vld [vmem:[%s4897 + $0x24] sm:$0xf]
        %v4908 = vld [vmem:[%s4897 + $0x28] sm:$0xf]
        %v4909 = vld [vmem:[%s4897 + $0x2c] sm:$0xf]
        %v4910 = vld [vmem:[%s4897 + $0x30] sm:$0xf]
        %v4911 = vld [vmem:[%s4897 + $0x34] sm:$0xf]
        %v4912 = vld [vmem:[%s4897 + $0x38] sm:$0xf]
        %v4913 = vld [vmem:[%s4897 + $0x3c] sm:$0xf]
        %v4914 = vld [vmem:[%s4897 + $0x40] sm:$0xf]
        %v4915 = vld [vmem:[%s4897 + $0x44] sm:$0xf]
        %v4916 = vld [vmem:[%s4897 + $0x48] sm:$0xf]
        %v4917 = vld [vmem:[%s4897 + $0x4c] sm:$0xf]
        %v4918 = vld [vmem:[%s4897 + $0x50] sm:$0xf]
        %v4919 = vld [vmem:[%s4897 + $0x54] sm:$0xf]
        %v4920 = vld [vmem:[%s4897 + $0x58] sm:$0xf]
        %v4921 = vld [vmem:[%s4897 + $0x5c] sm:$0xf]
        %v4922 = vld [vmem:[%s4897 + $0x60] sm:$0xf]
        %v4923 = vld [vmem:[%s4897 + $0x64] sm:$0xf]
        %v4924 = vld [vmem:[%s4897 + $0x68] sm:$0xf]
        %v4925 = vld [vmem:[%s4897 + $0x6c] sm:$0xf]
        %v4926 = vld [vmem:[%s4897 + $0x70] sm:$0xf]
        %v4927 = vld [vmem:[%s4897 + $0x74] sm:$0xf]
        %v4928 = vld [vmem:[%s4897 + $0x78] sm:$0xf]
        %v4929 = vld [vmem:[%s4897 + $0x7c] sm:$0xf]
        %v4930 = vld [vmem:[%s4897 + $0x80] sm:$0xf]
        %v4931 = vld [vmem:[%s4897 + $0x84] sm:$0xf]
        %v4932 = vld [vmem:[%s4897 + $0x88] sm:$0xf]
        %v4933 = vld [vmem:[%s4897 + $0x8c] sm:$0xf]
        %v4934 = vld [vmem:[%s4897 + $0x90] sm:$0xf]
        %v4935 = vld [vmem:[%s4897 + $0x94] sm:$0xf]
        %v4936 = vld [vmem:[%s4897 + $0x98] sm:$0xf]
        %v4937 = vld [vmem:[%s4897 + $0x9c] sm:$0xf]
        %v4938 = vld [vmem:[%s4897 + $0xa0] sm:$0xf]
        %v4939 = vld [vmem:[%s4897 + $0xa4] sm:$0xf]
        %v4940 = vld [vmem:[%s4897 + $0xa8] sm:$0xf]
        %v4941 = vld [vmem:[%s4897 + $0xac] sm:$0xf]
        %v4942 = vld [vmem:[%s4897 + $0xb0] sm:$0xf]
        %v4943 = vld [vmem:[%s4897 + $0xb4] sm:$0xf]
        %v4944 = vld [vmem:[%s4897 + $0xb8] sm:$0xf]
        %v4945 = vld [vmem:[%s4897 + $0xbc] sm:$0xf]
        %v4994 = vunpack.c.l.b16 %v4898
        %v4995 = vunpack.c.l.b16 %v4899
        %v4996 = vunpack.c.l.b16 %v4900
        %v4997 = vunpack.c.l.b16 %v4901
        %v4998 = vunpack.c.l.b16 %v4902
        %v4999 = vunpack.c.l.b16 %v4903
        %v5000 = vunpack.c.l.b16 %v4904
        %v5001 = vunpack.c.l.b16 %v4905
        %v5002 = vunpack.c.l.b16 %v4906
        %v5003 = vunpack.c.l.b16 %v4907
        %v5004 = vunpack.c.l.b16 %v4908
        %v5005 = vunpack.c.l.b16 %v4909
        %v5006 = vunpack.c.l.b16 %v4910
        %v5007 = vunpack.c.l.b16 %v4911
        %v5008 = vunpack.c.l.b16 %v4912
        %v5009 = vunpack.c.l.b16 %v4913
        %v5010 = vunpack.c.l.b16 %v4914
        %v5011 = vunpack.c.l.b16 %v4915
        %v5012 = vunpack.c.l.b16 %v4916
        %v5013 = vunpack.c.l.b16 %v4917
        %v5014 = vunpack.c.l.b16 %v4918
        %v5015 = vunpack.c.l.b16 %v4919
        %v5016 = vunpack.c.l.b16 %v4920
        %v5017 = vunpack.c.l.b16 %v4921
        %v5018 = vunpack.c.l.b16 %v4922
        %v5019 = vunpack.c.l.b16 %v4923
        %v5020 = vunpack.c.l.b16 %v4924
        %v5021 = vunpack.c.l.b16 %v4925
        %v5022 = vunpack.c.l.b16 %v4926
        %v5023 = vunpack.c.l.b16 %v4927
        %v5024 = vunpack.c.l.b16 %v4928
        %v5025 = vunpack.c.l.b16 %v4929
        %v5026 = vunpack.c.l.b16 %v4930
        %v5027 = vunpack.c.l.b16 %v4931
        %v5028 = vunpack.c.l.b16 %v4932
        %v5029 = vunpack.c.l.b16 %v4933
        %v5030 = vunpack.c.l.b16 %v4934
        %v5031 = vunpack.c.l.b16 %v4935
        %v5032 = vunpack.c.l.b16 %v4936
        %v5033 = vunpack.c.l.b16 %v4937
        %v5034 = vunpack.c.l.b16 %v4938
        %v5035 = vunpack.c.l.b16 %v4939
        %v5036 = vunpack.c.l.b16 %v4940
        %v5037 = vunpack.c.l.b16 %v4941
        %v5038 = vunpack.c.l.b16 %v4942
        %v5039 = vunpack.c.l.b16 %v4943
        %v5040 = vunpack.c.l.b16 %v4944
        %v5041 = vunpack.c.l.b16 %v4945
        %v5042 = vpack.c.b16 %v4995, %v4994
        %v5043 = vpack.c.b16 %v4997, %v4996
        %v5044 = vpack.c.b16 %v4999, %v4998
        %v5045 = vpack.c.b16 %v5001, %v5000
        %v5046 = vpack.c.b16 %v5003, %v5002
        %v5047 = vpack.c.b16 %v5005, %v5004
        %v5048 = vpack.c.b16 %v5007, %v5006
        %v5049 = vpack.c.b16 %v5009, %v5008
        %v5050 = vpack.c.b16 %v5011, %v5010
        %v5051 = vpack.c.b16 %v5013, %v5012
        %v5052 = vpack.c.b16 %v5015, %v5014
        %v5053 = vpack.c.b16 %v5017, %v5016
        %v5054 = vpack.c.b16 %v5019, %v5018
        %v5055 = vpack.c.b16 %v5021, %v5020
        %v5056 = vpack.c.b16 %v5023, %v5022
        %v5057 = vpack.c.b16 %v5025, %v5024
        %v5058 = vpack.c.b16 %v5027, %v5026
        %v5059 = vpack.c.b16 %v5029, %v5028
        %v5060 = vpack.c.b16 %v5031, %v5030
        %v5061 = vpack.c.b16 %v5033, %v5032
        %v5062 = vpack.c.b16 %v5035, %v5034
        %v5063 = vpack.c.b16 %v5037, %v5036
        %v5064 = vpack.c.b16 %v5039, %v5038
        %v5065 = vpack.c.b16 %v5041, %v5040
        %5090 = vmatprep.subr.bf16.mxu0 0
        %5091 = vmatpush1.bf16.msra.mxu0 %v5042
        %5092 = vmatprep.subr.bf16.mxu0 0
        %5093 = vmatpush1.bf16.msra.mxu0 %v5043
        %5094 = vmatprep.subr.bf16.mxu0 0
        %5095 = vmatpush1.bf16.msra.mxu0 %v5044
        %5096 = vmatprep.subr.bf16.mxu0 0
        %5097 = vmatpush1.bf16.msra.mxu0 %v5045
        %5098 = vmatprep.subr.bf16.mxu0 0
        %5099 = vmatpush1.bf16.msra.mxu0 %v5046
        %5100 = vmatprep.subr.bf16.mxu0 0
        %5101 = vmatpush1.bf16.msra.mxu0 %v5047
        %5102 = vmatprep.subr.bf16.mxu0 0
        %5103 = vmatpush1.bf16.msra.mxu0 %v5048
        %5104 = vmatprep.subr.bf16.mxu0 0
        %5105 = vmatpush1.bf16.msra.mxu0 %v5049
        %5106 = vmatprep.subr.bf16.mxu0 0
        %5107 = vmatpush1.bf16.msra.mxu0 %v5050
        %5108 = vmatprep.subr.bf16.mxu0 0
        %5109 = vmatpush1.bf16.msra.mxu0 %v5051
        %5110 = vmatprep.subr.bf16.mxu0 0
        %5111 = vmatpush1.bf16.msra.mxu0 %v5052
        %5112 = vmatprep.subr.bf16.mxu0 0
        %5113 = vmatpush1.bf16.msra.mxu0 %v5053
        %5114 = vmatprep.subr.bf16.mxu0 0
        %5115 = vmatpush1.bf16.msra.mxu0 %v5054
        %5116 = vmatprep.subr.bf16.mxu0 0
        %5117 = vmatpush1.bf16.msra.mxu0 %v5055
        %5118 = vmatprep.subr.bf16.mxu0 0
        %5119 = vmatpush1.bf16.msra.mxu0 %v5056
        %5120 = vmatprep.subr.bf16.mxu0 0
        %5121 = vmatpush1.bf16.msra.mxu0 %v5057
        %5122 = vmatprep.mubr.bf16.mxu0 %v4853
        %5123 = vmatmul.mubr.bf16.gmra.mrb[0].mxu0 %v4852
        %v5124 = vpop.f32.mrb[0].mxu0
        %v5125 = vadd.f32 0.0, %v5124
        %v5126 = vpop.f32.mrb[0].mxu0
        %v5127 = vpop.f32.mrb[0].mxu0
        %v5128 = vadd.f32 0.0, %v5127
        %v5129 = vpop.f32.mrb[0].mxu0
        %5130 = vmatprep.mubr.bf16.mxu0 %v4856
        %5131 = vmatmul.mubr.bf16.gmra.mrb[0].mxu0 %v4855
        %v5132 = vpop.f32.mrb[0].mxu0
        %v5133 = vadd.f32 0.0, %v5132
        %v5134 = vpop.f32.mrb[0].mxu0
        %v5135 = vpop.f32.mrb[0].mxu0
        %v5136 = vadd.f32 0.0, %v5135
        %v5137 = vpop.f32.mrb[0].mxu0
        %5138 = vmatprep.mubr.bf16.mxu0 %v4859
        %5139 = vmatmul.mubr.bf16.gmra.mrb[0].mxu0 %v4858
        %v5140 = vpop.f32.mrb[0].mxu0
        %v5141 = vadd.f32 0.0, %v5140
        %v5142 = vpop.f32.mrb[0].mxu0
        %v5143 = vpop.f32.mrb[0].mxu0
        %v5144 = vadd.f32 0.0, %v5143
        %v5145 = vpop.f32.mrb[0].mxu0
        %5146 = vmatprep.mubr.bf16.mxu0 %v4862
        %5147 = vmatmul.mubr.bf16.gmra.mrb[0].mxu0 %v4861
        %v5148 = vpop.f32.mrb[0].mxu0
        %v5149 = vadd.f32 0.0, %v5148
        %v5150 = vpop.f32.mrb[0].mxu0
        %v5151 = vpop.f32.mrb[0].mxu0
        %v5152 = vadd.f32 0.0, %v5151
        %v5153 = vpop.f32.mrb[0].mxu0
        %5154 = vmatprep.mubr.bf16.mxu0 %v4865
        %5155 = vmatmul.mubr.bf16.gmra.mrb[0].mxu0 %v4864
        %v5156 = vpop.f32.mrb[0].mxu0
        %v5157 = vadd.f32 0.0, %v5156
        %v5158 = vpop.f32.mrb[0].mxu0
        %v5159 = vpop.f32.mrb[0].mxu0
        %v5160 = vadd.f32 0.0, %v5159
        %v5161 = vpop.f32.mrb[0].mxu0
        %5162 = vmatprep.mubr.bf16.mxu0 %v4868
        %5163 = vmatmul.mubr.bf16.gmra.mrb[0].mxu0 %v4867
        %v5164 = vpop.f32.mrb[0].mxu0
        %v5165 = vadd.f32 0.0, %v5164
        %v5166 = vpop.f32.mrb[0].mxu0
        %v5167 = vpop.f32.mrb[0].mxu0
        %v5168 = vadd.f32 0.0, %v5167
        %v5169 = vpop.f32.mrb[0].mxu0
        %5170 = vmatprep.mubr.bf16.mxu0 %v4871
        %5171 = vmatmul.mubr.bf16.gmra.mrb[0].mxu0 %v4870
        %v5172 = vpop.f32.mrb[0].mxu0
        %v5173 = vadd.f32 0.0, %v5172
        %v5174 = vpop.f32.mrb[0].mxu0
        %v5175 = vpop.f32.mrb[0].mxu0
        %v5176 = vadd.f32 0.0, %v5175
        %v5177 = vpop.f32.mrb[0].mxu0
        %5178 = vmatprep.mubr.bf16.mxu0 %v4874
        %5179 = vmatmul.mubr.bf16.gmra.mrb[0].mxu0 %v4873
        %v5180 = vpop.f32.mrb[0].mxu0
        %v5181 = vadd.f32 0.0, %v5180
        %v5182 = vpop.f32.mrb[0].mxu0
        %v5183 = vpop.f32.mrb[0].mxu0
        %v5184 = vadd.f32 0.0, %v5183
        %v5185 = vpop.f32.mrb[0].mxu0
        %5186 = vmatprep.mubr.bf16.mxu0 %v4877
        %5187 = vmatmul.mubr.bf16.gmra.mrb[0].mxu0 %v4876
        %v5188 = vpop.f32.mrb[0].mxu0
        %v5189 = vadd.f32 0.0, %v5188
        %v5190 = vpop.f32.mrb[0].mxu0
        %v5191 = vpop.f32.mrb[0].mxu0
        %v5192 = vadd.f32 0.0, %v5191
        %v5193 = vpop.f32.mrb[0].mxu0
        %5194 = vmatprep.mubr.bf16.mxu0 %v4880
        %5195 = vmatmul.mubr.bf16.gmra.mrb[0].mxu0 %v4879
        %v5196 = vpop.f32.mrb[0].mxu0
        %v5197 = vadd.f32 0.0, %v5196
        %v5198 = vpop.f32.mrb[0].mxu0
        %v5199 = vpop.f32.mrb[0].mxu0
        %v5200 = vadd.f32 0.0, %v5199
        %v5201 = vpop.f32.mrb[0].mxu0
        %5202 = vmatprep.mubr.bf16.mxu0 %v4883
        %5203 = vmatmul.mubr.bf16.gmra.mrb[0].mxu0 %v4882
        %v5204 = vpop.f32.mrb[0].mxu0
        %v5205 = vadd.f32 0.0, %v5204
        %v5206 = vpop.f32.mrb[0].mxu0
        %v5207 = vpop.f32.mrb[0].mxu0
        %v5208 = vadd.f32 0.0, %v5207
        %v5209 = vpop.f32.mrb[0].mxu0
        %5210 = vmatprep.mubr.bf16.mxu0 %v4886
        %5211 = vmatmul.mubr.bf16.gmra.mrb[0].mxu0 %v4885
        %v5212 = vpop.f32.mrb[0].mxu0
        %v5213 = vadd.f32 0.0, %v5212
        %v5214 = vpop.f32.mrb[0].mxu0
        %v5215 = vpop.f32.mrb[0].mxu0
        %v5216 = vadd.f32 0.0, %v5215
        %v5217 = vpop.f32.mrb[0].mxu0
        %5218 = vmatprep.mubr.bf16.mxu0 %v4889
        %5219 = vmatmul.mubr.bf16.gmra.mrb[0].mxu0 %v4888
        %v5220 = vpop.f32.mrb[0].mxu0
        %v5221 = vadd.f32 0.0, %v5220
        %v5222 = vpop.f32.mrb[0].mxu0
        %v5223 = vpop.f32.mrb[0].mxu0
        %v5224 = vadd.f32 0.0, %v5223
        %v5225 = vpop.f32.mrb[0].mxu0
        %5226 = vmatprep.mubr.bf16.mxu0 %v4892
        %5227 = vmatmul.mubr.bf16.gmra.mrb[0].mxu0 %v4891
        %v5228 = vpop.f32.mrb[0].mxu0
        %v5229 = vadd.f32 0.0, %v5228
        %v5230 = vpop.f32.mrb[0].mxu0
        %v5231 = vpop.f32.mrb[0].mxu0
        %v5232 = vadd.f32 0.0, %v5231
        %v5233 = vpop.f32.mrb[0].mxu0
        %5234 = vmatprep.mubr.bf16.mxu0 %v4895
        %5235 = vmatmul.mubr.bf16.gmra.mrb[0].mxu0 %v4894
        %v5236 = vpop.f32.mrb[0].mxu0
        %v5237 = vadd.f32 0.0, %v5236
        %v5238 = vpop.f32.mrb[0].mxu0
        %v5239 = vpop.f32.mrb[0].mxu0
        %v5240 = vadd.f32 0.0, %v5239
        %v5241 = vpop.f32.mrb[0].mxu0
        %5242 = vdwg.mxu0
        %5243 = vmatprep.subr.bf16.mxu0 0
        %5244 = vmatpush1.bf16.msra.mxu0 %v5058
        %5245 = vmatprep.subr.bf16.mxu0 0
        %5246 = vmatpush1.bf16.msra.mxu0 %v5059
        %5247 = vmatprep.subr.bf16.mxu0 0
        %5248 = vmatpush1.bf16.msra.mxu0 %v5060
        %5249 = vmatprep.subr.bf16.mxu0 0
        %5250 = vmatpush1.bf16.msra.mxu0 %v5061
        %5251 = vmatprep.subr.bf16.mxu0 0
        %5252 = vmatpush1.bf16.msra.mxu0 %v5062
        %5253 = vmatprep.subr.bf16.mxu0 0
        %5254 = vmatpush1.bf16.msra.mxu0 %v5063
        %5255 = vmatprep.subr.bf16.mxu0 0
        %5256 = vmatpush1.bf16.msra.mxu0 %v5064
        %5257 = vmatprep.subr.bf16.mxu0 0
        %5258 = vmatpush1.bf16.msra.mxu0 %v5065
        %5259 = vmatprep.subr.bf16.mxu0 0
        %5260 = vmatpush1.bf16.msra.mxu0 0
        %5261 = vmatprep.subr.bf16.mxu0 0
        %5262 = vmatpush1.bf16.msra.mxu0 0
        %5263 = vmatprep.subr.bf16.mxu0 0
        %5264 = vmatpush1.bf16.msra.mxu0 0
        %5265 = vmatprep.subr.bf16.mxu0 0
        %5266 = vmatpush1.bf16.msra.mxu0 0
        %5267 = vmatprep.subr.bf16.mxu0 0
        %5268 = vmatpush1.bf16.msra.mxu0 0
        %5269 = vmatprep.subr.bf16.mxu0 0
        %5270 = vmatpush1.bf16.msra.mxu0 0
        %5271 = vmatprep.subr.bf16.mxu0 0
        %5272 = vmatpush1.bf16.msra.mxu0 0
        %5273 = vmatprep.subr.bf16.mxu0 0
        %5274 = vmatpush1.bf16.msra.mxu0 0
        %5275 = vmatprep.mubr.bf16.mxu0 0
        %5276 = vmatmul.mubr.bf16.gmra.mrb[0].mxu0 %v4854
        %v5277 = vpop.f32.mrb[0].mxu0
        %v5278 = vadd.f32 %v5125, %v5277
        %v5279 = vpop.f32.mrb[0].mxu0
        %v5280 = vpop.f32.mrb[0].mxu0
        %v5281 = vadd.f32 %v5128, %v5280
        %v5282 = vpop.f32.mrb[0].mxu0
        %5283 = vmatprep.mubr.bf16.mxu0 0
        %5284 = vmatmul.mubr.bf16.gmra.mrb[0].mxu0 %v4857
        %v5285 = vpop.f32.mrb[0].mxu0
        %v5286 = vadd.f32 %v5133, %v5285
        %v5287 = vpop.f32.mrb[0].mxu0
        %v5288 = vpop.f32.mrb[0].mxu0
        %v5289 = vadd.f32 %v5136, %v5288
        %v5290 = vpop.f32.mrb[0].mxu0
        %5291 = vmatprep.mubr.bf16.mxu0 0
        %5292 = vmatmul.mubr.bf16.gmra.mrb[0].mxu0 %v4860
        %v5293 = vpop.f32.mrb[0].mxu0
        %v5294 = vadd.f32 %v5141, %v5293
        %v5295 = vpop.f32.mrb[0].mxu0
        %v5296 = vpop.f32.mrb[0].mxu0
        %v5297 = vadd.f32 %v5144, %v5296
        %v5298 = vpop.f32.mrb[0].mxu0
        %5299 = vmatprep.mubr.bf16.mxu0 0
        %5300 = vmatmul.mubr.bf16.gmra.mrb[0].mxu0 %v4863
        %v5301 = vpop.f32.mrb[0].mxu0
        %v5302 = vadd.f32 %v5149, %v5301
        %v5303 = vpop.f32.mrb[0].mxu0
        %v5304 = vpop.f32.mrb[0].mxu0
        %v5305 = vadd.f32 %v5152, %v5304
        %v5306 = vpop.f32.mrb[0].mxu0
        %5307 = vmatprep.mubr.bf16.mxu0 0
        %5308 = vmatmul.mubr.bf16.gmra.mrb[0].mxu0 %v4866
        %v5309 = vpop.f32.mrb[0].mxu0
        %v5310 = vadd.f32 %v5157, %v5309
        %v5311 = vpop.f32.mrb[0].mxu0
        %v5312 = vpop.f32.mrb[0].mxu0
        %v5313 = vadd.f32 %v5160, %v5312
        %v5314 = vpop.f32.mrb[0].mxu0
        %5315 = vmatprep.mubr.bf16.mxu0 0
        %5316 = vmatmul.mubr.bf16.gmra.mrb[0].mxu0 %v4869
        %v5317 = vpop.f32.mrb[0].mxu0
        %v5318 = vadd.f32 %v5165, %v5317
        %v5319 = vpop.f32.mrb[0].mxu0
        %v5320 = vpop.f32.mrb[0].mxu0
        %v5321 = vadd.f32 %v5168, %v5320
        %v5322 = vpop.f32.mrb[0].mxu0
        %5323 = vmatprep.mubr.bf16.mxu0 0
        %5324 = vmatmul.mubr.bf16.gmra.mrb[0].mxu0 %v4872
        %v5325 = vpop.f32.mrb[0].mxu0
        %v5326 = vadd.f32 %v5173, %v5325
        %v5327 = vpop.f32.mrb[0].mxu0
        %v5328 = vpop.f32.mrb[0].mxu0
        %v5329 = vadd.f32 %v5176, %v5328
        %v5330 = vpop.f32.mrb[0].mxu0
        %5331 = vmatprep.mubr.bf16.mxu0 0
        %5332 = vmatmul.mubr.bf16.gmra.mrb[0].mxu0 %v4875
        %v5333 = vpop.f32.mrb[0].mxu0
        %v5334 = vadd.f32 %v5181, %v5333
        %v5335 = vpop.f32.mrb[0].mxu0
        %v5336 = vpop.f32.mrb[0].mxu0
        %v5337 = vadd.f32 %v5184, %v5336
        %v5338 = vpop.f32.mrb[0].mxu0
        %5339 = vmatprep.mubr.bf16.mxu0 0
        %5340 = vmatmul.mubr.bf16.gmra.mrb[0].mxu0 %v4878
        %v5341 = vpop.f32.mrb[0].mxu0
        %v5342 = vadd.f32 %v5189, %v5341
        %v5343 = vpop.f32.mrb[0].mxu0
        %v5344 = vpop.f32.mrb[0].mxu0
        %v5345 = vadd.f32 %v5192, %v5344
        %v5346 = vpop.f32.mrb[0].mxu0
        %5347 = vmatprep.mubr.bf16.mxu0 0
        %5348 = vmatmul.mubr.bf16.gmra.mrb[0].mxu0 %v4881
        %v5349 = vpop.f32.mrb[0].mxu0
        %v5350 = vadd.f32 %v5197, %v5349
        %v5351 = vpop.f32.mrb[0].mxu0
        %v5352 = vpop.f32.mrb[0].mxu0
        %v5353 = vadd.f32 %v5200, %v5352
        %v5354 = vpop.f32.mrb[0].mxu0
        %5355 = vmatprep.mubr.bf16.mxu0 0
        %5356 = vmatmul.mubr.bf16.gmra.mrb[0].mxu0 %v4884
        %v5357 = vpop.f32.mrb[0].mxu0
        %v5358 = vadd.f32 %v5205, %v5357
        %v5359 = vpop.f32.mrb[0].mxu0
        %v5360 = vpop.f32.mrb[0].mxu0
        %v5361 = vadd.f32 %v5208, %v5360
        %v5362 = vpop.f32.mrb[0].mxu0
        %5363 = vmatprep.mubr.bf16.mxu0 0
        %5364 = vmatmul.mubr.bf16.gmra.mrb[0].mxu0 %v4887
        %v5365 = vpop.f32.mrb[0].mxu0
        %v5366 = vadd.f32 %v5213, %v5365
        %v5367 = vpop.f32.mrb[0].mxu0
        %v5368 = vpop.f32.mrb[0].mxu0
        %v5369 = vadd.f32 %v5216, %v5368
        %v5370 = vpop.f32.mrb[0].mxu0
        %5371 = vmatprep.mubr.bf16.mxu0 0
        %5372 = vmatmul.mubr.bf16.gmra.mrb[0].mxu0 %v4890
        %v5373 = vpop.f32.mrb[0].mxu0
        %v5374 = vadd.f32 %v5221, %v5373
        %v5375 = vpop.f32.mrb[0].mxu0
        %v5376 = vpop.f32.mrb[0].mxu0
        %v5377 = vadd.f32 %v5224, %v5376
        %v5378 = vpop.f32.mrb[0].mxu0
        %5379 = vmatprep.mubr.bf16.mxu0 0
        %5380 = vmatmul.mubr.bf16.gmra.mrb[0].mxu0 %v4893
        %v5381 = vpop.f32.mrb[0].mxu0
        %v5382 = vadd.f32 %v5229, %v5381
        %v5383 = vpop.f32.mrb[0].mxu0
        %v5384 = vpop.f32.mrb[0].mxu0
        %v5385 = vadd.f32 %v5232, %v5384
        %v5386 = vpop.f32.mrb[0].mxu0
        %5387 = vmatprep.mubr.bf16.mxu0 0
        %5388 = vmatmul.mubr.bf16.gmra.mrb[0].mxu0 %v4896
        %v5389 = vpop.f32.mrb[0].mxu0
        %v5390 = vadd.f32 %v5237, %v5389
        %v5391 = vpop.f32.mrb[0].mxu0
        %v5392 = vpop.f32.mrb[0].mxu0
        %v5393 = vadd.f32 %v5240, %v5392
        %v5394 = vpop.f32.mrb[0].mxu0
        %5395 = vdwg.mxu0
        %v5396 = vadd.f32 %v4822, %v5278
        %v5397 = vadd.f32 %v4823, %v5281
        %v5398 = vadd.f32 %v4824, %v5286
        %v5399 = vadd.f32 %v4825, %v5289
        %v5400 = vadd.f32 %v4826, %v5294
        %v5401 = vadd.f32 %v4827, %v5297
        %v5402 = vadd.f32 %v4828, %v5302
        %v5403 = vadd.f32 %v4829, %v5305
        %v5404 = vadd.f32 %v4830, %v5310
        %v5405 = vadd.f32 %v4831, %v5313
        %v5406 = vadd.f32 %v4832, %v5318
        %v5407 = vadd.f32 %v4833, %v5321
        %v5408 = vadd.f32 %v4834, %v5326
        %v5409 = vadd.f32 %v4835, %v5329
        %v5410 = vadd.f32 %v4836, %v5334
        %v5411 = vadd.f32 %v4837, %v5337
        %v5412 = vadd.f32 %v4838, %v5342
        %v5413 = vadd.f32 %v4839, %v5345
        %v5414 = vadd.f32 %v4840, %v5350
        %v5415 = vadd.f32 %v4841, %v5353
        %v5416 = vadd.f32 %v4842, %v5358
        %v5417 = vadd.f32 %v4843, %v5361
        %v5418 = vadd.f32 %v4844, %v5366
        %v5419 = vadd.f32 %v4845, %v5369
        %v5420 = vadd.f32 %v4846, %v5374
        %v5421 = vadd.f32 %v4847, %v5377
        %v5422 = vadd.f32 %v4848, %v5382
        %v5423 = vadd.f32 %v4849, %v5385
        %v5424 = vadd.f32 %v4850, %v5390
        %v5425 = vadd.f32 %v4851, %v5393
        %5426 = vst [vmem:[#allocation3] sm:$0xff] %v5396
        %5427 = vst [vmem:[#allocation3 + $0x8] sm:$0xff] %v5397
        %5428 = vst [vmem:[#allocation3 + $0x10] sm:$0xff] %v5398
        %5429 = vst [vmem:[#allocation3 + $0x18] sm:$0xff] %v5399
        %5430 = vst [vmem:[#allocation3 + $0x20] sm:$0xff] %v5400
        %5431 = vst [vmem:[#allocation3 + $0x28] sm:$0xff] %v5401
        %5432 = vst [vmem:[#allocation3 + $0x30] sm:$0xff] %v5402
        %5433 = vst [vmem:[#allocation3 + $0x38] sm:$0xff] %v5403
        %5434 = vst [vmem:[#allocation3 + $0x40] sm:$0xff] %v5404
        %5435 = vst [vmem:[#allocation3 + $0x48] sm:$0xff] %v5405
        %5436 = vst [vmem:[#allocation3 + $0x50] sm:$0xff] %v5406
        %5437 = vst [vmem:[#allocation3 + $0x58] sm:$0xff] %v5407
        %5438 = vst [vmem:[#allocation3 + $0x60] sm:$0xff] %v5408
        %5439 = vst [vmem:[#allocation3 + $0x68] sm:$0xff] %v5409
        %5440 = vst [vmem:[#allocation3 + $0x70] sm:$0xff] %v5410
        %5441 = vst [vmem:[#allocation3 + $0x78] sm:$0xff] %v5411
        %5442 = vst [vmem:[#allocation3 + $0x80] sm:$0xff] %v5412
        %5443 = vst [vmem:[#allocation3 + $0x88] sm:$0xff] %v5413
        %5444 = vst [vmem:[#allocation3 + $0x90] sm:$0xff] %v5414
        %5445 = vst [vmem:[#allocation3 + $0x98] sm:$0xff] %v5415
        %5446 = vst [vmem:[#allocation3 + $0xa0] sm:$0xff] %v5416
        %5447 = vst [vmem:[#allocation3 + $0xa8] sm:$0xff] %v5417
        %5448 = vst [vmem:[#allocation3 + $0xb0] sm:$0xff] %v5418
        %5449 = vst [vmem:[#allocation3 + $0xb8] sm:$0xff] %v5419
        %5450 = vst [vmem:[#allocation3 + $0xc0] sm:$0xff] %v5420
        %5451 = vst [vmem:[#allocation3 + $0xc8] sm:$0xff] %v5421
        %5452 = vst [vmem:[#allocation3 + $0xd0] sm:$0xff] %v5422
        %5453 = vst [vmem:[#allocation3 + $0xd8] sm:$0xff] %v5423
        %5454 = vst [vmem:[#allocation3 + $0xe0] sm:$0xff] %v5424
        %5455 = vst [vmem:[#allocation3 + $0xe8] sm:$0xff] %v5425
        %v5456 = vld [vmem:[%s254] sm:$0xf]
        %v5457 = vld [vmem:[%s254 + $0x4] sm:$0xf]
        %v5458 = vld [vmem:[%s254 + $0x8] sm:$0xf]
        %v5459 = vld [vmem:[%s254 + $0xc] sm:$0xf]
        %v5460 = vld [vmem:[%s254 + $0x10] sm:$0xf]
        %v5461 = vld [vmem:[%s254 + $0x14] sm:$0xf]
        %v5462 = vld [vmem:[%s254 + $0x18] sm:$0xf]
        %v5463 = vld [vmem:[%s254 + $0x1c] sm:$0xf]
        %v5464 = vld [vmem:[%s254 + $0x20] sm:$0xf]
        %v5465 = vld [vmem:[%s254 + $0x24] sm:$0xf]
        %v5466 = vld [vmem:[%s254 + $0x28] sm:$0xf]
        %v5467 = vld [vmem:[%s254 + $0x2c] sm:$0xf]
        %v5468 = vld [vmem:[%s254 + $0x30] sm:$0xf]
        %v5469 = vld [vmem:[%s254 + $0x34] sm:$0xf]
        %v5470 = vld [vmem:[%s254 + $0x38] sm:$0xf]
        %v5471 = vld [vmem:[%s254 + $0x3c] sm:$0xf]
        %v5472 = vld [vmem:[%s254 + $0x40] sm:$0xf]
        %v5473 = vld [vmem:[%s254 + $0x44] sm:$0xf]
        %v5474 = vld [vmem:[%s254 + $0x48] sm:$0xf]
        %v5475 = vld [vmem:[%s254 + $0x4c] sm:$0xf]
        %v5476 = vld [vmem:[%s254 + $0x50] sm:$0xf]
        %v5477 = vld [vmem:[%s254 + $0x54] sm:$0xf]
        %v5478 = vld [vmem:[%s254 + $0x58] sm:$0xf]
        %v5479 = vld [vmem:[%s254 + $0x5c] sm:$0xf]
        %v5480 = vld [vmem:[%s254 + $0x60] sm:$0xf]
        %v5481 = vld [vmem:[%s254 + $0x64] sm:$0xf]
        %v5482 = vld [vmem:[%s254 + $0x68] sm:$0xf]
        %v5483 = vld [vmem:[%s254 + $0x6c] sm:$0xf]
        %v5484 = vld [vmem:[%s254 + $0x70] sm:$0xf]
        %v5485 = vld [vmem:[%s254 + $0x74] sm:$0xf]
        %v5486 = vld [vmem:[%s254 + $0x78] sm:$0xf]
        %v5487 = vld [vmem:[%s254 + $0x7c] sm:$0xf]
        %v5488 = vunpack.c.l.bf16 %v5456
        %v5489 = vunpack.c.l.bf16 %v5457
        %v5490 = vunpack.c.l.bf16 %v5458
        %v5491 = vunpack.c.l.bf16 %v5459
        %v5492 = vunpack.c.l.bf16 %v5460
        %v5493 = vunpack.c.l.bf16 %v5461
        %v5494 = vunpack.c.l.bf16 %v5462
        %v5495 = vunpack.c.l.bf16 %v5463
        %v5496 = vunpack.c.l.bf16 %v5464
        %v5497 = vunpack.c.l.bf16 %v5465
        %v5498 = vunpack.c.l.bf16 %v5466
        %v5499 = vunpack.c.l.bf16 %v5467
        %v5500 = vunpack.c.l.bf16 %v5468
        %v5501 = vunpack.c.l.bf16 %v5469
        %v5502 = vunpack.c.l.bf16 %v5470
        %v5503 = vunpack.c.l.bf16 %v5471
        %v5504 = vunpack.c.l.bf16 %v5472
        %v5505 = vunpack.c.l.bf16 %v5473
        %v5506 = vunpack.c.l.bf16 %v5474
        %v5507 = vunpack.c.l.bf16 %v5475
        %v5508 = vunpack.c.l.bf16 %v5476
        %v5509 = vunpack.c.l.bf16 %v5477
        %v5510 = vunpack.c.l.bf16 %v5478
        %v5511 = vunpack.c.l.bf16 %v5479
        %v5512 = vunpack.c.l.bf16 %v5480
        %v5513 = vunpack.c.l.bf16 %v5481
        %v5514 = vunpack.c.l.bf16 %v5482
        %v5515 = vunpack.c.l.bf16 %v5483
        %v5516 = vunpack.c.l.bf16 %v5484
        %v5517 = vunpack.c.l.bf16 %v5485
        %v5518 = vunpack.c.l.bf16 %v5486
        %v5519 = vunpack.c.l.bf16 %v5487
        %v5520 = vld [vmem:[#allocation3] sm:$0xff]
        %v5521 = vld [vmem:[#allocation3 + $0x8] sm:$0xff]
        %v5522 = vld [vmem:[#allocation3 + $0x10] sm:$0xff]
        %v5523 = vld [vmem:[#allocation3 + $0x18] sm:$0xff]
        %v5524 = vld [vmem:[#allocation3 + $0x20] sm:$0xff]
        %v5525 = vld [vmem:[#allocation3 + $0x28] sm:$0xff]
        %v5526 = vld [vmem:[#allocation3 + $0x30] sm:$0xff]
        %v5527 = vld [vmem:[#allocation3 + $0x38] sm:$0xff]
        %v5528 = vld [vmem:[#allocation3 + $0x40] sm:$0xff]
        %v5529 = vld [vmem:[#allocation3 + $0x48] sm:$0xff]
        %v5530 = vld [vmem:[#allocation3 + $0x50] sm:$0xff]
        %v5531 = vld [vmem:[#allocation3 + $0x58] sm:$0xff]
        %v5532 = vld [vmem:[#allocation3 + $0x60] sm:$0xff]
        %v5533 = vld [vmem:[#allocation3 + $0x68] sm:$0xff]
        %v5534 = vld [vmem:[#allocation3 + $0x70] sm:$0xff]
        %v5535 = vld [vmem:[#allocation3 + $0x78] sm:$0xff]
        %v5536 = vld [vmem:[#allocation3 + $0x80] sm:$0xff]
        %v5537 = vld [vmem:[#allocation3 + $0x88] sm:$0xff]
        %v5538 = vld [vmem:[#allocation3 + $0x90] sm:$0xff]
        %v5539 = vld [vmem:[#allocation3 + $0x98] sm:$0xff]
        %v5540 = vld [vmem:[#allocation3 + $0xa0] sm:$0xff]
        %v5541 = vld [vmem:[#allocation3 + $0xa8] sm:$0xff]
        %v5542 = vld [vmem:[#allocation3 + $0xb0] sm:$0xff]
        %v5543 = vld [vmem:[#allocation3 + $0xb8] sm:$0xff]
        %v5544 = vld [vmem:[#allocation3 + $0xc0] sm:$0xff]
        %v5545 = vld [vmem:[#allocation3 + $0xc8] sm:$0xff]
        %v5546 = vld [vmem:[#allocation3 + $0xd0] sm:$0xff]
        %v5547 = vld [vmem:[#allocation3 + $0xd8] sm:$0xff]
        %v5548 = vld [vmem:[#allocation3 + $0xe0] sm:$0xff]
        %v5549 = vld [vmem:[#allocation3 + $0xe8] sm:$0xff]
        %v5550 = vld [vmem:[#allocation3 + $0xf0] sm:$0xff]
        %v5551 = vld [vmem:[#allocation3 + $0xf8] sm:$0xff]
        %v5552 = vld [vmem:[#allocation12] sm:$0x1]
        %v5554 = vlaneseq
        %v5555 = vshrl.u32 %v5554, 7
        %v5556 = vsub.s32 0, %v5555
        %v5557 = vrot.slane %v5552, %v5556
        %v5559 = vadd.f32 %v5520, %v5557
        %v5560 = vadd.f32 %v5521, %v5557
        %v5561 = vadd.f32 %v5522, %v5557
        %v5562 = vadd.f32 %v5523, %v5557
        %v5563 = vadd.f32 %v5524, %v5557
        %v5564 = vadd.f32 %v5525, %v5557
        %v5565 = vadd.f32 %v5526, %v5557
        %v5566 = vadd.f32 %v5527, %v5557
        %v5567 = vadd.f32 %v5528, %v5557
        %v5568 = vadd.f32 %v5529, %v5557
        %v5569 = vadd.f32 %v5530, %v5557
        %v5570 = vadd.f32 %v5531, %v5557
        %v5571 = vadd.f32 %v5532, %v5557
        %v5572 = vadd.f32 %v5533, %v5557
        %v5573 = vadd.f32 %v5534, %v5557
        %v5574 = vadd.f32 %v5535, %v5557
        %v5575 = vadd.f32 %v5536, %v5557
        %v5576 = vadd.f32 %v5537, %v5557
        %v5577 = vadd.f32 %v5538, %v5557
        %v5578 = vadd.f32 %v5539, %v5557
        %v5579 = vadd.f32 %v5540, %v5557
        %v5580 = vadd.f32 %v5541, %v5557
        %v5581 = vadd.f32 %v5542, %v5557
        %v5582 = vadd.f32 %v5543, %v5557
        %v5583 = vadd.f32 %v5544, %v5557
        %v5584 = vadd.f32 %v5545, %v5557
        %v5585 = vadd.f32 %v5546, %v5557
        %v5586 = vadd.f32 %v5547, %v5557
        %v5587 = vadd.f32 %v5548, %v5557
        %v5588 = vadd.f32 %v5549, %v5557
        %v5589 = vadd.f32 %v5550, %v5557
        %v5590 = vadd.f32 %v5551, %v5557
        %v5591 = vadd.f32 %v5559, %v5488
        %v5592 = vadd.f32 %v5560, %v5489
        %v5593 = vadd.f32 %v5561, %v5490
        %v5594 = vadd.f32 %v5562, %v5491
        %v5595 = vadd.f32 %v5563, %v5492
        %v5596 = vadd.f32 %v5564, %v5493
        %v5597 = vadd.f32 %v5565, %v5494
        %v5598 = vadd.f32 %v5566, %v5495
        %v5599 = vadd.f32 %v5567, %v5496
        %v5600 = vadd.f32 %v5568, %v5497
        %v5601 = vadd.f32 %v5569, %v5498
        %v5602 = vadd.f32 %v5570, %v5499
        %v5603 = vadd.f32 %v5571, %v5500
        %v5604 = vadd.f32 %v5572, %v5501
        %v5605 = vadd.f32 %v5573, %v5502
        %v5606 = vadd.f32 %v5574, %v5503
        %v5607 = vadd.f32 %v5575, %v5504
        %v5608 = vadd.f32 %v5576, %v5505
        %v5609 = vadd.f32 %v5577, %v5506
        %v5610 = vadd.f32 %v5578, %v5507
        %v5611 = vadd.f32 %v5579, %v5508
        %v5612 = vadd.f32 %v5580, %v5509
        %v5613 = vadd.f32 %v5581, %v5510
        %v5614 = vadd.f32 %v5582, %v5511
        %v5615 = vadd.f32 %v5583, %v5512
        %v5616 = vadd.f32 %v5584, %v5513
        %v5617 = vadd.f32 %v5585, %v5514
        %v5618 = vadd.f32 %v5586, %v5515
        %v5619 = vadd.f32 %v5587, %v5516
        %v5620 = vadd.f32 %v5588, %v5517
        %v5621 = vadd.f32 %v5589, %v5518
        %v5622 = vadd.f32 %v5590, %v5519
        %v5623 = vmax.f32 %v5591, 0.0
        %v5624 = vmax.f32 %v5592, 0.0
        %v5625 = vmax.f32 %v5593, 0.0
        %v5626 = vmax.f32 %v5594, 0.0
        %v5627 = vmax.f32 %v5595, 0.0
        %v5628 = vmax.f32 %v5596, 0.0
        %v5629 = vmax.f32 %v5597, 0.0
        %v5630 = vmax.f32 %v5598, 0.0
        %v5631 = vmax.f32 %v5599, 0.0
        %v5632 = vmax.f32 %v5600, 0.0
        %v5633 = vmax.f32 %v5601, 0.0
        %v5634 = vmax.f32 %v5602, 0.0
        %v5635 = vmax.f32 %v5603, 0.0
        %v5636 = vmax.f32 %v5604, 0.0
        %v5637 = vmax.f32 %v5605, 0.0
        %v5638 = vmax.f32 %v5606, 0.0
        %v5639 = vmax.f32 %v5607, 0.0
        %v5640 = vmax.f32 %v5608, 0.0
        %v5641 = vmax.f32 %v5609, 0.0
        %v5642 = vmax.f32 %v5610, 0.0
        %v5643 = vmax.f32 %v5611, 0.0
        %v5644 = vmax.f32 %v5612, 0.0
        %v5645 = vmax.f32 %v5613, 0.0
        %v5646 = vmax.f32 %v5614, 0.0
        %v5647 = vmax.f32 %v5615, 0.0
        %v5648 = vmax.f32 %v5616, 0.0
        %v5649 = vmax.f32 %v5617, 0.0
        %v5650 = vmax.f32 %v5618, 0.0
        %v5651 = vmax.f32 %v5619, 0.0
        %v5652 = vmax.f32 %v5620, 0.0
        %v5653 = vmax.f32 %v5621, 0.0
        %v5654 = vmax.f32 %v5622, 0.0
        %v5655 = vpack.c.bf16 %v5624, %v5623
        %v5656 = vpack.c.bf16 %v5626, %v5625
        %v5657 = vpack.c.bf16 %v5628, %v5627
        %v5658 = vpack.c.bf16 %v5630, %v5629
        %v5659 = vpack.c.bf16 %v5632, %v5631
        %v5660 = vpack.c.bf16 %v5634, %v5633
        %v5661 = vpack.c.bf16 %v5636, %v5635
        %v5662 = vpack.c.bf16 %v5638, %v5637
        %v5663 = vpack.c.bf16 %v5640, %v5639
        %v5664 = vpack.c.bf16 %v5642, %v5641
        %v5665 = vpack.c.bf16 %v5644, %v5643
        %v5666 = vpack.c.bf16 %v5646, %v5645
        %v5667 = vpack.c.bf16 %v5648, %v5647
        %v5668 = vpack.c.bf16 %v5650, %v5649
        %v5669 = vpack.c.bf16 %v5652, %v5651
        %v5670 = vpack.c.bf16 %v5654, %v5653
        %v5687 = vunpack.c.l.b16 %v5655
        %v5688 = vunpack.c.h.b16 %v5655
        %v5689 = vunpack.c.l.b16 %v5656
        %v5690 = vunpack.c.h.b16 %v5656
        %v5691 = vunpack.c.l.b16 %v5657
        %v5692 = vunpack.c.h.b16 %v5657
        %v5693 = vunpack.c.l.b16 %v5658
        %v5694 = vunpack.c.h.b16 %v5658
        %v5695 = vunpack.c.l.b16 %v5659
        %v5696 = vunpack.c.h.b16 %v5659
        %v5697 = vunpack.c.l.b16 %v5660
        %v5698 = vunpack.c.h.b16 %v5660
        %v5699 = vunpack.c.l.b16 %v5661
        %v5700 = vunpack.c.h.b16 %v5661
        %v5701 = vunpack.c.l.b16 %v5662
        %v5702 = vunpack.c.h.b16 %v5662
        %v5703 = vunpack.c.l.b16 %v5663
        %v5704 = vunpack.c.h.b16 %v5663
        %v5705 = vunpack.c.l.b16 %v5664
        %v5706 = vunpack.c.h.b16 %v5664
        %v5707 = vunpack.c.l.b16 %v5665
        %v5708 = vunpack.c.h.b16 %v5665
        %v5709 = vunpack.c.l.b16 %v5666
        %v5710 = vunpack.c.h.b16 %v5666
        %v5711 = vunpack.c.l.b16 %v5667
        %v5712 = vunpack.c.h.b16 %v5667
        %v5713 = vunpack.c.l.b16 %v5668
        %v5714 = vunpack.c.h.b16 %v5668
        %v5715 = vunpack.c.l.b16 %v5669
        %v5716 = vunpack.c.h.b16 %v5669
        %v5717 = vunpack.c.l.b16 %v5670
        %v5718 = vunpack.c.h.b16 %v5670
        %v5719 = vpack.c.b16 %v5687, %v5687
        %v5720 = vpack.c.b16 %v5688, %v5688
        %v5721 = vpack.c.b16 %v5689, %v5689
        %v5722 = vpack.c.b16 %v5690, %v5690
        %v5723 = vpack.c.b16 %v5691, %v5691
        %v5724 = vpack.c.b16 %v5692, %v5692
        %v5725 = vpack.c.b16 %v5693, %v5693
        %v5726 = vpack.c.b16 %v5694, %v5694
        %v5727 = vpack.c.b16 %v5695, %v5695
        %v5728 = vpack.c.b16 %v5696, %v5696
        %v5729 = vpack.c.b16 %v5697, %v5697
        %v5730 = vpack.c.b16 %v5698, %v5698
        %v5731 = vpack.c.b16 %v5699, %v5699
        %v5732 = vpack.c.b16 %v5700, %v5700
        %v5733 = vpack.c.b16 %v5701, %v5701
        %v5734 = vpack.c.b16 %v5702, %v5702
        %v5735 = vpack.c.b16 %v5703, %v5703
        %v5736 = vpack.c.b16 %v5704, %v5704
        %v5737 = vpack.c.b16 %v5705, %v5705
        %v5738 = vpack.c.b16 %v5706, %v5706
        %v5739 = vpack.c.b16 %v5707, %v5707
        %v5740 = vpack.c.b16 %v5708, %v5708
        %v5741 = vpack.c.b16 %v5709, %v5709
        %v5742 = vpack.c.b16 %v5710, %v5710
        %v5743 = vpack.c.b16 %v5711, %v5711
        %v5744 = vpack.c.b16 %v5712, %v5712
        %v5745 = vpack.c.b16 %v5713, %v5713
        %v5746 = vpack.c.b16 %v5714, %v5714
        %v5747 = vpack.c.b16 %v5715, %v5715
        %v5748 = vpack.c.b16 %v5716, %v5716
        %v5749 = vpack.c.b16 %v5717, %v5717
        %v5750 = vpack.c.b16 %v5718, %v5718
        %5783 = vst [vmem:[%s296] sm:$0xf] %v5719
        %5784 = vst [vmem:[%s296 + $0x4] sm:$0xf] %v5720
        %5785 = vst [vmem:[%s296 + $0x8] sm:$0xf] %v5721
        %5786 = vst [vmem:[%s296 + $0xc] sm:$0xf] %v5722
        %5787 = vst [vmem:[%s296 + $0x10] sm:$0xf] %v5723
        %5788 = vst [vmem:[%s296 + $0x14] sm:$0xf] %v5724
        %5789 = vst [vmem:[%s296 + $0x18] sm:$0xf] %v5725
        %5790 = vst [vmem:[%s296 + $0x1c] sm:$0xf] %v5726
        %5791 = vst [vmem:[%s296 + $0x20] sm:$0xf] %v5727
        %5792 = vst [vmem:[%s296 + $0x24] sm:$0xf] %v5728
        %5793 = vst [vmem:[%s296 + $0x28] sm:$0xf] %v5729
        %5794 = vst [vmem:[%s296 + $0x2c] sm:$0xf] %v5730
        %5795 = vst [vmem:[%s296 + $0x30] sm:$0xf] %v5731
        %5796 = vst [vmem:[%s296 + $0x34] sm:$0xf] %v5732
        %5797 = vst [vmem:[%s296 + $0x38] sm:$0xf] %v5733
        %5798 = vst [vmem:[%s296 + $0x3c] sm:$0xf] %v5734
        %5799 = vst [vmem:[%s296 + $0x40] sm:$0xf] %v5735
        %5800 = vst [vmem:[%s296 + $0x44] sm:$0xf] %v5736
        %5801 = vst [vmem:[%s296 + $0x48] sm:$0xf] %v5737
        %5802 = vst [vmem:[%s296 + $0x4c] sm:$0xf] %v5738
        %5803 = vst [vmem:[%s296 + $0x50] sm:$0xf] %v5739
        %5804 = vst [vmem:[%s296 + $0x54] sm:$0xf] %v5740
        %5805 = vst [vmem:[%s296 + $0x58] sm:$0xf] %v5741
        %5806 = vst [vmem:[%s296 + $0x5c] sm:$0xf] %v5742
        %5807 = vst [vmem:[%s296 + $0x60] sm:$0xf] %v5743
        %5808 = vst [vmem:[%s296 + $0x64] sm:$0xf] %v5744
        %5809 = vst [vmem:[%s296 + $0x68] sm:$0xf] %v5745
        %5810 = vst [vmem:[%s296 + $0x6c] sm:$0xf] %v5746
        %5811 = vst [vmem:[%s296 + $0x70] sm:$0xf] %v5747
        %5812 = vst [vmem:[%s296 + $0x74] sm:$0xf] %v5748
        %5813 = vst [vmem:[%s296 + $0x78] sm:$0xf] %v5749
        %5814 = vst [vmem:[%s296 + $0x7c] sm:$0xf] %v5750
        %s5815 = sand.u32 %s142, 1
        %s5816 = scalar_lea.sflag [#allocation6], %s5815
        %s5817 = sand.u32 %s142, 1
        %s5818 = smul.addr %s5817, 128
        %s5819 = scalar_lea.vmem [#allocation13], %s5818
        // Predicated region
        $region61: #{tpu_custom_call.1} parent=39 // pred_check
          %p5820 = pneg %p152
        $region62: #{tpu_custom_call.1} parent=39 // pred_check_branch
          %5822 = sbr.rel (%p5820) target = $region64
        $region63: #{tpu_custom_call.1} parent=39 // pred_region
          %s5824 = ssub.s32 2048, 2048
          %5825 = vsyncadd %s5816, %s5824
          %s5826 = smul.addr %s24, 32
          %s5827 = smul.addr %s5826, 64
          %s5828 = scalar_lea.hbm %s5, %s5827
          %s5829 = sshll.u32 %s5819, 4
          %s5830 = int_to_ptr.vmem [resolvable:$true] %s5829
          %5835 = dma.vmem_to_hbm [thread:$0]  %s5830, 2048, %s5828, %s5816, 64, 64, 4
        $region64: #{tpu_custom_call.1} parent=39 // pred_fallthru
          _
      $region40: #{tpu_custom_call.1} parent=5 // pred_fallthru
        _
      %p5836 = scmp.le.s32.totalorder 2, %s19
      // Predicated region
      $region65: #{tpu_custom_call.1} parent=5 // pred_check
        %p5837 = pneg %p5836
      $region66: #{tpu_custom_call.1} parent=5 // pred_check_branch
        %5839 = sbr.rel (%p5837) target = $region68
      $region67: #{tpu_custom_call.1} parent=5 // pred_region
        %s5840 = ssub.s32 %s19, 2
        // Predicated region
        $region69: #{tpu_custom_call.1} parent=67 // pred_check
          %p5841 = pneg %p158
        $region70: #{tpu_custom_call.1} parent=67 // pred_check_branch
          %5843 = sbr.rel (%p5841) target = $region72
        $region71: #{tpu_custom_call.1} parent=67 // pred_region
          %s5844 = sand.u32 %s143, 1
          %s5845 = scalar_lea.sflag [#allocation6], %s5844
          %s5846 = sand.u32 %s143, 1
          %s5847 = smul.addr %s5846, 128
          %s5848 = scalar_lea.vmem [#allocation13], %s5847
          %5849 = dma.done %s5845, 2048
        $region72: #{tpu_custom_call.1} parent=67 // pred_fallthru
          _
      $region68: #{tpu_custom_call.1} parent=5 // pred_fallthru
        _
    $region6: #{tpu_custom_call.1} parent=1 // loop_footer
      %s23 = sadd.s32 1, %s19
    $region7: #{tpu_custom_call.1} parent=1 // loop_footer_branch
      %18 = sbr.rel target = $region3
    $region8: #{tpu_custom_call.1} parent=1 // loop_exit
      _
    %5850 = vsyncpa [#allocation5], 1
    %s5851 = scalar_lea.sflag [#allocation5], 1
    %5852 = vsyncpa %s5851, 1
    %5853 = vsyncpa [#allocation8], 1
    %5854 = vsyncpa [#allocation11], 1
    %5855 = vsyncpa [#allocation6], 1
    %s5856 = scalar_lea.sflag [#allocation6], 1
    %5857 = vsyncpa %s5856, 1

</llo_original>
